<compile_context>
chip_gen: v7x
topology: tpu7x:2x2x1
jax: 0.10.0
libtpu: 0.0.40
codegen_flags: <defaults>
</compile_context>

<pallas_src>
import functools

import jax
import jax.numpy as jnp
import numpy as np
from jax import lax
from jax.experimental import pallas as pl
from jax.experimental.pallas import tpu as pltpu

NEG_SLOPE = 0.2
GN_GROUPS = 32
GN_EPS = 1e-6

LANE = 128
ROW_ALIGN = 16                # bf16 packs 2 rows / sublane -> align M tiles to 16
TILE_M_MAX = 512              # measured roofline sweet spot; fits v7x 64MiB VMEM
ACT_DTYPE = jnp.bfloat16      # matmul operands / stored activations (f32 accum)


def _round_up(x, m):
    return (x + m - 1) // m * m


# --------------------------------------------------------------------------
# Pallas kernels
# --------------------------------------------------------------------------
def _conv_kernel(p_ref, w_ref, b_ref, o_ref, *, apply_act):
    """Pure conv tile: (TM, K) @ (K, Cp) + bias [+ LeakyReLU(0.2)]."""
    y = jnp.dot(p_ref[...], w_ref[...], preferred_element_type=jnp.float32)
    y = y + b_ref[...]
    if apply_act:
        y = jnp.maximum(y, NEG_SLOPE * y)
    o_ref[...] = y.astype(o_ref.dtype)


def _conv_stats_kernel(p_ref, w_ref, b_ref, o_ref, s1_ref, s2_ref, *,
                       apply_act, m_valid, tile_m):
    """Conv tile + per-(sample, channel) partial sums of the f32 activation.

    refs: p(1,TM,K) w(K,Cp) b(1,Cp) -> o(1,TM,Cp) s1(1,1,1,Cp) s2(1,1,1,Cp)
    """
    y = jnp.dot(p_ref[0], w_ref[...], preferred_element_type=jnp.float32)
    y = y + b_ref[...]
    if apply_act:
        y = jnp.maximum(y, NEG_SLOPE * y)                   # LeakyReLU(0.2)
    o_ref[0] = y.astype(o_ref.dtype)

    if m_valid % tile_m:                                    # mask padded M rows
        row = pl.program_id(1) * tile_m + lax.broadcasted_iota(
            jnp.int32, (tile_m, 1), 0)
        y = jnp.where(row < m_valid, y, 0.0)
    s1_ref[0, 0] = jnp.sum(y, axis=0, keepdims=True)
    s2_ref[0, 0] = jnp.sum(y * y, axis=0, keepdims=True)


def _maxpool_kernel(x_ref, o_ref):
    """2x2/2 max over a block of row pairs: (1, 2*TRH, W, C) -> (1, TRH, W/2, C)."""
    v = x_ref[0]                                            # (2*TRH, W, C)
    r2, w, c = v.shape
    v = v.reshape(r2 // 2, 2, w, c).max(axis=1)             # row pairs (leading)
    v = v.reshape(r2 // 2, w // 2, 2, c).max(axis=2)        # column pairs
    o_ref[0] = v


# --------------------------------------------------------------------------
# Conv layer wrapper (im2col glue + tiled Pallas matmul)
# --------------------------------------------------------------------------
def conv_layer(x, w, b, *, stride, apply_act, out_stats=False,
               out_dtype=ACT_DTYPE):
    """3x3 conv (padding=1) + bias [+ LeakyReLU] as a tiled Pallas matmul.

    x is assumed already normalized (GN affine applied in the wrapper), so the
    spatial zero-padding is exact, matching PyTorch's Conv2d(padding=1).
    out_stats : also return per-(sample, channel) sums (s1, s2, count) of the
                f32 activation output (for the GroupNorm that follows).
    """
    n, h, wdt, cin = x.shape
    cout = w.shape[-1]
    ho = (h + 2 - 3) // stride + 1
    wo = (wdt + 2 - 3) // stride + 1
    m = ho * wo
    k = 9 * cin
    cout_p = _round_up(cout, LANE)           # lane-dense output channels

    # ---- im2col (XLA glue).
    # TODO(synk): in-kernel shifted-accumulate matmuls with halo DMA.
    xp = jnp.pad(x, ((0, 0), (1, 1), (1, 1), (0, 0)))
    cols = []
    for ky in range(3):
        for kx in range(3):
            cols.append(xp[:, ky:ky + (ho - 1) * stride + 1:stride,
                              kx:kx + (wo - 1) * stride + 1:stride, :])
    patches = jnp.concatenate(cols, axis=-1).reshape(n, m, k).astype(ACT_DTYPE)

    wm = w.reshape(k, cout).astype(ACT_DTYPE)
    bm = b.reshape(1, cout).astype(jnp.float32)
    if cout_p != cout:
        wm = jnp.pad(wm, ((0, 0), (0, cout_p - cout)))
        bm = jnp.pad(bm, ((0, 0), (0, cout_p - cout)))

    itm = jnp.dtype(ACT_DTYPE).itemsize
    oitm = jnp.dtype(out_dtype).itemsize

    if out_stats:
        # Per-sample grid so GN partial sums never mix samples.
        tile_m = TILE_M_MAX if m >= TILE_M_MAX else _round_up(m, ROW_ALIGN)
        mp = _round_up(m, tile_m)
        if mp != m:
            patches = jnp.pad(patches, ((0, 0), (0, mp - m), (0, 0)))
        n_mt = mp // tile_m
        grid = (n, n_mt)
        kernel = functools.partial(_conv_stats_kernel, apply_act=apply_act,
                                   m_valid=m, tile_m=tile_m)
        in_specs = [pl.BlockSpec((1, tile_m, k), lambda i, t: (i, t, 0)),
                    pl.BlockSpec((k, cout_p), lambda i, t: (0, 0)),
                    pl.BlockSpec((1, cout_p), lambda i, t: (0, 0))]
        out_shape = (jax.ShapeDtypeStruct((n, mp, cout_p), out_dtype),
                     jax.ShapeDtypeStruct((n, n_mt, 1, cout_p), jnp.float32),
                     jax.ShapeDtypeStruct((n, n_mt, 1, cout_p), jnp.float32))
        out_specs = (pl.BlockSpec((1, tile_m, cout_p), lambda i, t: (i, t, 0)),
                     pl.BlockSpec((1, 1, 1, cout_p), lambda i, t: (i, t, 0, 0)),
                     pl.BlockSpec((1, 1, 1, cout_p), lambda i, t: (i, t, 0, 0)))
        semantics = ("parallel", "parallel")
        rows_total = n * mp
    else:
        # Fold batch into M: >= 2 parallel grid points, full MXU rows even on
        # the deep layers where per-sample M collapses.
        rows = n * m
        patches = patches.reshape(rows, k)
        tile_m = TILE_M_MAX if rows >= TILE_M_MAX else _round_up(rows, ROW_ALIGN)
        rp = _round_up(rows, tile_m)
        if rp != rows:
            patches = jnp.pad(patches, ((0, rp - rows), (0, 0)))
        grid = (rp // tile_m,)
        kernel = functools.partial(_conv_kernel, apply_act=apply_act)
        in_specs = [pl.BlockSpec((tile_m, k), lambda t: (t, 0)),
                    pl.BlockSpec((k, cout_p), lambda t: (0, 0)),
                    pl.BlockSpec((1, cout_p), lambda t: (0, 0))]
        out_shape = jax.ShapeDtypeStruct((rp, cout_p), out_dtype)
        out_specs = pl.BlockSpec((tile_m, cout_p), lambda t: (t, 0))
        semantics = ("parallel",)
        rows_total = rp

    # Explicit VMEM budget (double-buffered tiles + f32 temporaries), capped at
    # 48 MiB to keep Mosaic scratch headroom on v7x's 64 MiB VMEM.
    vmem_bytes = (2 * tile_m * k * itm            # patch tiles (x2 buffers)
                  + 2 * k * cout_p * itm          # weight
                  + 2 * cout_p * 4                # bias
                  + 2 * tile_m * cout_p * oitm    # output tiles
                  + tile_m * cout_p * 4           # f32 accumulator temp
                  + 8 * cout_p * 4                # stats blocks
                  + (4 << 20))                    # headroom
    vmem_bytes = int(min(max(vmem_bytes, 16 << 20), 48 << 20))

    cost = pl.CostEstimate(
        flops=int(2 * rows_total * k * cout_p),
        transcendentals=0,
        bytes_accessed=int(patches.size * itm + wm.size * itm + bm.size * 4
                           + rows_total * cout_p * oitm))

    outs = pl.pallas_call(
        kernel,
        out_shape=out_shape,
        grid=grid,
        in_specs=in_specs,
        out_specs=out_specs,
        compiler_params=pltpu.CompilerParams(
            dimension_semantics=semantics, vmem_limit_bytes=vmem_bytes),
        cost_estimate=cost,
    )(patches, wm, bm)

    if out_stats:
        y = outs[0][:, :m, :cout].reshape(n, ho, wo, cout)
        s1 = outs[1][:, :, 0, :].sum(axis=1)      # (N, Cp); sliced to C in GN
        s2 = outs[2][:, :, 0, :].sum(axis=1)
        return y, (s1, s2, m)
    y = outs[:n * m, :cout].reshape(n, ho, wo, cout)
    return y


# --------------------------------------------------------------------------
# GroupNorm folding / application (tiny per-(sample, channel) math, XLA glue)
# --------------------------------------------------------------------------
def groupnorm_affine(s1, s2, count, gamma, beta):
    """Fold GroupNorm(32, C, eps=1e-6) into a per-(sample, channel) affine."""
    c = gamma.shape[0]
    s1 = s1[:, :c]                                # drop lane-padding channels
    s2 = s2[:, :c]
    n = s1.shape[0]
    gsz = c // GN_GROUPS
    cnt = float(count * gsz)
    mean_g = s1.reshape(n, GN_GROUPS, gsz).sum(-1) / cnt
    var_g = s2.reshape(n, GN_GROUPS, gsz).sum(-1) / cnt - mean_g * mean_g
    var_g = jnp.maximum(var_g, 0.0)               # E[x^2]-mean^2 guard
    # TODO(synk): per-tile Welford (mean, M2) combine if tolerances tighten.
    inv_g = lax.rsqrt(var_g + GN_EPS)
    mean = jnp.repeat(mean_g, gsz, axis=1)        # (N, C)
    inv = jnp.repeat(inv_g, gsz, axis=1)
    scale = inv * gamma[None, :]
    shift = beta[None, :] - mean * scale
    return scale, shift


def apply_gn_affine(h, affine):
    """Apply the folded GN affine to the unpadded feature map in f32 (exact 0
    padding afterwards; 9x fewer elements than applying it on patches)."""
    scale, shift = affine
    return (h.astype(jnp.float32) * scale[:, None, None, :]
            + shift[:, None, None, :]).astype(ACT_DTYPE)


# --------------------------------------------------------------------------
# MaxPool2d(2, 2): direct-read Pallas kernel (no strided-slice HBM copies)
# --------------------------------------------------------------------------
def maxpool_2x2(x):
    n, h, w, c = x.shape
    assert h % 2 == 0 and w % 2 == 0, "MaxPool2d(2,2) needs even H, W"
    hm, wm = h // 2, w // 2
    itm = jnp.dtype(x.dtype).itemsize
    # output rows per tile: keep the input block around <= 512 KiB
    trh = max(1, min(hm, (1 << 19) // max(1, 2 * w * c * itm)))
    while hm % trh:
        trh -= 1
    grid = (n, hm // trh)
    vmem_bytes = int(min(max(2 * (2 * trh * w * c + trh * wm * c) * itm
                             + (2 << 20), 8 << 20), 48 << 20))
    cost = pl.CostEstimate(
        flops=int(3 * n * hm * wm * c), transcendentals=0,
        bytes_accessed=int(x.size * itm + n * hm * wm * c * itm))
    return pl.pallas_call(
        _maxpool_kernel,
        out_shape=jax.ShapeDtypeStruct((n, hm, wm, c), x.dtype),
        grid=grid,
        in_specs=[pl.BlockSpec((1, 2 * trh, w, c), lambda i, t: (i, t, 0, 0))],
        out_specs=pl.BlockSpec((1, trh, wm, c), lambda i, t: (i, t, 0, 0)),
        compiler_params=pltpu.CompilerParams(
            dimension_semantics=("parallel", "parallel"),
            vmem_limit_bytes=vmem_bytes),
        cost_estimate=cost,
    )(x)


# --------------------------------------------------------------------------
# Parameters (deterministic, synthetic — mirrors NLayerDiscriminator.__init__)
# --------------------------------------------------------------------------
def init_params(key, input_nc=3, ndf=64, n_layers=3):
    chans = [(input_nc, ndf, 2)]
    nf_mult = 1
    for n in range(1, n_layers):
        nf_mult_prev = nf_mult
        nf_mult = min(2 ** (n - 1), 8)
        chans.append((ndf * nf_mult_prev, ndf * nf_mult, 2))
    nf_mult_prev = nf_mult
    nf_mult = min(2 ** (n_layers - 1), 8)
    chans.append((ndf * nf_mult_prev, ndf * nf_mult, 1))
    chans.append((ndf * nf_mult, 1, 1))

    params, strides = [], []
    for (cin, cout, stride) in chans:
        key, kw_, kb_ = jax.random.split(key, 3)
        w = 0.02 * jax.random.normal(kw_, (3, 3, cin, cout), jnp.float32)
        bound = 1.0 / np.sqrt(cin * 9)
        b = jax.random.uniform(kb_, (cout,), jnp.float32, -bound, bound)
        params.append({"w": w, "b": b})
        strides.append(stride)

    # GroupNorm(32, C, eps=1e-6, affine=True) defaults: weight=1, bias=0,
    # applied to the outputs of the first n_layers convs.
    gns = []
    for (_, cout, _) in chans[:-2]:
        gns.append({"gamma": jnp.ones((cout,), jnp.float32),
                    "beta": jnp.zeros((cout,), jnp.float32)})
    return params, gns, strides


# --------------------------------------------------------------------------
# Forward passes
# --------------------------------------------------------------------------
def discriminator_forward(x_nchw, params, gns, strides):
    x = jnp.transpose(x_nchw, (0, 2, 3, 1)).astype(ACT_DTYPE)   # NCHW -> NHWC
    n_convs = len(params)
    h = x
    affine = None
    # convs 0..n_layers-1: conv + LeakyReLU; each output's GroupNorm is
    # (tile stats fused into the conv kernel) + (affine applied to the unpadded
    # feature map before the next conv's patch extraction).
    for i in range(n_convs - 2):
        if affine is not None:
            h = apply_gn_affine(h, affine)
        h, (s1, s2, cnt) = conv_layer(
            h, params[i]["w"], params[i]["b"], stride=strides[i],
            apply_act=True, out_stats=True)
        affine = groupnorm_affine(s1, s2, cnt, gns[i]["gamma"], gns[i]["beta"])
    # stride-1 conv + LeakyReLU (GN of its input applied first), then MaxPool
    i = n_convs - 2
    h = apply_gn_affine(h, affine)
    h = conv_layer(h, params[i]["w"], params[i]["b"], stride=strides[i],
                   apply_act=True, out_stats=False)
    h = maxpool_2x2(h)
    # final 1-channel conv — computed lane-dense (Cout padded to 128) in-kernel
    i = n_convs - 1
    h = conv_layer(h, params[i]["w"], params[i]["b"], stride=strides[i],
                   apply_act=False, out_stats=False, out_dtype=jnp.float32)
    return jnp.transpose(h, (0, 3, 1, 2))                        # NHWC -> NCHW


def reference_forward(x_nchw, params, gns, strides):
    """Pure-JAX f32 reference (lax.conv / explicit GroupNorm)."""
    x = jnp.transpose(x_nchw, (0, 2, 3, 1)).astype(jnp.float32)

    def conv(h, w, b, stride):
        out = lax.conv_general_dilated(
            h, w, (stride, stride), ((1, 1), (1, 1)),
            dimension_numbers=("NHWC", "HWIO", "NHWC"),
            precision=lax.Precision.HIGHEST)
        return out + b

    def lrelu(h):
        return jnp.where(h > 0, h, NEG_SLOPE * h)

    def gn(h, gamma, beta):
        n, hh, ww, c = h.shape
        g = c // GN_GROUPS
        hr = h.reshape(n, hh, ww, GN_GROUPS, g)
        mean = hr.mean(axis=(1, 2, 4), keepdims=True)
        var = hr.var(axis=(1, 2, 4), keepdims=True)
        hn = (hr - mean) / jnp.sqrt(var + GN_EPS)
        return hn.reshape(n, hh, ww, c) * gamma + beta

    n_convs = len(params)
    h = lrelu(conv(x, params[0]["w"], params[0]["b"], strides[0]))
    for i in range(1, n_convs - 1):
        h = gn(h, gns[i - 1]["gamma"], gns[i - 1]["beta"])
        h = lrelu(conv(h, params[i]["w"], params[i]["b"], strides[i]))
    h = jnp.maximum(jnp.maximum(h[:, 0::2, 0::2, :], h[:, 0::2, 1::2, :]),
                    jnp.maximum(h[:, 1::2, 0::2, :], h[:, 1::2, 1::2, :]))
    h = conv(h, params[-1]["w"], params[-1]["b"], strides[-1])
    return jnp.transpose(h, (0, 3, 1, 2))


# --------------------------------------------------------------------------
if __name__ == "__main__":
    key = jax.random.PRNGKey(0)
    kx, kp = jax.random.split(key)

    # small shapes: batch=2, input_nc=3, 16x16 image (module defaults otherwise)
    x = jax.random.normal(kx, (2, 3, 16, 16), jnp.float32)       # NCHW
    params, gns, strides = init_params(kp, input_nc=3, ndf=64, n_layers=3)

    fwd = jax.jit(lambda xx, pp, gg: discriminator_forward(xx, pp, gg, strides))
    out = jax.block_until_ready(fwd(x, params, gns))

    ref = reference_forward(x, params, gns, strides)
    # bf16 MXU operands / bf16 stored activations (vs. f32 reference) through
    # 5 convs + 3 GroupNorms -> slightly relaxed tolerance.
    np.testing.assert_allclose(np.asarray(out, np.float32), np.asarray(ref),
                               rtol=5e-2, atol=5e-2)
    assert out.shape == (2, 1, 1, 1) and out.dtype == jnp.float32
    print("KERNEL_OK")
</pallas_src>

<mosaic_0001>
module attributes {stable_mosaic.version = 11 : i64} {
  func.func @_conv_stats_kernel(%arg0: i32, %arg1: i32, %arg2: memref<1x64x27xbf16, #tpu.memory_space<vmem>>, %arg3: memref<27x128xbf16, #tpu.memory_space<vmem>>, %arg4: memref<1x128xf32, #tpu.memory_space<vmem>>, %arg5: memref<1x64x128xbf16, #tpu.memory_space<vmem>>, %arg6: memref<1x1x1x128xf32, #tpu.memory_space<vmem>>, %arg7: memref<1x1x1x128xf32, #tpu.memory_space<vmem>>) attributes {dimension_semantics = [#tpu.dimension_semantics<parallel>, #tpu.dimension_semantics<parallel>], iteration_bounds = array<i64: 2, 1>, scalar_prefetch = 0 : i64, scratch_operands = 0 : i64, tpu.core_type = #tpu.core_type<tc>, window_params = [{transform_indices = @transform_0, window_bounds = array<i64: 1, 64, 27>}, {pipeline_mode = #tpu.pipeline_mode<synchronous>, transform_indices = @transform_1, window_bounds = array<i64: 27, 128>}, {pipeline_mode = #tpu.pipeline_mode<synchronous>, transform_indices = @transform_2, window_bounds = array<i64: 1, 128>}, {transform_indices = @transform_3, window_bounds = array<i64: 1, 64, 128>}, {transform_indices = @transform_4, window_bounds = array<i64: 1, 1, 1, 128>}, {transform_indices = @transform_5, window_bounds = array<i64: 1, 1, 1, 128>}]} {
    %c0 = arith.constant 0 : index
    %c0_0 = arith.constant 0 : index
    %c0_1 = arith.constant 0 : index
    %0 = vector.load %arg2[%c0, %c0_0, %c0_1] : memref<1x64x27xbf16, #tpu.memory_space<vmem>>, vector<1x64x27xbf16>
    %1 = vector.shape_cast %0 : vector<1x64x27xbf16> to vector<64x27xbf16>
    %c0_2 = arith.constant 0 : index
    %c0_3 = arith.constant 0 : index
    %2 = vector.load %arg3[%c0_2, %c0_3] : memref<27x128xbf16, #tpu.memory_space<vmem>>, vector<27x128xbf16>
    %cst = arith.constant dense<0.000000e+00> : vector<64x128xf32>
    %3 = tpu.matmul %1, %2, %cst {dimension_numbers = #tpu.dot_dimension_numbers<[1], [0], [0], [1], [0, 0, 1, 1], [], []>} : vector<64x27xbf16>, vector<27x128xbf16>, vector<64x128xf32> -> vector<64x128xf32>
    %c0_4 = arith.constant 0 : index
    %c0_5 = arith.constant 0 : index
    %4 = vector.load %arg4[%c0_4, %c0_5] : memref<1x128xf32, #tpu.memory_space<vmem>>, vector<1x128xf32>
    %5 = vector.broadcast %4 : vector<1x128xf32> to vector<64x128xf32>
    %6 = arith.addf %3, %5 : vector<64x128xf32>
    %cst_6 = arith.constant 2.000000e-01 : f32
    %7 = vector.broadcast %cst_6 : f32 to vector<64x128xf32>
    %8 = arith.mulf %7, %6 : vector<64x128xf32>
    %9 = arith.maximumf %6, %8 : vector<64x128xf32>
    %10 = arith.truncf %9 : vector<64x128xf32> to vector<64x128xbf16>
    %c0_7 = arith.constant 0 : index
    %c0_8 = arith.constant 0 : index
    %c0_9 = arith.constant 0 : index
    %11 = vector.load %arg5[%c0_7, %c0_8, %c0_9] : memref<1x64x128xbf16, #tpu.memory_space<vmem>>, vector<1x64x128xbf16>
    %12 = vector.shape_cast %11 : vector<1x64x128xbf16> to vector<64x128xbf16>
    %13 = vector.shape_cast %10 : vector<64x128xbf16> to vector<1x64x128xbf16>
    tpu.vector_store %arg5[%c0_7, %c0_8, %c0_9], %13 {strides = array<i32>} : memref<1x64x128xbf16, #tpu.memory_space<vmem>>, vector<1x64x128xbf16>,
    %cst_10 = arith.constant dense<0.000000e+00> : vector<128xf32>
    %14 = vector.multi_reduction <add>, %9, %cst_10 [0] : vector<64x128xf32> to vector<128xf32>
    %15 = vector.shape_cast %14 : vector<128xf32> to vector<1x128xf32>
    %c0_11 = arith.constant 0 : index
    %c0_12 = arith.constant 0 : index
    %c0_13 = arith.constant 0 : index
    %c0_14 = arith.constant 0 : index
    %16 = vector.load %arg6[%c0_11, %c0_12, %c0_13, %c0_14] : memref<1x1x1x128xf32, #tpu.memory_space<vmem>>, vector<1x1x1x128xf32>
    %17 = vector.shape_cast %16 : vector<1x1x1x128xf32> to vector<1x128xf32>
    %18 = vector.shape_cast %15 : vector<1x128xf32> to vector<1x1x1x128xf32>
    tpu.vector_store %arg6[%c0_11, %c0_12, %c0_13, %c0_14], %18 {strides = array<i32>} : memref<1x1x1x128xf32, #tpu.memory_space<vmem>>, vector<1x1x1x128xf32>,
    %19 = arith.mulf %9, %9 : vector<64x128xf32>
    %cst_15 = arith.constant dense<0.000000e+00> : vector<128xf32>
    %20 = vector.multi_reduction <add>, %19, %cst_15 [0] : vector<64x128xf32> to vector<128xf32>
    %21 = vector.shape_cast %20 : vector<128xf32> to vector<1x128xf32>
    %c0_16 = arith.constant 0 : index
    %c0_17 = arith.constant 0 : index
    %c0_18 = arith.constant 0 : index
    %c0_19 = arith.constant 0 : index
    %22 = vector.load %arg7[%c0_16, %c0_17, %c0_18, %c0_19] : memref<1x1x1x128xf32, #tpu.memory_space<vmem>>, vector<1x1x1x128xf32>
    %23 = vector.shape_cast %22 : vector<1x1x1x128xf32> to vector<1x128xf32>
    %24 = vector.shape_cast %21 : vector<1x128xf32> to vector<1x1x1x128xf32>
    tpu.vector_store %arg7[%c0_16, %c0_17, %c0_18, %c0_19], %24 {strides = array<i32>} : memref<1x1x1x128xf32, #tpu.memory_space<vmem>>, vector<1x1x1x128xf32>,
    return
  }
  func.func @transform_0(%arg0: i32, %arg1: i32) -> (i32, i32, i32) {
    %c0_i32 = arith.constant 0 : i32
    %c0_i32_0 = arith.constant 0 : i32
    return %arg0, %arg1, %c0_i32 : i32, i32, i32
  }
  func.func @transform_1(%arg0: i32, %arg1: i32) -> (i32, i32) {
    %c0_i32 = arith.constant 0 : i32
    %c0_i32_0 = arith.constant 0 : i32
    %c0_i32_1 = arith.constant 0 : i32
    return %c0_i32, %c0_i32_0 : i32, i32
  }
  func.func @transform_2(%arg0: i32, %arg1: i32) -> (i32, i32) {
    %c0_i32 = arith.constant 0 : i32
    %c0_i32_0 = arith.constant 0 : i32
    %c0_i32_1 = arith.constant 0 : i32
    return %c0_i32, %c0_i32_0 : i32, i32
  }
  func.func @transform_3(%arg0: i32, %arg1: i32) -> (i32, i32, i32) {
    %c0_i32 = arith.constant 0 : i32
    %c0_i32_0 = arith.constant 0 : i32
    return %arg0, %arg1, %c0_i32 : i32, i32, i32
  }
  func.func @transform_4(%arg0: i32, %arg1: i32) -> (i32, i32, i32, i32) {
    %c0_i32 = arith.constant 0 : i32
    %c0_i32_0 = arith.constant 0 : i32
    %c0_i32_1 = arith.constant 0 : i32
    return %arg0, %arg1, %c0_i32, %c0_i32_0 : i32, i32, i32, i32
  }
  func.func @transform_5(%arg0: i32, %arg1: i32) -> (i32, i32, i32, i32) {
    %c0_i32 = arith.constant 0 : i32
    %c0_i32_0 = arith.constant 0 : i32
    %c0_i32_1 = arith.constant 0 : i32
    return %arg0, %arg1, %c0_i32, %c0_i32_0 : i32, i32, i32, i32
  }
}

module attributes {stable_mosaic.version = 11 : i64} {
  func.func @_conv_stats_kernel(%arg0: i32, %arg1: i32, %arg2: memref<1x16x576xbf16, #tpu.memory_space<vmem>>, %arg3: memref<576x128xbf16, #tpu.memory_space<vmem>>, %arg4: memref<1x128xf32, #tpu.memory_space<vmem>>, %arg5: memref<1x16x128xbf16, #tpu.memory_space<vmem>>, %arg6: memref<1x1x1x128xf32, #tpu.memory_space<vmem>>, %arg7: memref<1x1x1x128xf32, #tpu.memory_space<vmem>>) attributes {dimension_semantics = [#tpu.dimension_semantics<parallel>, #tpu.dimension_semantics<parallel>], iteration_bounds = array<i64: 2, 1>, scalar_prefetch = 0 : i64, scratch_operands = 0 : i64, tpu.core_type = #tpu.core_type<tc>, window_params = [{transform_indices = @transform_0, window_bounds = array<i64: 1, 16, 576>}, {pipeline_mode = #tpu.pipeline_mode<synchronous>, transform_indices = @transform_1, window_bounds = array<i64: 576, 128>}, {pipeline_mode = #tpu.pipeline_mode<synchronous>, transform_indices = @transform_2, window_bounds = array<i64: 1, 128>}, {transform_indices = @transform_3, window_bounds = array<i64: 1, 16, 128>}, {transform_indices = @transform_4, window_bounds = array<i64: 1, 1, 1, 128>}, {transform_indices = @transform_5, window_bounds = array<i64: 1, 1, 1, 128>}]} {
    %c0 = arith.constant 0 : index
    %c0_0 = arith.constant 0 : index
    %c0_1 = arith.constant 0 : index
    %0 = vector.load %arg2[%c0, %c0_0, %c0_1] : memref<1x16x576xbf16, #tpu.memory_space<vmem>>, vector<1x16x576xbf16>
    %1 = vector.shape_cast %0 : vector<1x16x576xbf16> to vector<16x576xbf16>
    %c0_2 = arith.constant 0 : index
    %c0_3 = arith.constant 0 : index
    %2 = vector.load %arg3[%c0_2, %c0_3] : memref<576x128xbf16, #tpu.memory_space<vmem>>, vector<576x128xbf16>
    %cst = arith.constant dense<0.000000e+00> : vector<16x128xf32>
    %3 = tpu.matmul %1, %2, %cst {dimension_numbers = #tpu.dot_dimension_numbers<[1], [0], [0], [1], [0, 0, 1, 1], [], []>} : vector<16x576xbf16>, vector<576x128xbf16>, vector<16x128xf32> -> vector<16x128xf32>
    %c0_4 = arith.constant 0 : index
    %c0_5 = arith.constant 0 : index
    %4 = vector.load %arg4[%c0_4, %c0_5] : memref<1x128xf32, #tpu.memory_space<vmem>>, vector<1x128xf32>
    %5 = vector.broadcast %4 : vector<1x128xf32> to vector<16x128xf32>
    %6 = arith.addf %3, %5 : vector<16x128xf32>
    %cst_6 = arith.constant 2.000000e-01 : f32
    %7 = vector.broadcast %cst_6 : f32 to vector<16x128xf32>
    %8 = arith.mulf %7, %6 : vector<16x128xf32>
    %9 = arith.maximumf %6, %8 : vector<16x128xf32>
    %10 = arith.truncf %9 : vector<16x128xf32> to vector<16x128xbf16>
    %c0_7 = arith.constant 0 : index
    %c0_8 = arith.constant 0 : index
    %c0_9 = arith.constant 0 : index
    %11 = vector.load %arg5[%c0_7, %c0_8, %c0_9] : memref<1x16x128xbf16, #tpu.memory_space<vmem>>, vector<1x16x128xbf16>
    %12 = vector.shape_cast %11 : vector<1x16x128xbf16> to vector<16x128xbf16>
    %13 = vector.shape_cast %10 : vector<16x128xbf16> to vector<1x16x128xbf16>
    tpu.vector_store %arg5[%c0_7, %c0_8, %c0_9], %13 {strides = array<i32>} : memref<1x16x128xbf16, #tpu.memory_space<vmem>>, vector<1x16x128xbf16>,
    %cst_10 = arith.constant dense<0.000000e+00> : vector<128xf32>
    %14 = vector.multi_reduction <add>, %9, %cst_10 [0] : vector<16x128xf32> to vector<128xf32>
    %15 = vector.shape_cast %14 : vector<128xf32> to vector<1x128xf32>
    %c0_11 = arith.constant 0 : index
    %c0_12 = arith.constant 0 : index
    %c0_13 = arith.constant 0 : index
    %c0_14 = arith.constant 0 : index
    %16 = vector.load %arg6[%c0_11, %c0_12, %c0_13, %c0_14] : memref<1x1x1x128xf32, #tpu.memory_space<vmem>>, vector<1x1x1x128xf32>
    %17 = vector.shape_cast %16 : vector<1x1x1x128xf32> to vector<1x128xf32>
    %18 = vector.shape_cast %15 : vector<1x128xf32> to vector<1x1x1x128xf32>
    tpu.vector_store %arg6[%c0_11, %c0_12, %c0_13, %c0_14], %18 {strides = array<i32>} : memref<1x1x1x128xf32, #tpu.memory_space<vmem>>, vector<1x1x1x128xf32>,
    %19 = arith.mulf %9, %9 : vector<16x128xf32>
    %cst_15 = arith.constant dense<0.000000e+00> : vector<128xf32>
    %20 = vector.multi_reduction <add>, %19, %cst_15 [0] : vector<16x128xf32> to vector<128xf32>
    %21 = vector.shape_cast %20 : vector<128xf32> to vector<1x128xf32>
    %c0_16 = arith.constant 0 : index
    %c0_17 = arith.constant 0 : index
    %c0_18 = arith.constant 0 : index
    %c0_19 = arith.constant 0 : index
    %22 = vector.load %arg7[%c0_16, %c0_17, %c0_18, %c0_19] : memref<1x1x1x128xf32, #tpu.memory_space<vmem>>, vector<1x1x1x128xf32>
    %23 = vector.shape_cast %22 : vector<1x1x1x128xf32> to vector<1x128xf32>
    %24 = vector.shape_cast %21 : vector<1x128xf32> to vector<1x1x1x128xf32>
    tpu.vector_store %arg7[%c0_16, %c0_17, %c0_18, %c0_19], %24 {strides = array<i32>} : memref<1x1x1x128xf32, #tpu.memory_space<vmem>>, vector<1x1x1x128xf32>,
    return
  }
  func.func @transform_0(%arg0: i32, %arg1: i32) -> (i32, i32, i32) {
    %c0_i32 = arith.constant 0 : i32
    %c0_i32_0 = arith.constant 0 : i32
    return %arg0, %arg1, %c0_i32 : i32, i32, i32
  }
  func.func @transform_1(%arg0: i32, %arg1: i32) -> (i32, i32) {
    %c0_i32 = arith.constant 0 : i32
    %c0_i32_0 = arith.constant 0 : i32
    %c0_i32_1 = arith.constant 0 : i32
    return %c0_i32, %c0_i32_0 : i32, i32
  }
  func.func @transform_2(%arg0: i32, %arg1: i32) -> (i32, i32) {
    %c0_i32 = arith.constant 0 : i32
    %c0_i32_0 = arith.constant 0 : i32
    %c0_i32_1 = arith.constant 0 : i32
    return %c0_i32, %c0_i32_0 : i32, i32
  }
  func.func @transform_3(%arg0: i32, %arg1: i32) -> (i32, i32, i32) {
    %c0_i32 = arith.constant 0 : i32
    %c0_i32_0 = arith.constant 0 : i32
    return %arg0, %arg1, %c0_i32 : i32, i32, i32
  }
  func.func @transform_4(%arg0: i32, %arg1: i32) -> (i32, i32, i32, i32) {
    %c0_i32 = arith.constant 0 : i32
    %c0_i32_0 = arith.constant 0 : i32
    %c0_i32_1 = arith.constant 0 : i32
    return %arg0, %arg1, %c0_i32, %c0_i32_0 : i32, i32, i32, i32
  }
  func.func @transform_5(%arg0: i32, %arg1: i32) -> (i32, i32, i32, i32) {
    %c0_i32 = arith.constant 0 : i32
    %c0_i32_0 = arith.constant 0 : i32
    %c0_i32_1 = arith.constant 0 : i32
    return %arg0, %arg1, %c0_i32, %c0_i32_0 : i32, i32, i32, i32
  }
}

module attributes {stable_mosaic.version = 11 : i64} {
  func.func @_conv_stats_kernel(%arg0: i32, %arg1: i32, %arg2: memref<1x16x576xbf16, #tpu.memory_space<vmem>>, %arg3: memref<576x128xbf16, #tpu.memory_space<vmem>>, %arg4: memref<1x128xf32, #tpu.memory_space<vmem>>, %arg5: memref<1x16x128xbf16, #tpu.memory_space<vmem>>, %arg6: memref<1x1x1x128xf32, #tpu.memory_space<vmem>>, %arg7: memref<1x1x1x128xf32, #tpu.memory_space<vmem>>) attributes {dimension_semantics = [#tpu.dimension_semantics<parallel>, #tpu.dimension_semantics<parallel>], iteration_bounds = array<i64: 2, 1>, scalar_prefetch = 0 : i64, scratch_operands = 0 : i64, tpu.core_type = #tpu.core_type<tc>, window_params = [{transform_indices = @transform_0, window_bounds = array<i64: 1, 16, 576>}, {pipeline_mode = #tpu.pipeline_mode<synchronous>, transform_indices = @transform_1, window_bounds = array<i64: 576, 128>}, {pipeline_mode = #tpu.pipeline_mode<synchronous>, transform_indices = @transform_2, window_bounds = array<i64: 1, 128>}, {transform_indices = @transform_3, window_bounds = array<i64: 1, 16, 128>}, {transform_indices = @transform_4, window_bounds = array<i64: 1, 1, 1, 128>}, {transform_indices = @transform_5, window_bounds = array<i64: 1, 1, 1, 128>}]} {
    %c0 = arith.constant 0 : index
    %c0_0 = arith.constant 0 : index
    %c0_1 = arith.constant 0 : index
    %0 = vector.load %arg2[%c0, %c0_0, %c0_1] : memref<1x16x576xbf16, #tpu.memory_space<vmem>>, vector<1x16x576xbf16>
    %1 = vector.shape_cast %0 : vector<1x16x576xbf16> to vector<16x576xbf16>
    %c0_2 = arith.constant 0 : index
    %c0_3 = arith.constant 0 : index
    %2 = vector.load %arg3[%c0_2, %c0_3] : memref<576x128xbf16, #tpu.memory_space<vmem>>, vector<576x128xbf16>
    %cst = arith.constant dense<0.000000e+00> : vector<16x128xf32>
    %3 = tpu.matmul %1, %2, %cst {dimension_numbers = #tpu.dot_dimension_numbers<[1], [0], [0], [1], [0, 0, 1, 1], [], []>} : vector<16x576xbf16>, vector<576x128xbf16>, vector<16x128xf32> -> vector<16x128xf32>
    %c0_4 = arith.constant 0 : index
    %c0_5 = arith.constant 0 : index
    %4 = vector.load %arg4[%c0_4, %c0_5] : memref<1x128xf32, #tpu.memory_space<vmem>>, vector<1x128xf32>
    %5 = vector.broadcast %4 : vector<1x128xf32> to vector<16x128xf32>
    %6 = arith.addf %3, %5 : vector<16x128xf32>
    %cst_6 = arith.constant 2.000000e-01 : f32
    %7 = vector.broadcast %cst_6 : f32 to vector<16x128xf32>
    %8 = arith.mulf %7, %6 : vector<16x128xf32>
    %9 = arith.maximumf %6, %8 : vector<16x128xf32>
    %10 = arith.truncf %9 : vector<16x128xf32> to vector<16x128xbf16>
    %c0_7 = arith.constant 0 : index
    %c0_8 = arith.constant 0 : index
    %c0_9 = arith.constant 0 : index
    %11 = vector.load %arg5[%c0_7, %c0_8, %c0_9] : memref<1x16x128xbf16, #tpu.memory_space<vmem>>, vector<1x16x128xbf16>
    %12 = vector.shape_cast %11 : vector<1x16x128xbf16> to vector<16x128xbf16>
    %13 = vector.shape_cast %10 : vector<16x128xbf16> to vector<1x16x128xbf16>
    tpu.vector_store %arg5[%c0_7, %c0_8, %c0_9], %13 {strides = array<i32>} : memref<1x16x128xbf16, #tpu.memory_space<vmem>>, vector<1x16x128xbf16>,
    %c16_i32 = arith.constant 16 : i32
    %14 = arith.muli %arg1, %c16_i32 : i32
    %15 = tpu.iota {dimensions = array<i32: 0>} : vector<16x1xi32>
    %16 = vector.broadcast %14 : i32 to vector<16x1xi32>
    %17 = arith.addi %16, %15 : vector<16x1xi32>
    %c4_i32 = arith.constant 4 : i32
    %18 = vector.broadcast %c4_i32 : i32 to vector<16x1xi32>
    %19 = arith.cmpi slt, %17, %18 : vector<16x1xi32>
    %cst_10 = arith.constant 0.000000e+00 : f32
    %20 = vector.shape_cast %19 : vector<16x1xi1> to vector<16x1xi1>
    %21 = vector.broadcast %20 : vector<16x1xi1> to vector<16x128xi1>
    %22 = vector.broadcast %cst_10 : f32 to vector<16x128xf32>
    %23 = arith.select %21, %9, %22 : vector<16x128xi1>, vector<16x128xf32>
    %cst_11 = arith.constant dense<0.000000e+00> : vector<128xf32>
    %24 = vector.multi_reduction <add>, %23, %cst_11 [0] : vector<16x128xf32> to vector<128xf32>
    %25 = vector.shape_cast %24 : vector<128xf32> to vector<1x128xf32>
    %c0_12 = arith.constant 0 : index
    %c0_13 = arith.constant 0 : index
    %c0_14 = arith.constant 0 : index
    %c0_15 = arith.constant 0 : index
    %26 = vector.load %arg6[%c0_12, %c0_13, %c0_14, %c0_15] : memref<1x1x1x128xf32, #tpu.memory_space<vmem>>, vector<1x1x1x128xf32>
    %27 = vector.shape_cast %26 : vector<1x1x1x128xf32> to vector<1x128xf32>
    %28 = vector.shape_cast %25 : vector<1x128xf32> to vector<1x1x1x128xf32>
    tpu.vector_store %arg6[%c0_12, %c0_13, %c0_14, %c0_15], %28 {strides = array<i32>} : memref<1x1x1x128xf32, #tpu.memory_space<vmem>>, vector<1x1x1x128xf32>,
    %29 = arith.mulf %23, %23 : vector<16x128xf32>
    %cst_16 = arith.constant dense<0.000000e+00> : vector<128xf32>
    %30 = vector.multi_reduction <add>, %29, %cst_16 [0] : vector<16x128xf32> to vector<128xf32>
    %31 = vector.shape_cast %30 : vector<128xf32> to vector<1x128xf32>
    %c0_17 = arith.constant 0 : index
    %c0_18 = arith.constant 0 : index
    %c0_19 = arith.constant 0 : index
    %c0_20 = arith.constant 0 : index
    %32 = vector.load %arg7[%c0_17, %c0_18, %c0_19, %c0_20] : memref<1x1x1x128xf32, #tpu.memory_space<vmem>>, vector<1x1x1x128xf32>
    %33 = vector.shape_cast %32 : vector<1x1x1x128xf32> to vector<1x128xf32>
    %34 = vector.shape_cast %31 : vector<1x128xf32> to vector<1x1x1x128xf32>
    tpu.vector_store %arg7[%c0_17, %c0_18, %c0_19, %c0_20], %34 {strides = array<i32>} : memref<1x1x1x128xf32, #tpu.memory_space<vmem>>, vector<1x1x1x128xf32>,
    return
  }
  func.func @transform_0(%arg0: i32, %arg1: i32) -> (i32, i32, i32) {
    %c0_i32 = arith.constant 0 : i32
    %c0_i32_0 = arith.constant 0 : i32
    return %arg0, %arg1, %c0_i32 : i32, i32, i32
  }
  func.func @transform_1(%arg0: i32, %arg1: i32) -> (i32, i32) {
    %c0_i32 = arith.constant 0 : i32
    %c0_i32_0 = arith.constant 0 : i32
    %c0_i32_1 = arith.constant 0 : i32
    return %c0_i32, %c0_i32_0 : i32, i32
  }
  func.func @transform_2(%arg0: i32, %arg1: i32) -> (i32, i32) {
    %c0_i32 = arith.constant 0 : i32
    %c0_i32_0 = arith.constant 0 : i32
    %c0_i32_1 = arith.constant 0 : i32
    return %c0_i32, %c0_i32_0 : i32, i32
  }
  func.func @transform_3(%arg0: i32, %arg1: i32) -> (i32, i32, i32) {
    %c0_i32 = arith.constant 0 : i32
    %c0_i32_0 = arith.constant 0 : i32
    return %arg0, %arg1, %c0_i32 : i32, i32, i32
  }
  func.func @transform_4(%arg0: i32, %arg1: i32) -> (i32, i32, i32, i32) {
    %c0_i32 = arith.constant 0 : i32
    %c0_i32_0 = arith.constant 0 : i32
    %c0_i32_1 = arith.constant 0 : i32
    return %arg0, %arg1, %c0_i32, %c0_i32_0 : i32, i32, i32, i32
  }
  func.func @transform_5(%arg0: i32, %arg1: i32) -> (i32, i32, i32, i32) {
    %c0_i32 = arith.constant 0 : i32
    %c0_i32_0 = arith.constant 0 : i32
    %c0_i32_1 = arith.constant 0 : i32
    return %arg0, %arg1, %c0_i32, %c0_i32_0 : i32, i32, i32, i32
  }
}

module attributes {stable_mosaic.version = 11 : i64} {
  func.func @_conv_kernel(%arg0: i32, %arg1: memref<16x1152xbf16, #tpu.memory_space<vmem>>, %arg2: memref<1152x256xbf16, #tpu.memory_space<vmem>>, %arg3: memref<1x256xf32, #tpu.memory_space<vmem>>, %arg4: memref<16x256xbf16, #tpu.memory_space<vmem>>) attributes {dimension_semantics = [#tpu.dimension_semantics<parallel>], iteration_bounds = array<i64: 1>, scalar_prefetch = 0 : i64, scratch_operands = 0 : i64, tpu.core_type = #tpu.core_type<tc>, window_params = [{transform_indices = @transform_0, window_bounds = array<i64: 16, 1152>}, {pipeline_mode = #tpu.pipeline_mode<synchronous>, transform_indices = @transform_1, window_bounds = array<i64: 1152, 256>}, {pipeline_mode = #tpu.pipeline_mode<synchronous>, transform_indices = @transform_2, window_bounds = array<i64: 1, 256>}, {transform_indices = @transform_3, window_bounds = array<i64: 16, 256>}]} {
    %c0 = arith.constant 0 : index
    %c0_0 = arith.constant 0 : index
    %0 = vector.load %arg1[%c0, %c0_0] : memref<16x1152xbf16, #tpu.memory_space<vmem>>, vector<16x1152xbf16>
    %c0_1 = arith.constant 0 : index
    %c0_2 = arith.constant 0 : index
    %1 = vector.load %arg2[%c0_1, %c0_2] : memref<1152x256xbf16, #tpu.memory_space<vmem>>, vector<1152x256xbf16>
    %cst = arith.constant dense<0.000000e+00> : vector<16x256xf32>
    %2 = tpu.matmul %0, %1, %cst {dimension_numbers = #tpu.dot_dimension_numbers<[1], [0], [0], [1], [0, 0, 1, 1], [], []>} : vector<16x1152xbf16>, vector<1152x256xbf16>, vector<16x256xf32> -> vector<16x256xf32>
    %c0_3 = arith.constant 0 : index
    %c0_4 = arith.constant 0 : index
    %3 = vector.load %arg3[%c0_3, %c0_4] : memref<1x256xf32, #tpu.memory_space<vmem>>, vector<1x256xf32>
    %4 = vector.broadcast %3 : vector<1x256xf32> to vector<16x256xf32>
    %5 = arith.addf %2, %4 : vector<16x256xf32>
    %cst_5 = arith.constant 2.000000e-01 : f32
    %6 = vector.broadcast %cst_5 : f32 to vector<16x256xf32>
    %7 = arith.mulf %6, %5 : vector<16x256xf32>
    %8 = arith.maximumf %5, %7 : vector<16x256xf32>
    %9 = arith.truncf %8 : vector<16x256xf32> to vector<16x256xbf16>
    %c0_6 = arith.constant 0 : index
    %c0_7 = arith.constant 0 : index
    %10 = vector.load %arg4[%c0_6, %c0_7] : memref<16x256xbf16, #tpu.memory_space<vmem>>, vector<16x256xbf16>
    tpu.vector_store %arg4[%c0_6, %c0_7], %9 {strides = array<i32>} : memref<16x256xbf16, #tpu.memory_space<vmem>>, vector<16x256xbf16>,
    return
  }
  func.func @transform_0(%arg0: i32) -> (i32, i32) {
    %c0_i32 = arith.constant 0 : i32
    %c0_i32_0 = arith.constant 0 : i32
    return %arg0, %c0_i32 : i32, i32
  }
  func.func @transform_1(%arg0: i32) -> (i32, i32) {
    %c0_i32 = arith.constant 0 : i32
    %c0_i32_0 = arith.constant 0 : i32
    %c0_i32_1 = arith.constant 0 : i32
    return %c0_i32, %c0_i32_0 : i32, i32
  }
  func.func @transform_2(%arg0: i32) -> (i32, i32) {
    %c0_i32 = arith.constant 0 : i32
    %c0_i32_0 = arith.constant 0 : i32
    %c0_i32_1 = arith.constant 0 : i32
    return %c0_i32, %c0_i32_0 : i32, i32
  }
  func.func @transform_3(%arg0: i32) -> (i32, i32) {
    %c0_i32 = arith.constant 0 : i32
    %c0_i32_0 = arith.constant 0 : i32
    return %arg0, %c0_i32 : i32, i32
  }
}

module attributes {stable_mosaic.version = 11 : i64} {
  func.func @_maxpool_kernel(%arg0: i32, %arg1: i32, %arg2: memref<1x2x2x256xbf16, #tpu.memory_space<vmem>>, %arg3: memref<1x1x1x256xbf16, #tpu.memory_space<vmem>>) attributes {dimension_semantics = [#tpu.dimension_semantics<parallel>, #tpu.dimension_semantics<parallel>], iteration_bounds = array<i64: 2, 1>, scalar_prefetch = 0 : i64, scratch_operands = 0 : i64, tpu.core_type = #tpu.core_type<tc>, window_params = [{transform_indices = @transform_0, window_bounds = array<i64: 1, 2, 2, 256>}, {transform_indices = @transform_1, window_bounds = array<i64: 1, 1, 1, 256>}]} {
    %c0 = arith.constant 0 : index
    %c0_0 = arith.constant 0 : index
    %c0_1 = arith.constant 0 : index
    %c0_2 = arith.constant 0 : index
    %0 = vector.load %arg2[%c0, %c0_0, %c0_1, %c0_2] : memref<1x2x2x256xbf16, #tpu.memory_space<vmem>>, vector<1x2x2x256xbf16>
    %1 = vector.shape_cast %0 : vector<1x2x2x256xbf16> to vector<2x2x256xbf16>
    %2 = vector.shape_cast %1 : vector<2x2x256xbf16> to vector<1x2x2x256xbf16>
    %cst = arith.constant dense<0xFF80> : vector<1x2x256xbf16>
    %3 = vector.multi_reduction <maximumf>, %2, %cst [1] : vector<1x2x2x256xbf16> to vector<1x2x256xbf16>
    %4 = vector.shape_cast %3 : vector<1x2x256xbf16> to vector<1x1x2x256xbf16>
    %cst_3 = arith.constant dense<0xFF80> : vector<1x1x256xbf16>
    %5 = vector.multi_reduction <maximumf>, %4, %cst_3 [2] : vector<1x1x2x256xbf16> to vector<1x1x256xbf16>
    %c0_4 = arith.constant 0 : index
    %c0_5 = arith.constant 0 : index
    %c0_6 = arith.constant 0 : index
    %c0_7 = arith.constant 0 : index
    %6 = vector.load %arg3[%c0_4, %c0_5, %c0_6, %c0_7] : memref<1x1x1x256xbf16, #tpu.memory_space<vmem>>, vector<1x1x1x256xbf16>
    %7 = vector.shape_cast %6 : vector<1x1x1x256xbf16> to vector<1x1x256xbf16>
    %8 = vector.shape_cast %5 : vector<1x1x256xbf16> to vector<1x1x1x256xbf16>
    tpu.vector_store %arg3[%c0_4, %c0_5, %c0_6, %c0_7], %8 {strides = array<i32>} : memref<1x1x1x256xbf16, #tpu.memory_space<vmem>>, vector<1x1x1x256xbf16>,
    return
  }
  func.func @transform_0(%arg0: i32, %arg1: i32) -> (i32, i32, i32, i32) {
    %c0_i32 = arith.constant 0 : i32
    %c0_i32_0 = arith.constant 0 : i32
    %c0_i32_1 = arith.constant 0 : i32
    return %arg0, %arg1, %c0_i32, %c0_i32_0 : i32, i32, i32, i32
  }
  func.func @transform_1(%arg0: i32, %arg1: i32) -> (i32, i32, i32, i32) {
    %c0_i32 = arith.constant 0 : i32
    %c0_i32_0 = arith.constant 0 : i32
    %c0_i32_1 = arith.constant 0 : i32
    return %arg0, %arg1, %c0_i32, %c0_i32_0 : i32, i32, i32, i32
  }
}

module attributes {stable_mosaic.version = 11 : i64} {
  func.func @_conv_kernel(%arg0: i32, %arg1: memref<16x2304xbf16, #tpu.memory_space<vmem>>, %arg2: memref<2304x128xbf16, #tpu.memory_space<vmem>>, %arg3: memref<1x128xf32, #tpu.memory_space<vmem>>, %arg4: memref<16x128xf32, #tpu.memory_space<vmem>>) attributes {dimension_semantics = [#tpu.dimension_semantics<parallel>], iteration_bounds = array<i64: 1>, scalar_prefetch = 0 : i64, scratch_operands = 0 : i64, tpu.core_type = #tpu.core_type<tc>, window_params = [{transform_indices = @transform_0, window_bounds = array<i64: 16, 2304>}, {pipeline_mode = #tpu.pipeline_mode<synchronous>, transform_indices = @transform_1, window_bounds = array<i64: 2304, 128>}, {pipeline_mode = #tpu.pipeline_mode<synchronous>, transform_indices = @transform_2, window_bounds = array<i64: 1, 128>}, {transform_indices = @transform_3, window_bounds = array<i64: 16, 128>}]} {
    %c0 = arith.constant 0 : index
    %c0_0 = arith.constant 0 : index
    %0 = vector.load %arg1[%c0, %c0_0] : memref<16x2304xbf16, #tpu.memory_space<vmem>>, vector<16x2304xbf16>
    %c0_1 = arith.constant 0 : index
    %c0_2 = arith.constant 0 : index
    %1 = vector.load %arg2[%c0_1, %c0_2] : memref<2304x128xbf16, #tpu.memory_space<vmem>>, vector<2304x128xbf16>
    %cst = arith.constant dense<0.000000e+00> : vector<16x128xf32>
    %2 = tpu.matmul %0, %1, %cst {dimension_numbers = #tpu.dot_dimension_numbers<[1], [0], [0], [1], [0, 0, 1, 1], [], []>} : vector<16x2304xbf16>, vector<2304x128xbf16>, vector<16x128xf32> -> vector<16x128xf32>
    %c0_3 = arith.constant 0 : index
    %c0_4 = arith.constant 0 : index
    %3 = vector.load %arg3[%c0_3, %c0_4] : memref<1x128xf32, #tpu.memory_space<vmem>>, vector<1x128xf32>
    %4 = vector.broadcast %3 : vector<1x128xf32> to vector<16x128xf32>
    %5 = arith.addf %2, %4 : vector<16x128xf32>
    %c0_5 = arith.constant 0 : index
    %c0_6 = arith.constant 0 : index
    %6 = vector.load %arg4[%c0_5, %c0_6] : memref<16x128xf32, #tpu.memory_space<vmem>>, vector<16x128xf32>
    tpu.vector_store %arg4[%c0_5, %c0_6], %5 {strides = array<i32>} : memref<16x128xf32, #tpu.memory_space<vmem>>, vector<16x128xf32>,
    return
  }
  func.func @transform_0(%arg0: i32) -> (i32, i32) {
    %c0_i32 = arith.constant 0 : i32
    %c0_i32_0 = arith.constant 0 : i32
    return %arg0, %c0_i32 : i32, i32
  }
  func.func @transform_1(%arg0: i32) -> (i32, i32) {
    %c0_i32 = arith.constant 0 : i32
    %c0_i32_0 = arith.constant 0 : i32
    %c0_i32_1 = arith.constant 0 : i32
    return %c0_i32, %c0_i32_0 : i32, i32
  }
  func.func @transform_2(%arg0: i32) -> (i32, i32) {
    %c0_i32 = arith.constant 0 : i32
    %c0_i32_0 = arith.constant 0 : i32
    %c0_i32_1 = arith.constant 0 : i32
    return %c0_i32, %c0_i32_0 : i32, i32
  }
  func.func @transform_3(%arg0: i32) -> (i32, i32) {
    %c0_i32 = arith.constant 0 : i32
    %c0_i32_0 = arith.constant 0 : i32
    return %arg0, %c0_i32 : i32, i32
  }
}

</mosaic_0001>

<llo_original>
// kernel: _lambda_.6
$region0: #{_lambda_.6}
  #allocation0 [shape = 'u32[]', space=smem, size = 0x4, offset = 0x4, fixed_abs, tag = 'smem constant byte address 0x4 - core index']
  #allocation1 [shape = 'u32[144,128]{1,0:T(1,128)}', space=vmem, size = 0x12000, scoped, tag = 'internal scratch']
  %s0 = inlined_call_operand.vmem [shape: bf16[2,64,27], index: 0, kind: input, shape index: {}]
  %s1 = inlined_call_operand.vmem [shape: bf16[27,128], index: 1, kind: input, shape index: {}]
  %s2 = inlined_call_operand.vmem [shape: f32[1,128], index: 2, kind: input, shape index: {}]
  %s3 = inlined_call_operand.vmem [shape: bf16[2,64,128], index: 3, kind: output, shape index: {0}]
  %s4 = inlined_call_operand.vmem [shape: f32[2,1,1,128], index: 4, kind: output, shape index: {1}]
  %s5 = inlined_call_operand.vmem [shape: f32[2,1,1,128], index: 5, kind: output, shape index: {2}]
  %6 = xla_tuple %s3, %s4, %s5
  %s7 = sld [smem:[#allocation0]]
  $region61: #{_lambda_.6} parent=0
    _
  %s9 = ssub.s32 1, %s7
  %s10 = scalar_select 0, %s9, %s7
  loop: start=0, step=1, limit=4
  $region2: #{_lambda_.6} parent=0 // loop_pre_header
    _
  $region3: #{_lambda_.6} parent=0 // loop_header
    %s12 = sphi 0, %s16
    %p13 = scmp.ge.s32.totalorder %s12, 4
    %s19 = sphi 0, %s31
    %s20 = sphi 0, %s27
    %s21 = sphi 0, %s19
    %s22 = sphi 0, %s20
    %s23 = sphi 0, %s21
    %s24 = sphi 0, %s22
    %s36 = sphi 0, %s38
    %s39 = sphi 0, %s36
    %s40 = sphi 0, %s39
    %s56 = sphi 0, %s40
    %s60 = sphi 0, %s60
    %s62 = sphi 0, %s60
    %s63 = sphi 0, %s62
    %s77 = sphi 0, %s63
    %s81 = sphi 0, %s81
    %s83 = sphi 0, %s81
    %s84 = sphi 0, %s83
    %s98 = sphi 0, %s84
    %s106 = sphi 0, %s108
    %s109 = sphi 0, %s106
    %s110 = sphi 0, %s109
    %s126 = sphi 0, %s110
    %s134 = sphi 0, %s136
    %s137 = sphi 0, %s134
    %s138 = sphi 0, %s137
    %s154 = sphi 0, %s138
    %s162 = sphi 0, %s164
    %s165 = sphi 0, %s162
    %s166 = sphi 0, %s165
    %s182 = sphi 0, %s166
  $region4: #{_lambda_.6} parent=0 // loop_header_branch
    %15 = sbr.rel (%p13) target = $region8
  $region5: #{_lambda_.6} parent=0 // loop_body
    %s17 = ssub.s32 %s12, 1
    %s18 = ssub.s32 %s12, 2
    %s25 = sadd.s32 1, %s20
    %p26 = scmp.ge.s32.totalorder %s25, 1
    %s27 = scalar_select %p26, 0, %s25
    %s28 = sadd.s32 1, %s19
    %s29 = scalar_select %p26, %s28, %s19
    %p30 = scmp.ge.s32.totalorder %s29, 2
    %s31 = scalar_select %p30, 0, %s29
    %s32 = ssub.s32 %s19, %s31
    %s33 = ssub.s32 %s20, %s27
    %s34 = sor.u32 %s32, %s33
    %p35 = scmp.eq.s32.totalorder %s34, 0
    %s37 = sadd.s32 %s36, 1
    %s38 = scalar_select %p35, %s36, %s37
    %p41 = pneg %p35
    %p42 = scmp.eq.s32.totalorder %s12, 1
    %p43 = por %p41, %p42
    %p44 = scmp.ne.s32.totalorder %s36, %s39
    %p45 = scmp.eq.s32.totalorder %s12, 0
    %p46 = por %p44, %p45
    %p47 = scmp.ne.s32.totalorder %s36, %s39
    %p48 = scmp.eq.s32.totalorder %s17, 1
    %p49 = por %p47, %p48
    %p50 = scmp.ne.s32.totalorder %s39, %s40
    %p51 = scmp.eq.s32.totalorder %s17, 0
    %p52 = por %p50, %p51
    %p53 = scmp.ne.s32.totalorder %s39, %s40
    %p54 = scmp.eq.s32.totalorder %s18, 1
    %p55 = por %p53, %p54
    %p57 = scmp.ne.s32.totalorder %s40, %s56
    %p58 = scmp.eq.s32.totalorder %s18, 0
    %p59 = por %p57, %p58
    %s61 = sadd.s32 %s60, 1
    %p64 = scmp.eq.s32.totalorder %s12, 1
    %p65 = scmp.ne.s32.totalorder %s60, %s62
    %p66 = scmp.eq.s32.totalorder %s12, 0
    %p67 = por %p65, %p66
    %p68 = scmp.ne.s32.totalorder %s60, %s62
    %p69 = scmp.eq.s32.totalorder %s17, 1
    %p70 = por %p68, %p69
    %p71 = scmp.ne.s32.totalorder %s62, %s63
    %p72 = scmp.eq.s32.totalorder %s17, 0
    %p73 = por %p71, %p72
    %p74 = scmp.ne.s32.totalorder %s62, %s63
    %p75 = scmp.eq.s32.totalorder %s18, 1
    %p76 = por %p74, %p75
    %p78 = scmp.ne.s32.totalorder %s63, %s77
    %p79 = scmp.eq.s32.totalorder %s18, 0
    %p80 = por %p78, %p79
    %s82 = sadd.s32 %s81, 1
    %p85 = scmp.eq.s32.totalorder %s12, 1
    %p86 = scmp.ne.s32.totalorder %s81, %s83
    %p87 = scmp.eq.s32.totalorder %s12, 0
    %p88 = por %p86, %p87
    %p89 = scmp.ne.s32.totalorder %s81, %s83
    %p90 = scmp.eq.s32.totalorder %s17, 1
    %p91 = por %p89, %p90
    %p92 = scmp.ne.s32.totalorder %s83, %s84
    %p93 = scmp.eq.s32.totalorder %s17, 0
    %p94 = por %p92, %p93
    %p95 = scmp.ne.s32.totalorder %s83, %s84
    %p96 = scmp.eq.s32.totalorder %s18, 1
    %p97 = por %p95, %p96
    %p99 = scmp.ne.s32.totalorder %s84, %s98
    %p100 = scmp.eq.s32.totalorder %s18, 0
    %p101 = por %p99, %p100
    %s102 = ssub.s32 %s19, %s31
    %s103 = ssub.s32 %s20, %s27
    %s104 = sor.u32 %s102, %s103
    %p105 = scmp.eq.s32.totalorder %s104, 0
    %s107 = sadd.s32 %s106, 1
    %s108 = scalar_select %p105, %s106, %s107
    %p111 = pneg %p105
    %p112 = scmp.eq.s32.totalorder %s12, 1
    %p113 = por %p111, %p112
    %p114 = scmp.ne.s32.totalorder %s106, %s109
    %p115 = scmp.eq.s32.totalorder %s12, 0
    %p116 = por %p114, %p115
    %p117 = scmp.ne.s32.totalorder %s106, %s109
    %p118 = scmp.eq.s32.totalorder %s17, 1
    %p119 = por %p117, %p118
    %p120 = scmp.ne.s32.totalorder %s109, %s110
    %p121 = scmp.eq.s32.totalorder %s17, 0
    %p122 = por %p120, %p121
    %p123 = scmp.ne.s32.totalorder %s109, %s110
    %p124 = scmp.eq.s32.totalorder %s18, 1
    %p125 = por %p123, %p124
    %p127 = scmp.ne.s32.totalorder %s110, %s126
    %p128 = scmp.eq.s32.totalorder %s18, 0
    %p129 = por %p127, %p128
    %s130 = ssub.s32 %s19, %s31
    %s131 = ssub.s32 %s20, %s27
    %s132 = sor.u32 %s130, %s131
    %p133 = scmp.eq.s32.totalorder %s132, 0
    %s135 = sadd.s32 %s134, 1
    %s136 = scalar_select %p133, %s134, %s135
    %p139 = pneg %p133
    %p140 = scmp.eq.s32.totalorder %s12, 1
    %p141 = por %p139, %p140
    %p142 = scmp.ne.s32.totalorder %s134, %s137
    %p143 = scmp.eq.s32.totalorder %s12, 0
    %p144 = por %p142, %p143
    %p145 = scmp.ne.s32.totalorder %s134, %s137
    %p146 = scmp.eq.s32.totalorder %s17, 1
    %p147 = por %p145, %p146
    %p148 = scmp.ne.s32.totalorder %s137, %s138
    %p149 = scmp.eq.s32.totalorder %s17, 0
    %p150 = por %p148, %p149
    %p151 = scmp.ne.s32.totalorder %s137, %s138
    %p152 = scmp.eq.s32.totalorder %s18, 1
    %p153 = por %p151, %p152
    %p155 = scmp.ne.s32.totalorder %s138, %s154
    %p156 = scmp.eq.s32.totalorder %s18, 0
    %p157 = por %p155, %p156
    %s158 = ssub.s32 %s19, %s31
    %s159 = ssub.s32 %s20, %s27
    %s160 = sor.u32 %s158, %s159
    %p161 = scmp.eq.s32.totalorder %s160, 0
    %s163 = sadd.s32 %s162, 1
    %s164 = scalar_select %p161, %s162, %s163
    %p167 = pneg %p161
    %p168 = scmp.eq.s32.totalorder %s12, 1
    %p169 = por %p167, %p168
    %p170 = scmp.ne.s32.totalorder %s162, %s165
    %p171 = scmp.eq.s32.totalorder %s12, 0
    %p172 = por %p170, %p171
    %p173 = scmp.ne.s32.totalorder %s162, %s165
    %p174 = scmp.eq.s32.totalorder %s17, 1
    %p175 = por %p173, %p174
    %p176 = scmp.ne.s32.totalorder %s165, %s166
    %p177 = scmp.eq.s32.totalorder %s17, 0
    %p178 = por %p176, %p177
    %p179 = scmp.ne.s32.totalorder %s165, %s166
    %p180 = scmp.eq.s32.totalorder %s18, 1
    %p181 = por %p179, %p180
    %p183 = scmp.ne.s32.totalorder %s166, %s182
    %p184 = scmp.eq.s32.totalorder %s18, 0
    %p185 = por %p183, %p184
    %p186 = scmp.le.s32.totalorder 1, %s12
    %p187 = scmp.lt.s32.totalorder %s12, 3
    %p188 = pnand %p186, %p187
    %p189 = pneg %p188
    // Predicated region
    $region9: #{_lambda_.6} parent=5 // pred_check
      _
    $region10: #{_lambda_.6} parent=5 // pred_check_branch
      %191 = sbr.rel (%p188) target = $region12
    $region11: #{_lambda_.6} parent=5 // pred_region
      %s192 = ssub.s32 %s12, 1
      // Predicated region
      $region13: #{_lambda_.6} parent=11 // pred_check
        %p193 = pneg %p73
      $region14: #{_lambda_.6} parent=11 // pred_check_branch
        %195 = sbr.rel (%p193) target = $region16
      $region15: #{_lambda_.6} parent=11 // pred_region
        _
      $region16: #{_lambda_.6} parent=11 // pred_fallthru
        _
      // Predicated region
      $region17: #{_lambda_.6} parent=11 // pred_check
        %p196 = pneg %p94
      $region18: #{_lambda_.6} parent=11 // pred_check_branch
        %198 = sbr.rel (%p196) target = $region20
      $region19: #{_lambda_.6} parent=11 // pred_region
        _
      $region20: #{_lambda_.6} parent=11 // pred_fallthru
        _
    $region12: #{_lambda_.6} parent=5 // pred_fallthru
      _
    %p199 = scmp.lt.s32.totalorder %s12, 2
    // Predicated region
    $region21: #{_lambda_.6} parent=5 // pred_check
      %p200 = pneg %p199
    $region22: #{_lambda_.6} parent=5 // pred_check_branch
      %202 = sbr.rel (%p200) target = $region24
    $region23: #{_lambda_.6} parent=5 // pred_region
      // Predicated region
      $region25: #{_lambda_.6} parent=23 // pred_check
        %p203 = pneg %p46
      $region26: #{_lambda_.6} parent=23 // pred_check_branch
        %205 = sbr.rel (%p203) target = $region28
      $region27: #{_lambda_.6} parent=23 // pred_region
        %s206 = smul.u32 8, %s20
        %p207 = scmp.lt.s32.totalorder %s19, 1
        %s208 = scalar_select %p207, %s19, 1
        %p209 = scmp.lt.s32.totalorder %s206, 7
        %s210 = scalar_select %p209, %s206, 7
        %s211 = smul.addr %s208, 8
        %s212 = sadd.s32 %s210, %s211
        %s213 = smul.addr %s212, 4
        %s214 = scalar_lea.vmem %s0, %s213
        %s215 = smul.u32 8, %s20
      $region28: #{_lambda_.6} parent=23 // pred_fallthru
        _
    $region24: #{_lambda_.6} parent=5 // pred_fallthru
      _
    %p216 = scmp.le.s32.totalorder 1, %s12
    %p217 = scmp.lt.s32.totalorder %s12, 3
    %p218 = pnand %p216, %p217
    %p219 = pneg %p218
    // Predicated region
    $region29: #{_lambda_.6} parent=5 // pred_check
      _
    $region30: #{_lambda_.6} parent=5 // pred_check_branch
      %221 = sbr.rel (%p218) target = $region32
    $region31: #{_lambda_.6} parent=5 // pred_region
      %s222 = ssub.s32 %s12, 1
      %s223 = smul.u32 8, %s22
      %p224 = scmp.lt.s32.totalorder %s21, 1
      %s225 = scalar_select %p224, %s21, 1
      %p226 = scmp.lt.s32.totalorder %s223, 7
      %s227 = scalar_select %p226, %s223, 7
      %s228 = smul.addr %s225, 8
      %s229 = sadd.s32 %s227, %s228
      %s230 = smul.addr %s229, 4
      %s231 = scalar_lea.vmem %s0, %s230
      %p232 = pneg %p52
      %p233 = pneg %p49
      %p234 = pneg %p73
      %p235 = pneg %p70
      %p236 = pneg %p94
      %p237 = pneg %p91
      %p238 = pneg %p122
      %p239 = pneg %p119
      %s240 = smul.u32 8, %s22
      %p241 = scmp.lt.s32.totalorder %s21, 1
      %s242 = scalar_select %p241, %s21, 1
      %p243 = scmp.lt.s32.totalorder %s240, 7
      %s244 = scalar_select %p243, %s240, 7
      %s245 = smul.addr %s242, 8
      %s246 = sadd.s32 %s244, %s245
      %s247 = smul.addr %s246, 4
      %s248 = scalar_lea.vmem %s3, %s247
      %p249 = pneg %p150
      %p250 = pneg %p147
      %p251 = scmp.lt.s32.totalorder %s21, 1
      %s252 = scalar_select %p251, %s21, 1
      %p253 = scmp.lt.s32.totalorder %s22, 0
      %s254 = scalar_select %p253, %s22, 0
      %s255 = sadd.s32 %s254, %s252
      %s256 = scalar_lea.vmem %s4, %s255
      %p257 = pneg %p178
      %p258 = pneg %p175
      %p259 = scmp.lt.s32.totalorder %s21, 1
      %s260 = scalar_select %p259, %s21, 1
      %p261 = scmp.lt.s32.totalorder %s22, 0
      %s262 = scalar_select %p261, %s22, 0
      %s263 = sadd.s32 %s262, %s260
      %s264 = scalar_lea.vmem %s5, %s263
      %s265 = smul.u32 8, %s22
      %p266 = scmp.lt.s32.totalorder %s21, 1
      %s267 = scalar_select %p266, %s21, 1
      %p268 = scmp.lt.s32.totalorder %s265, 7
      %s269 = scalar_select %p268, %s265, 7
      %s270 = smul.addr %s267, 8
      %s271 = sadd.s32 %s269, %s270
      %s272 = smul.addr %s271, 4
      %s273 = scalar_lea.vmem %s0, %s272
      %s274 = smul.u32 8, %s22
      %s275 = smul.u32 8, %s22
      %p276 = scmp.lt.s32.totalorder %s21, 1
      %s277 = scalar_select %p276, %s21, 1
      %p278 = scmp.lt.s32.totalorder %s275, 7
      %s279 = scalar_select %p278, %s275, 7
      %s280 = smul.addr %s277, 8
      %s281 = sadd.s32 %s279, %s280
      %s282 = smul.addr %s281, 4
      %s283 = scalar_lea.vmem %s3, %s282
      %s284 = smul.u32 8, %s22
      %p285 = scmp.lt.s32.totalorder %s21, 1
      %s286 = scalar_select %p285, %s21, 1
      %p287 = scmp.lt.s32.totalorder %s22, 0
      %s288 = scalar_select %p287, %s22, 0
      %s289 = sadd.s32 %s288, %s286
      %s290 = scalar_lea.vmem %s4, %s289
      %p291 = scmp.lt.s32.totalorder %s21, 1
      %s292 = scalar_select %p291, %s21, 1
      %p293 = scmp.lt.s32.totalorder %s22, 0
      %s294 = scalar_select %p293, %s22, 0
      %s295 = sadd.s32 %s294, %s292
      %s296 = scalar_lea.vmem %s5, %s295
      %v298 = vld [vmem:[%s273] sm:$0xf]
      %v299 = vld [vmem:[%s273 + $0x4] sm:$0xf]
      %v300 = vld [vmem:[%s273 + $0x8] sm:$0xf]
      %v301 = vld [vmem:[%s273 + $0xc] sm:$0xf]
      %v302 = vld [vmem:[%s273 + $0x10] sm:$0xf]
      %v303 = vld [vmem:[%s273 + $0x14] sm:$0xf]
      %v304 = vld [vmem:[%s273 + $0x18] sm:$0xf]
      %v305 = vld [vmem:[%s273 + $0x1c] sm:$0xf]
      %v306 = vld [vmem:[%s1] sm:$0xf]
      %v307 = vld [vmem:[%s1 + $0x4] sm:$0xf]
      %v308 = vld [vmem:[%s1 + $0x8] sm:$0xf]
      %v309 = vld [vmem:[%s1 + $0xc] sm:$0x3]
      %v310 = vld [vmem:[%s2] sm:$0x1]
      %v312 = vlaneseq
      %v313 = vshrl.u32 %v312, 7
      %v314 = vsub.s32 0, %v313
      %v315 = vrot.slane %v310, %v314
      %v325 = vunpack.c.l.b16 %v298
      %v326 = vunpack.c.l.b16 %v299
      %v327 = vunpack.c.l.b16 %v300
      %v328 = vunpack.c.l.b16 %v301
      %v329 = vunpack.c.l.b16 %v302
      %v330 = vunpack.c.l.b16 %v303
      %v331 = vunpack.c.l.b16 %v304
      %v332 = vunpack.c.l.b16 %v305
      %v333 = vpack.c.b16 %v326, %v325
      %v334 = vpack.c.b16 %v328, %v327
      %v335 = vpack.c.b16 %v330, %v329
      %v336 = vpack.c.b16 %v332, %v331
      %v341 = vunpack.c.l.b16 %v306
      %v342 = vunpack.c.l.b16 %v307
      %v343 = vunpack.c.l.b16 %v308
      %v344 = vunpack.c.l.b16 %v309
      %v345 = vpack.c.b16 %v342, %v341
      %v346 = vpack.c.b16 %v344, %v343
      %vm348 = vcmask 220160
      %v350 = vsel %vm348, %v333, 0
      %v353 = vsel %vm348, %v334, 0
      %v356 = vsel %vm348, %v335, 0
      %v359 = vsel %vm348, %v336, 0
      %vm361 = vcmask 1044480
      %vm362 = vcmask 1045504
      %v363 = vsel %vm361, 4294967295, 65535
      %v364 = vsel %vm362, %v363, 0
      %v366 = vand.u32 %v346, %v364
      %368 = vmatprep.subr.bf16.mxu0 0
      %369 = vmatpush1.bf16.msra.mxu0 %v345
      %370 = vmatprep.subr.bf16.mxu0 0
      %371 = vmatpush1.bf16.msra.mxu0 %v366
      %372 = vmatprep.subr.bf16.mxu0 0
      %373 = vmatpush1.bf16.msra.mxu0 0
      %374 = vmatprep.subr.bf16.mxu0 0
      %375 = vmatpush1.bf16.msra.mxu0 0
      %376 = vmatprep.subr.bf16.mxu0 0
      %377 = vmatpush1.bf16.msra.mxu0 0
      %378 = vmatprep.subr.bf16.mxu0 0
      %379 = vmatpush1.bf16.msra.mxu0 0
      %380 = vmatprep.subr.bf16.mxu0 0
      %381 = vmatpush1.bf16.msra.mxu0 0
      %382 = vmatprep.subr.bf16.mxu0 0
      %383 = vmatpush1.bf16.msra.mxu0 0
      %384 = vmatprep.subr.bf16.mxu0 0
      %385 = vmatpush1.bf16.msra.mxu0 0
      %386 = vmatprep.subr.bf16.mxu0 0
      %387 = vmatpush1.bf16.msra.mxu0 0
      %388 = vmatprep.subr.bf16.mxu0 0
      %389 = vmatpush1.bf16.msra.mxu0 0
      %390 = vmatprep.subr.bf16.mxu0 0
      %391 = vmatpush1.bf16.msra.mxu0 0
      %392 = vmatprep.subr.bf16.mxu0 0
      %393 = vmatpush1.bf16.msra.mxu0 0
      %394 = vmatprep.subr.bf16.mxu0 0
      %395 = vmatpush1.bf16.msra.mxu0 0
      %396 = vmatprep.subr.bf16.mxu0 0
      %397 = vmatpush1.bf16.msra.mxu0 0
      %398 = vmatprep.subr.bf16.mxu0 0
      %399 = vmatpush1.bf16.msra.mxu0 0
      %400 = vmatprep.mubr.bf16.mxu0 0
      %401 = vmatmul.mubr.bf16.gmra.mrb[0].mxu0 %v350
      %v402 = vpop.f32.mrb[0].mxu0
      %v403 = vadd.f32 %v315, %v402
      %v404 = vpop.f32.mrb[0].mxu0
      %v405 = vpop.f32.mrb[0].mxu0
      %v406 = vadd.f32 %v315, %v405
      %v407 = vpop.f32.mrb[0].mxu0
      %408 = vmatprep.mubr.bf16.mxu0 0
      %409 = vmatmul.mubr.bf16.gmra.mrb[0].mxu0 %v353
      %v410 = vpop.f32.mrb[0].mxu0
      %v411 = vadd.f32 %v315, %v410
      %v412 = vpop.f32.mrb[0].mxu0
      %v413 = vpop.f32.mrb[0].mxu0
      %v414 = vadd.f32 %v315, %v413
      %v415 = vpop.f32.mrb[0].mxu0
      %416 = vmatprep.mubr.bf16.mxu0 0
      %417 = vmatmul.mubr.bf16.gmra.mrb[0].mxu0 %v356
      %v418 = vpop.f32.mrb[0].mxu0
      %v419 = vadd.f32 %v315, %v418
      %v420 = vpop.f32.mrb[0].mxu0
      %v421 = vpop.f32.mrb[0].mxu0
      %v422 = vadd.f32 %v315, %v421
      %v423 = vpop.f32.mrb[0].mxu0
      %424 = vmatprep.mubr.bf16.mxu0 0
      %425 = vmatmul.mubr.bf16.gmra.mrb[0].mxu0 %v359
      %v426 = vpop.f32.mrb[0].mxu0
      %v427 = vadd.f32 %v315, %v426
      %v428 = vpop.f32.mrb[0].mxu0
      %v429 = vpop.f32.mrb[0].mxu0
      %v430 = vadd.f32 %v315, %v429
      %v431 = vpop.f32.mrb[0].mxu0
      %432 = vdwg.mxu0
      %v433 = vmul.f32 %v403, 0.2
      %v434 = vmul.f32 %v406, 0.2
      %v435 = vmul.f32 %v411, 0.2
      %v436 = vmul.f32 %v414, 0.2
      %v437 = vmul.f32 %v419, 0.2
      %v438 = vmul.f32 %v422, 0.2
      %v439 = vmul.f32 %v427, 0.2
      %v440 = vmul.f32 %v430, 0.2
      %v441 = vmax.f32 %v403, %v433
      %v442 = vmax.f32 %v406, %v434
      %v443 = vmax.f32 %v411, %v435
      %v444 = vmax.f32 %v414, %v436
      %v445 = vmax.f32 %v419, %v437
      %v446 = vmax.f32 %v422, %v438
      %v447 = vmax.f32 %v427, %v439
      %v448 = vmax.f32 %v430, %v440
      %v449 = vpack.c.bf16 %v442, %v441
      %v450 = vpack.c.bf16 %v444, %v443
      %v451 = vpack.c.bf16 %v446, %v445
      %v452 = vpack.c.bf16 %v448, %v447
      %v457 = vunpack.c.l.b16 %v449
      %v458 = vunpack.c.h.b16 %v449
      %v459 = vunpack.c.l.b16 %v450
      %v460 = vunpack.c.h.b16 %v450
      %v461 = vunpack.c.l.b16 %v451
      %v462 = vunpack.c.h.b16 %v451
      %v463 = vunpack.c.l.b16 %v452
      %v464 = vunpack.c.h.b16 %v452
      %v465 = vpack.c.b16 %v457, %v457
      %v466 = vpack.c.b16 %v458, %v458
      %v467 = vpack.c.b16 %v459, %v459
      %v468 = vpack.c.b16 %v460, %v460
      %v469 = vpack.c.b16 %v461, %v461
      %v470 = vpack.c.b16 %v462, %v462
      %v471 = vpack.c.b16 %v463, %v463
      %v472 = vpack.c.b16 %v464, %v464
      %481 = vst [vmem:[%s283] sm:$0xf] %v465
      %482 = vst [vmem:[%s283 + $0x4] sm:$0xf] %v466
      %483 = vst [vmem:[%s283 + $0x8] sm:$0xf] %v467
      %484 = vst [vmem:[%s283 + $0xc] sm:$0xf] %v468
      %485 = vst [vmem:[%s283 + $0x10] sm:$0xf] %v469
      %486 = vst [vmem:[%s283 + $0x14] sm:$0xf] %v470
      %487 = vst [vmem:[%s283 + $0x18] sm:$0xf] %v471
      %488 = vst [vmem:[%s283 + $0x1c] sm:$0xf] %v472
      %v489 = vadd.f32 %v441, %v442
      %v490 = vadd.f32 %v489, %v443
      %v491 = vadd.f32 %v490, %v444
      %v492 = vadd.f32 %v491, %v445
      %v493 = vadd.f32 %v492, %v446
      %v494 = vadd.f32 %v493, %v447
      %v495 = vadd.f32 %v494, %v448
      %v496 = vrot.slane %v495, 4
      %v497 = vadd.f32 %v495, %v496
      %v498 = vrot.slane %v497, 2
      %v499 = vadd.f32 %v497, %v498
      %v500 = vrot.slane %v499, 1
      %v501 = vadd.f32 %v499, %v500
      %502 = vst [vmem:[%s290] sm:$0x1] %v501
      %v503 = vmul.f32 %v441, %v441
      %v504 = vmul.f32 %v442, %v442
      %v505 = vmul.f32 %v443, %v443
      %v506 = vmul.f32 %v444, %v444
      %v507 = vmul.f32 %v445, %v445
      %v508 = vmul.f32 %v446, %v446
      %v509 = vmul.f32 %v447, %v447
      %v510 = vmul.f32 %v448, %v448
      %v511 = vadd.f32 %v503, %v504
      %v512 = vadd.f32 %v511, %v505
      %v513 = vadd.f32 %v512, %v506
      %v514 = vadd.f32 %v513, %v507
      %v515 = vadd.f32 %v514, %v508
      %v516 = vadd.f32 %v515, %v509
      %v517 = vadd.f32 %v516, %v510
      %v518 = vrot.slane %v517, 4
      %v519 = vadd.f32 %v517, %v518
      %v520 = vrot.slane %v519, 2
      %v521 = vadd.f32 %v519, %v520
      %v522 = vrot.slane %v521, 1
      %v523 = vadd.f32 %v521, %v522
      %524 = vst [vmem:[%s296] sm:$0x1] %v523
      %s525 = smul.u32 8, %s22
      %p526 = scmp.lt.s32.totalorder %s21, 1
      %s527 = scalar_select %p526, %s21, 1
      %p528 = scmp.lt.s32.totalorder %s525, 7
      %s529 = scalar_select %p528, %s525, 7
      %s530 = smul.addr %s527, 8
      %s531 = sadd.s32 %s529, %s530
      %s532 = smul.addr %s531, 4
      %s533 = scalar_lea.vmem %s3, %s532
      %p534 = scmp.lt.s32.totalorder %s21, 1
      %s535 = scalar_select %p534, %s21, 1
      %p536 = scmp.lt.s32.totalorder %s22, 0
      %s537 = scalar_select %p536, %s22, 0
      %s538 = sadd.s32 %s537, %s535
      %s539 = scalar_lea.vmem %s4, %s538
      %p540 = scmp.lt.s32.totalorder %s21, 1
      %s541 = scalar_select %p540, %s21, 1
      %p542 = scmp.lt.s32.totalorder %s22, 0
      %s543 = scalar_select %p542, %s22, 0
      %s544 = sadd.s32 %s543, %s541
      %s545 = scalar_lea.vmem %s5, %s544
      // Predicated region
      $region33: #{_lambda_.6} parent=31 // pred_check
        %p546 = pneg %p119
      $region34: #{_lambda_.6} parent=31 // pred_check_branch
        %548 = sbr.rel (%p546) target = $region36
      $region35: #{_lambda_.6} parent=31 // pred_region
        %s549 = smul.u32 8, %s22
      $region36: #{_lambda_.6} parent=31 // pred_fallthru
        _
      // Predicated region
      $region37: #{_lambda_.6} parent=31 // pred_check
        %p550 = pneg %p147
      $region38: #{_lambda_.6} parent=31 // pred_check_branch
        %552 = sbr.rel (%p550) target = $region40
      $region39: #{_lambda_.6} parent=31 // pred_region
        _
      $region40: #{_lambda_.6} parent=31 // pred_fallthru
        _
      // Predicated region
      $region41: #{_lambda_.6} parent=31 // pred_check
        %p553 = pneg %p175
      $region42: #{_lambda_.6} parent=31 // pred_check_branch
        %555 = sbr.rel (%p553) target = $region44
      $region43: #{_lambda_.6} parent=31 // pred_region
        _
      $region44: #{_lambda_.6} parent=31 // pred_fallthru
        _
    $region32: #{_lambda_.6} parent=5 // pred_fallthru
      _
    %p556 = scmp.le.s32.totalorder 2, %s12
    // Predicated region
    $region45: #{_lambda_.6} parent=5 // pred_check
      %p557 = pneg %p556
    $region46: #{_lambda_.6} parent=5 // pred_check_branch
      %559 = sbr.rel (%p557) target = $region48
    $region47: #{_lambda_.6} parent=5 // pred_region
      %s560 = ssub.s32 %s12, 2
      // Predicated region
      $region49: #{_lambda_.6} parent=47 // pred_check
        %p561 = pneg %p125
      $region50: #{_lambda_.6} parent=47 // pred_check_branch
        %563 = sbr.rel (%p561) target = $region52
      $region51: #{_lambda_.6} parent=47 // pred_region
        %s564 = smul.u32 8, %s24
        %p565 = scmp.lt.s32.totalorder %s23, 1
        %s566 = scalar_select %p565, %s23, 1
        %p567 = scmp.lt.s32.totalorder %s564, 7
        %s568 = scalar_select %p567, %s564, 7
        %s569 = smul.addr %s566, 8
        %s570 = sadd.s32 %s568, %s569
        %s571 = smul.addr %s570, 4
        %s572 = scalar_lea.vmem %s3, %s571
      $region52: #{_lambda_.6} parent=47 // pred_fallthru
        _
      // Predicated region
      $region53: #{_lambda_.6} parent=47 // pred_check
        %p573 = pneg %p153
      $region54: #{_lambda_.6} parent=47 // pred_check_branch
        %575 = sbr.rel (%p573) target = $region56
      $region55: #{_lambda_.6} parent=47 // pred_region
        %p576 = scmp.lt.s32.totalorder %s23, 1
        %s577 = scalar_select %p576, %s23, 1
        %p578 = scmp.lt.s32.totalorder %s24, 0
        %s579 = scalar_select %p578, %s24, 0
        %s580 = sadd.s32 %s579, %s577
        %s581 = scalar_lea.vmem %s4, %s580
      $region56: #{_lambda_.6} parent=47 // pred_fallthru
        _
      // Predicated region
      $region57: #{_lambda_.6} parent=47 // pred_check
        %p582 = pneg %p181
      $region58: #{_lambda_.6} parent=47 // pred_check_branch
        %584 = sbr.rel (%p582) target = $region60
      $region59: #{_lambda_.6} parent=47 // pred_region
        %p585 = scmp.lt.s32.totalorder %s23, 1
        %s586 = scalar_select %p585, %s23, 1
        %p587 = scmp.lt.s32.totalorder %s24, 0
        %s588 = scalar_select %p587, %s24, 0
        %s589 = sadd.s32 %s588, %s586
        %s590 = scalar_lea.vmem %s5, %s589
      $region60: #{_lambda_.6} parent=47 // pred_fallthru
        _
    $region48: #{_lambda_.6} parent=5 // pred_fallthru
      _
  $region6: #{_lambda_.6} parent=0 // loop_footer
    %s16 = sadd.s32 1, %s12
  $region7: #{_lambda_.6} parent=0 // loop_footer_branch
    %11 = sbr.rel target = $region3
  $region8: #{_lambda_.6} parent=0 // loop_exit
    _

// kernel: _lambda_.7
$region0: #{_lambda_.7}
  #allocation0 [shape = 'u32[]', space=smem, size = 0x4, offset = 0x4, fixed_abs, tag = 'smem constant byte address 0x4 - core index']
  #allocation1 [shape = 'u32[144,128]{1,0:T(1,128)}', space=vmem, size = 0x12000, scoped, tag = 'internal scratch']
  %s0 = inlined_call_operand.vmem [shape: bf16[2,16,576], index: 0, kind: input, shape index: {}]
  %s1 = inlined_call_operand.vmem [shape: bf16[576,128], index: 1, kind: input, shape index: {}]
  %s2 = inlined_call_operand.vmem [shape: f32[1,128], index: 2, kind: input, shape index: {}]
  %s3 = inlined_call_operand.vmem [shape: bf16[2,16,128], index: 3, kind: output, shape index: {0}]
  %s4 = inlined_call_operand.vmem [shape: f32[2,1,1,128], index: 4, kind: output, shape index: {1}]
  %s5 = inlined_call_operand.vmem [shape: f32[2,1,1,128], index: 5, kind: output, shape index: {2}]
  %6 = xla_tuple %s3, %s4, %s5
  %s7 = sld [smem:[#allocation0]]
  $region61: #{_lambda_.7} parent=0
    _
  %s9 = ssub.s32 1, %s7
  %s10 = scalar_select 0, %s9, %s7
  loop: start=0, step=1, limit=4
  $region2: #{_lambda_.7} parent=0 // loop_pre_header
    _
  $region3: #{_lambda_.7} parent=0 // loop_header
    %s12 = sphi 0, %s16
    %p13 = scmp.ge.s32.totalorder %s12, 4
    %s19 = sphi 0, %s31
    %s20 = sphi 0, %s27
    %s21 = sphi 0, %s19
    %s22 = sphi 0, %s20
    %s23 = sphi 0, %s21
    %s24 = sphi 0, %s22
    %s36 = sphi 0, %s38
    %s39 = sphi 0, %s36
    %s40 = sphi 0, %s39
    %s56 = sphi 0, %s40
    %s60 = sphi 0, %s60
    %s62 = sphi 0, %s60
    %s63 = sphi 0, %s62
    %s77 = sphi 0, %s63
    %s81 = sphi 0, %s81
    %s83 = sphi 0, %s81
    %s84 = sphi 0, %s83
    %s98 = sphi 0, %s84
    %s106 = sphi 0, %s108
    %s109 = sphi 0, %s106
    %s110 = sphi 0, %s109
    %s126 = sphi 0, %s110
    %s134 = sphi 0, %s136
    %s137 = sphi 0, %s134
    %s138 = sphi 0, %s137
    %s154 = sphi 0, %s138
    %s162 = sphi 0, %s164
    %s165 = sphi 0, %s162
    %s166 = sphi 0, %s165
    %s182 = sphi 0, %s166
  $region4: #{_lambda_.7} parent=0 // loop_header_branch
    %15 = sbr.rel (%p13) target = $region8
  $region5: #{_lambda_.7} parent=0 // loop_body
    %s17 = ssub.s32 %s12, 1
    %s18 = ssub.s32 %s12, 2
    %s25 = sadd.s32 1, %s20
    %p26 = scmp.ge.s32.totalorder %s25, 1
    %s27 = scalar_select %p26, 0, %s25
    %s28 = sadd.s32 1, %s19
    %s29 = scalar_select %p26, %s28, %s19
    %p30 = scmp.ge.s32.totalorder %s29, 2
    %s31 = scalar_select %p30, 0, %s29
    %s32 = ssub.s32 %s19, %s31
    %s33 = ssub.s32 %s20, %s27
    %s34 = sor.u32 %s32, %s33
    %p35 = scmp.eq.s32.totalorder %s34, 0
    %s37 = sadd.s32 %s36, 1
    %s38 = scalar_select %p35, %s36, %s37
    %p41 = pneg %p35
    %p42 = scmp.eq.s32.totalorder %s12, 1
    %p43 = por %p41, %p42
    %p44 = scmp.ne.s32.totalorder %s36, %s39
    %p45 = scmp.eq.s32.totalorder %s12, 0
    %p46 = por %p44, %p45
    %p47 = scmp.ne.s32.totalorder %s36, %s39
    %p48 = scmp.eq.s32.totalorder %s17, 1
    %p49 = por %p47, %p48
    %p50 = scmp.ne.s32.totalorder %s39, %s40
    %p51 = scmp.eq.s32.totalorder %s17, 0
    %p52 = por %p50, %p51
    %p53 = scmp.ne.s32.totalorder %s39, %s40
    %p54 = scmp.eq.s32.totalorder %s18, 1
    %p55 = por %p53, %p54
    %p57 = scmp.ne.s32.totalorder %s40, %s56
    %p58 = scmp.eq.s32.totalorder %s18, 0
    %p59 = por %p57, %p58
    %s61 = sadd.s32 %s60, 1
    %p64 = scmp.eq.s32.totalorder %s12, 1
    %p65 = scmp.ne.s32.totalorder %s60, %s62
    %p66 = scmp.eq.s32.totalorder %s12, 0
    %p67 = por %p65, %p66
    %p68 = scmp.ne.s32.totalorder %s60, %s62
    %p69 = scmp.eq.s32.totalorder %s17, 1
    %p70 = por %p68, %p69
    %p71 = scmp.ne.s32.totalorder %s62, %s63
    %p72 = scmp.eq.s32.totalorder %s17, 0
    %p73 = por %p71, %p72
    %p74 = scmp.ne.s32.totalorder %s62, %s63
    %p75 = scmp.eq.s32.totalorder %s18, 1
    %p76 = por %p74, %p75
    %p78 = scmp.ne.s32.totalorder %s63, %s77
    %p79 = scmp.eq.s32.totalorder %s18, 0
    %p80 = por %p78, %p79
    %s82 = sadd.s32 %s81, 1
    %p85 = scmp.eq.s32.totalorder %s12, 1
    %p86 = scmp.ne.s32.totalorder %s81, %s83
    %p87 = scmp.eq.s32.totalorder %s12, 0
    %p88 = por %p86, %p87
    %p89 = scmp.ne.s32.totalorder %s81, %s83
    %p90 = scmp.eq.s32.totalorder %s17, 1
    %p91 = por %p89, %p90
    %p92 = scmp.ne.s32.totalorder %s83, %s84
    %p93 = scmp.eq.s32.totalorder %s17, 0
    %p94 = por %p92, %p93
    %p95 = scmp.ne.s32.totalorder %s83, %s84
    %p96 = scmp.eq.s32.totalorder %s18, 1
    %p97 = por %p95, %p96
    %p99 = scmp.ne.s32.totalorder %s84, %s98
    %p100 = scmp.eq.s32.totalorder %s18, 0
    %p101 = por %p99, %p100
    %s102 = ssub.s32 %s19, %s31
    %s103 = ssub.s32 %s20, %s27
    %s104 = sor.u32 %s102, %s103
    %p105 = scmp.eq.s32.totalorder %s104, 0
    %s107 = sadd.s32 %s106, 1
    %s108 = scalar_select %p105, %s106, %s107
    %p111 = pneg %p105
    %p112 = scmp.eq.s32.totalorder %s12, 1
    %p113 = por %p111, %p112
    %p114 = scmp.ne.s32.totalorder %s106, %s109
    %p115 = scmp.eq.s32.totalorder %s12, 0
    %p116 = por %p114, %p115
    %p117 = scmp.ne.s32.totalorder %s106, %s109
    %p118 = scmp.eq.s32.totalorder %s17, 1
    %p119 = por %p117, %p118
    %p120 = scmp.ne.s32.totalorder %s109, %s110
    %p121 = scmp.eq.s32.totalorder %s17, 0
    %p122 = por %p120, %p121
    %p123 = scmp.ne.s32.totalorder %s109, %s110
    %p124 = scmp.eq.s32.totalorder %s18, 1
    %p125 = por %p123, %p124
    %p127 = scmp.ne.s32.totalorder %s110, %s126
    %p128 = scmp.eq.s32.totalorder %s18, 0
    %p129 = por %p127, %p128
    %s130 = ssub.s32 %s19, %s31
    %s131 = ssub.s32 %s20, %s27
    %s132 = sor.u32 %s130, %s131
    %p133 = scmp.eq.s32.totalorder %s132, 0
    %s135 = sadd.s32 %s134, 1
    %s136 = scalar_select %p133, %s134, %s135
    %p139 = pneg %p133
    %p140 = scmp.eq.s32.totalorder %s12, 1
    %p141 = por %p139, %p140
    %p142 = scmp.ne.s32.totalorder %s134, %s137
    %p143 = scmp.eq.s32.totalorder %s12, 0
    %p144 = por %p142, %p143
    %p145 = scmp.ne.s32.totalorder %s134, %s137
    %p146 = scmp.eq.s32.totalorder %s17, 1
    %p147 = por %p145, %p146
    %p148 = scmp.ne.s32.totalorder %s137, %s138
    %p149 = scmp.eq.s32.totalorder %s17, 0
    %p150 = por %p148, %p149
    %p151 = scmp.ne.s32.totalorder %s137, %s138
    %p152 = scmp.eq.s32.totalorder %s18, 1
    %p153 = por %p151, %p152
    %p155 = scmp.ne.s32.totalorder %s138, %s154
    %p156 = scmp.eq.s32.totalorder %s18, 0
    %p157 = por %p155, %p156
    %s158 = ssub.s32 %s19, %s31
    %s159 = ssub.s32 %s20, %s27
    %s160 = sor.u32 %s158, %s159
    %p161 = scmp.eq.s32.totalorder %s160, 0
    %s163 = sadd.s32 %s162, 1
    %s164 = scalar_select %p161, %s162, %s163
    %p167 = pneg %p161
    %p168 = scmp.eq.s32.totalorder %s12, 1
    %p169 = por %p167, %p168
    %p170 = scmp.ne.s32.totalorder %s162, %s165
    %p171 = scmp.eq.s32.totalorder %s12, 0
    %p172 = por %p170, %p171
    %p173 = scmp.ne.s32.totalorder %s162, %s165
    %p174 = scmp.eq.s32.totalorder %s17, 1
    %p175 = por %p173, %p174
    %p176 = scmp.ne.s32.totalorder %s165, %s166
    %p177 = scmp.eq.s32.totalorder %s17, 0
    %p178 = por %p176, %p177
    %p179 = scmp.ne.s32.totalorder %s165, %s166
    %p180 = scmp.eq.s32.totalorder %s18, 1
    %p181 = por %p179, %p180
    %p183 = scmp.ne.s32.totalorder %s166, %s182
    %p184 = scmp.eq.s32.totalorder %s18, 0
    %p185 = por %p183, %p184
    %p186 = scmp.le.s32.totalorder 1, %s12
    %p187 = scmp.lt.s32.totalorder %s12, 3
    %p188 = pnand %p186, %p187
    %p189 = pneg %p188
    // Predicated region
    $region9: #{_lambda_.7} parent=5 // pred_check
      _
    $region10: #{_lambda_.7} parent=5 // pred_check_branch
      %191 = sbr.rel (%p188) target = $region12
    $region11: #{_lambda_.7} parent=5 // pred_region
      %s192 = ssub.s32 %s12, 1
      // Predicated region
      $region13: #{_lambda_.7} parent=11 // pred_check
        %p193 = pneg %p73
      $region14: #{_lambda_.7} parent=11 // pred_check_branch
        %195 = sbr.rel (%p193) target = $region16
      $region15: #{_lambda_.7} parent=11 // pred_region
        _
      $region16: #{_lambda_.7} parent=11 // pred_fallthru
        _
      // Predicated region
      $region17: #{_lambda_.7} parent=11 // pred_check
        %p196 = pneg %p94
      $region18: #{_lambda_.7} parent=11 // pred_check_branch
        %198 = sbr.rel (%p196) target = $region20
      $region19: #{_lambda_.7} parent=11 // pred_region
        _
      $region20: #{_lambda_.7} parent=11 // pred_fallthru
        _
    $region12: #{_lambda_.7} parent=5 // pred_fallthru
      _
    %p199 = scmp.lt.s32.totalorder %s12, 2
    // Predicated region
    $region21: #{_lambda_.7} parent=5 // pred_check
      %p200 = pneg %p199
    $region22: #{_lambda_.7} parent=5 // pred_check_branch
      %202 = sbr.rel (%p200) target = $region24
    $region23: #{_lambda_.7} parent=5 // pred_region
      // Predicated region
      $region25: #{_lambda_.7} parent=23 // pred_check
        %p203 = pneg %p46
      $region26: #{_lambda_.7} parent=23 // pred_check_branch
        %205 = sbr.rel (%p203) target = $region28
      $region27: #{_lambda_.7} parent=23 // pred_region
        %s206 = smul.u32 2, %s20
        %p207 = scmp.lt.s32.totalorder %s19, 1
        %s208 = scalar_select %p207, %s19, 1
        %p209 = scmp.lt.s32.totalorder %s206, 1
        %s210 = scalar_select %p209, %s206, 1
        %s211 = smul.addr %s210, 5
        %s212 = smul.addr %s208, 10
        %s213 = sadd.s32 %s211, %s212
        %s214 = smul.addr %s213, 4
        %s215 = scalar_lea.vmem %s0, %s214
        %s216 = smul.u32 2, %s20
      $region28: #{_lambda_.7} parent=23 // pred_fallthru
        _
    $region24: #{_lambda_.7} parent=5 // pred_fallthru
      _
    %p217 = scmp.le.s32.totalorder 1, %s12
    %p218 = scmp.lt.s32.totalorder %s12, 3
    %p219 = pnand %p217, %p218
    %p220 = pneg %p219
    // Predicated region
    $region29: #{_lambda_.7} parent=5 // pred_check
      _
    $region30: #{_lambda_.7} parent=5 // pred_check_branch
      %222 = sbr.rel (%p219) target = $region32
    $region31: #{_lambda_.7} parent=5 // pred_region
      %s223 = ssub.s32 %s12, 1
      %s224 = smul.u32 2, %s22
      %p225 = scmp.lt.s32.totalorder %s21, 1
      %s226 = scalar_select %p225, %s21, 1
      %p227 = scmp.lt.s32.totalorder %s224, 1
      %s228 = scalar_select %p227, %s224, 1
      %s229 = smul.addr %s228, 5
      %s230 = smul.addr %s226, 10
      %s231 = sadd.s32 %s229, %s230
      %s232 = smul.addr %s231, 4
      %s233 = scalar_lea.vmem %s0, %s232
      %p234 = pneg %p52
      %p235 = pneg %p49
      %p236 = pneg %p73
      %p237 = pneg %p70
      %p238 = pneg %p94
      %p239 = pneg %p91
      %p240 = pneg %p122
      %p241 = pneg %p119
      %s242 = smul.u32 2, %s22
      %p243 = scmp.lt.s32.totalorder %s21, 1
      %s244 = scalar_select %p243, %s21, 1
      %p245 = scmp.lt.s32.totalorder %s242, 1
      %s246 = scalar_select %p245, %s242, 1
      %s247 = smul.addr %s244, 2
      %s248 = sadd.s32 %s246, %s247
      %s249 = smul.addr %s248, 4
      %s250 = scalar_lea.vmem %s3, %s249
      %p251 = pneg %p150
      %p252 = pneg %p147
      %p253 = scmp.lt.s32.totalorder %s21, 1
      %s254 = scalar_select %p253, %s21, 1
      %p255 = scmp.lt.s32.totalorder %s22, 0
      %s256 = scalar_select %p255, %s22, 0
      %s257 = sadd.s32 %s256, %s254
      %s258 = scalar_lea.vmem %s4, %s257
      %p259 = pneg %p178
      %p260 = pneg %p175
      %p261 = scmp.lt.s32.totalorder %s21, 1
      %s262 = scalar_select %p261, %s21, 1
      %p263 = scmp.lt.s32.totalorder %s22, 0
      %s264 = scalar_select %p263, %s22, 0
      %s265 = sadd.s32 %s264, %s262
      %s266 = scalar_lea.vmem %s5, %s265
      %s267 = smul.u32 2, %s22
      %p268 = scmp.lt.s32.totalorder %s21, 1
      %s269 = scalar_select %p268, %s21, 1
      %p270 = scmp.lt.s32.totalorder %s267, 1
      %s271 = scalar_select %p270, %s267, 1
      %s272 = smul.addr %s271, 5
      %s273 = smul.addr %s269, 10
      %s274 = sadd.s32 %s272, %s273
      %s275 = smul.addr %s274, 4
      %s276 = scalar_lea.vmem %s0, %s275
      %s277 = smul.u32 2, %s22
      %s278 = smul.u32 2, %s22
      %p279 = scmp.lt.s32.totalorder %s21, 1
      %s280 = scalar_select %p279, %s21, 1
      %p281 = scmp.lt.s32.totalorder %s278, 1
      %s282 = scalar_select %p281, %s278, 1
      %s283 = smul.addr %s280, 2
      %s284 = sadd.s32 %s282, %s283
      %s285 = smul.addr %s284, 4
      %s286 = scalar_lea.vmem %s3, %s285
      %s287 = smul.u32 2, %s22
      %p288 = scmp.lt.s32.totalorder %s21, 1
      %s289 = scalar_select %p288, %s21, 1
      %p290 = scmp.lt.s32.totalorder %s22, 0
      %s291 = scalar_select %p290, %s22, 0
      %s292 = sadd.s32 %s291, %s289
      %s293 = scalar_lea.vmem %s4, %s292
      %p294 = scmp.lt.s32.totalorder %s21, 1
      %s295 = scalar_select %p294, %s21, 1
      %p296 = scmp.lt.s32.totalorder %s22, 0
      %s297 = scalar_select %p296, %s22, 0
      %s298 = sadd.s32 %s297, %s295
      %s299 = scalar_lea.vmem %s5, %s298
      %v301 = vld [vmem:[%s276] sm:$0xff]
      %v302 = vld [vmem:[%s276 + $0x8] sm:$0xff]
      %v303 = vld [vmem:[%s276 + $0x10] sm:$0xf]
      %v304 = vld [vmem:[%s276 + $0x14] sm:$0xff]
      %v305 = vld [vmem:[%s276 + $0x1c] sm:$0xff]
      %v306 = vld [vmem:[%s276 + $0x24] sm:$0xf]
      %v307 = vld [vmem:[%s1] sm:$0xf]
      %v308 = vld [vmem:[%s1 + $0x4] sm:$0xf]
      %v309 = vld [vmem:[%s1 + $0x8] sm:$0xf]
      %v310 = vld [vmem:[%s1 + $0xc] sm:$0xf]
      %v311 = vld [vmem:[%s1 + $0x10] sm:$0xf]
      %v312 = vld [vmem:[%s1 + $0x14] sm:$0xf]
      %v313 = vld [vmem:[%s1 + $0x18] sm:$0xf]
      %v314 = vld [vmem:[%s1 + $0x1c] sm:$0xf]
      %v315 = vld [vmem:[%s1 + $0x20] sm:$0xf]
      %v316 = vld [vmem:[%s1 + $0x24] sm:$0xf]
      %v317 = vld [vmem:[%s1 + $0x28] sm:$0xf]
      %v318 = vld [vmem:[%s1 + $0x2c] sm:$0xf]
      %v319 = vld [vmem:[%s1 + $0x30] sm:$0xf]
      %v320 = vld [vmem:[%s1 + $0x34] sm:$0xf]
      %v321 = vld [vmem:[%s1 + $0x38] sm:$0xf]
      %v322 = vld [vmem:[%s1 + $0x3c] sm:$0xf]
      %v323 = vld [vmem:[%s1 + $0x40] sm:$0xf]
      %v324 = vld [vmem:[%s1 + $0x44] sm:$0xf]
      %v325 = vld [vmem:[%s1 + $0x48] sm:$0xf]
      %v326 = vld [vmem:[%s1 + $0x4c] sm:$0xf]
      %v327 = vld [vmem:[%s1 + $0x50] sm:$0xf]
      %v328 = vld [vmem:[%s1 + $0x54] sm:$0xf]
      %v329 = vld [vmem:[%s1 + $0x58] sm:$0xf]
      %v330 = vld [vmem:[%s1 + $0x5c] sm:$0xf]
      %v331 = vld [vmem:[%s1 + $0x60] sm:$0xf]
      %v332 = vld [vmem:[%s1 + $0x64] sm:$0xf]
      %v333 = vld [vmem:[%s1 + $0x68] sm:$0xf]
      %v334 = vld [vmem:[%s1 + $0x6c] sm:$0xf]
      %v335 = vld [vmem:[%s1 + $0x70] sm:$0xf]
      %v336 = vld [vmem:[%s1 + $0x74] sm:$0xf]
      %v337 = vld [vmem:[%s1 + $0x78] sm:$0xf]
      %v338 = vld [vmem:[%s1 + $0x7c] sm:$0xf]
      %v339 = vld [vmem:[%s1 + $0x80] sm:$0xf]
      %v340 = vld [vmem:[%s1 + $0x84] sm:$0xf]
      %v341 = vld [vmem:[%s1 + $0x88] sm:$0xf]
      %v342 = vld [vmem:[%s1 + $0x8c] sm:$0xf]
      %v343 = vld [vmem:[%s1 + $0x90] sm:$0xf]
      %v344 = vld [vmem:[%s1 + $0x94] sm:$0xf]
      %v345 = vld [vmem:[%s1 + $0x98] sm:$0xf]
      %v346 = vld [vmem:[%s1 + $0x9c] sm:$0xf]
      %v347 = vld [vmem:[%s1 + $0xa0] sm:$0xf]
      %v348 = vld [vmem:[%s1 + $0xa4] sm:$0xf]
      %v349 = vld [vmem:[%s1 + $0xa8] sm:$0xf]
      %v350 = vld [vmem:[%s1 + $0xac] sm:$0xf]
      %v351 = vld [vmem:[%s1 + $0xb0] sm:$0xf]
      %v352 = vld [vmem:[%s1 + $0xb4] sm:$0xf]
      %v353 = vld [vmem:[%s1 + $0xb8] sm:$0xf]
      %v354 = vld [vmem:[%s1 + $0xbc] sm:$0xf]
      %v355 = vld [vmem:[%s1 + $0xc0] sm:$0xf]
      %v356 = vld [vmem:[%s1 + $0xc4] sm:$0xf]
      %v357 = vld [vmem:[%s1 + $0xc8] sm:$0xf]
      %v358 = vld [vmem:[%s1 + $0xcc] sm:$0xf]
      %v359 = vld [vmem:[%s1 + $0xd0] sm:$0xf]
      %v360 = vld [vmem:[%s1 + $0xd4] sm:$0xf]
      %v361 = vld [vmem:[%s1 + $0xd8] sm:$0xf]
      %v362 = vld [vmem:[%s1 + $0xdc] sm:$0xf]
      %v363 = vld [vmem:[%s1 + $0xe0] sm:$0xf]
      %v364 = vld [vmem:[%s1 + $0xe4] sm:$0xf]
      %v365 = vld [vmem:[%s1 + $0xe8] sm:$0xf]
      %v366 = vld [vmem:[%s1 + $0xec] sm:$0xf]
      %v367 = vld [vmem:[%s1 + $0xf0] sm:$0xf]
      %v368 = vld [vmem:[%s1 + $0xf4] sm:$0xf]
      %v369 = vld [vmem:[%s1 + $0xf8] sm:$0xf]
      %v370 = vld [vmem:[%s1 + $0xfc] sm:$0xf]
      %v371 = vld [vmem:[%s1 + $0x100] sm:$0xf]
      %v372 = vld [vmem:[%s1 + $0x104] sm:$0xf]
      %v373 = vld [vmem:[%s1 + $0x108] sm:$0xf]
      %v374 = vld [vmem:[%s1 + $0x10c] sm:$0xf]
      %v375 = vld [vmem:[%s1 + $0x110] sm:$0xf]
      %v376 = vld [vmem:[%s1 + $0x114] sm:$0xf]
      %v377 = vld [vmem:[%s1 + $0x118] sm:$0xf]
      %v378 = vld [vmem:[%s1 + $0x11c] sm:$0xf]
      %v379 = vld [vmem:[%s2] sm:$0x1]
      %v381 = vlaneseq
      %v382 = vshrl.u32 %v381, 7
      %v383 = vsub.s32 0, %v382
      %v384 = vrot.slane %v379, %v383
      %v392 = vunpack.c.l.b16 %v301
      %v393 = vunpack.c.h.b16 %v301
      %v394 = vunpack.c.l.b16 %v302
      %v395 = vunpack.c.h.b16 %v302
      %v396 = vunpack.c.l.b16 %v303
      %v397 = vunpack.c.l.b16 %v304
      %v398 = vunpack.c.h.b16 %v304
      %v399 = vunpack.c.l.b16 %v305
      %v400 = vunpack.c.h.b16 %v305
      %v401 = vunpack.c.l.b16 %v306
      %v402 = vpack.c.b16 %v397, %v392
      %v403 = vpack.c.b16 %v398, %v393
      %v404 = vpack.c.b16 %v399, %v394
      %v405 = vpack.c.b16 %v400, %v395
      %v406 = vpack.c.b16 %v401, %v396
      %v483 = vunpack.c.l.b16 %v307
      %v484 = vunpack.c.l.b16 %v308
      %v485 = vunpack.c.l.b16 %v309
      %v486 = vunpack.c.l.b16 %v310
      %v487 = vunpack.c.l.b16 %v311
      %v488 = vunpack.c.l.b16 %v312
      %v489 = vunpack.c.l.b16 %v313
      %v490 = vunpack.c.l.b16 %v314
      %v491 = vunpack.c.l.b16 %v315
      %v492 = vunpack.c.l.b16 %v316
      %v493 = vunpack.c.l.b16 %v317
      %v494 = vunpack.c.l.b16 %v318
      %v495 = vunpack.c.l.b16 %v319
      %v496 = vunpack.c.l.b16 %v320
      %v497 = vunpack.c.l.b16 %v321
      %v498 = vunpack.c.l.b16 %v322
      %v499 = vunpack.c.l.b16 %v323
      %v500 = vunpack.c.l.b16 %v324
      %v501 = vunpack.c.l.b16 %v325
      %v502 = vunpack.c.l.b16 %v326
      %v503 = vunpack.c.l.b16 %v327
      %v504 = vunpack.c.l.b16 %v328
      %v505 = vunpack.c.l.b16 %v329
      %v506 = vunpack.c.l.b16 %v330
      %v507 = vunpack.c.l.b16 %v331
      %v508 = vunpack.c.l.b16 %v332
      %v509 = vunpack.c.l.b16 %v333
      %v510 = vunpack.c.l.b16 %v334
      %v511 = vunpack.c.l.b16 %v335
      %v512 = vunpack.c.l.b16 %v336
      %v513 = vunpack.c.l.b16 %v337
      %v514 = vunpack.c.l.b16 %v338
      %v515 = vunpack.c.l.b16 %v339
      %v516 = vunpack.c.l.b16 %v340
      %v517 = vunpack.c.l.b16 %v341
      %v518 = vunpack.c.l.b16 %v342
      %v519 = vunpack.c.l.b16 %v343
      %v520 = vunpack.c.l.b16 %v344
      %v521 = vunpack.c.l.b16 %v345
      %v522 = vunpack.c.l.b16 %v346
      %v523 = vunpack.c.l.b16 %v347
      %v524 = vunpack.c.l.b16 %v348
      %v525 = vunpack.c.l.b16 %v349
      %v526 = vunpack.c.l.b16 %v350
      %v527 = vunpack.c.l.b16 %v351
      %v528 = vunpack.c.l.b16 %v352
      %v529 = vunpack.c.l.b16 %v353
      %v530 = vunpack.c.l.b16 %v354
      %v531 = vunpack.c.l.b16 %v355
      %v532 = vunpack.c.l.b16 %v356
      %v533 = vunpack.c.l.b16 %v357
      %v534 = vunpack.c.l.b16 %v358
      %v535 = vunpack.c.l.b16 %v359
      %v536 = vunpack.c.l.b16 %v360
      %v537 = vunpack.c.l.b16 %v361
      %v538 = vunpack.c.l.b16 %v362
      %v539 = vunpack.c.l.b16 %v363
      %v540 = vunpack.c.l.b16 %v364
      %v541 = vunpack.c.l.b16 %v365
      %v542 = vunpack.c.l.b16 %v366
      %v543 = vunpack.c.l.b16 %v367
      %v544 = vunpack.c.l.b16 %v368
      %v545 = vunpack.c.l.b16 %v369
      %v546 = vunpack.c.l.b16 %v370
      %v547 = vunpack.c.l.b16 %v371
      %v548 = vunpack.c.l.b16 %v372
      %v549 = vunpack.c.l.b16 %v373
      %v550 = vunpack.c.l.b16 %v374
      %v551 = vunpack.c.l.b16 %v375
      %v552 = vunpack.c.l.b16 %v376
      %v553 = vunpack.c.l.b16 %v377
      %v554 = vunpack.c.l.b16 %v378
      %v555 = vpack.c.b16 %v484, %v483
      %v556 = vpack.c.b16 %v486, %v485
      %v557 = vpack.c.b16 %v488, %v487
      %v558 = vpack.c.b16 %v490, %v489
      %v559 = vpack.c.b16 %v492, %v491
      %v560 = vpack.c.b16 %v494, %v493
      %v561 = vpack.c.b16 %v496, %v495
      %v562 = vpack.c.b16 %v498, %v497
      %v563 = vpack.c.b16 %v500, %v499
      %v564 = vpack.c.b16 %v502, %v501
      %v565 = vpack.c.b16 %v504, %v503
      %v566 = vpack.c.b16 %v506, %v505
      %v567 = vpack.c.b16 %v508, %v507
      %v568 = vpack.c.b16 %v510, %v509
      %v569 = vpack.c.b16 %v512, %v511
      %v570 = vpack.c.b16 %v514, %v513
      %v571 = vpack.c.b16 %v516, %v515
      %v572 = vpack.c.b16 %v518, %v517
      %v573 = vpack.c.b16 %v520, %v519
      %v574 = vpack.c.b16 %v522, %v521
      %v575 = vpack.c.b16 %v524, %v523
      %v576 = vpack.c.b16 %v526, %v525
      %v577 = vpack.c.b16 %v528, %v527
      %v578 = vpack.c.b16 %v530, %v529
      %v579 = vpack.c.b16 %v532, %v531
      %v580 = vpack.c.b16 %v534, %v533
      %v581 = vpack.c.b16 %v536, %v535
      %v582 = vpack.c.b16 %v538, %v537
      %v583 = vpack.c.b16 %v540, %v539
      %v584 = vpack.c.b16 %v542, %v541
      %v585 = vpack.c.b16 %v544, %v543
      %v586 = vpack.c.b16 %v546, %v545
      %v587 = vpack.c.b16 %v548, %v547
      %v588 = vpack.c.b16 %v550, %v549
      %v589 = vpack.c.b16 %v552, %v551
      %v590 = vpack.c.b16 %v554, %v553
      %vm627 = vcmask 523264
      %v629 = vsel %vm627, %v406, 0
      %631 = vmatprep.subr.bf16.mxu0 0
      %632 = vmatpush1.bf16.msra.mxu0 %v555
      %633 = vmatprep.subr.bf16.mxu0 0
      %634 = vmatpush1.bf16.msra.mxu0 %v556
      %635 = vmatprep.subr.bf16.mxu0 0
      %636 = vmatpush1.bf16.msra.mxu0 %v557
      %637 = vmatprep.subr.bf16.mxu0 0
      %638 = vmatpush1.bf16.msra.mxu0 %v558
      %639 = vmatprep.subr.bf16.mxu0 0
      %640 = vmatpush1.bf16.msra.mxu0 %v559
      %641 = vmatprep.subr.bf16.mxu0 0
      %642 = vmatpush1.bf16.msra.mxu0 %v560
      %643 = vmatprep.subr.bf16.mxu0 0
      %644 = vmatpush1.bf16.msra.mxu0 %v561
      %645 = vmatprep.subr.bf16.mxu0 0
      %646 = vmatpush1.bf16.msra.mxu0 %v562
      %647 = vmatprep.subr.bf16.mxu0 0
      %648 = vmatpush1.bf16.msra.mxu0 %v563
      %649 = vmatprep.subr.bf16.mxu0 0
      %650 = vmatpush1.bf16.msra.mxu0 %v564
      %651 = vmatprep.subr.bf16.mxu0 0
      %652 = vmatpush1.bf16.msra.mxu0 %v565
      %653 = vmatprep.subr.bf16.mxu0 0
      %654 = vmatpush1.bf16.msra.mxu0 %v566
      %655 = vmatprep.subr.bf16.mxu0 0
      %656 = vmatpush1.bf16.msra.mxu0 %v567
      %657 = vmatprep.subr.bf16.mxu0 0
      %658 = vmatpush1.bf16.msra.mxu0 %v568
      %659 = vmatprep.subr.bf16.mxu0 0
      %660 = vmatpush1.bf16.msra.mxu0 %v569
      %661 = vmatprep.subr.bf16.mxu0 0
      %662 = vmatpush1.bf16.msra.mxu0 %v570
      %663 = vmatprep.mubr.bf16.mxu0 %v403
      %664 = vmatmul.mubr.bf16.gmra.mrb[0].mxu0 %v402
      %v665 = vpop.f32.mrb[0].mxu0
      %v666 = vadd.f32 %v384, %v665
      %v667 = vpop.f32.mrb[0].mxu0
      %v668 = vpop.f32.mrb[0].mxu0
      %v669 = vadd.f32 %v384, %v668
      %v670 = vpop.f32.mrb[0].mxu0
      %671 = vdwg.mxu0
      %672 = vmatprep.subr.bf16.mxu0 0
      %673 = vmatpush1.bf16.msra.mxu0 %v571
      %674 = vmatprep.subr.bf16.mxu0 0
      %675 = vmatpush1.bf16.msra.mxu0 %v572
      %676 = vmatprep.subr.bf16.mxu0 0
      %677 = vmatpush1.bf16.msra.mxu0 %v573
      %678 = vmatprep.subr.bf16.mxu0 0
      %679 = vmatpush1.bf16.msra.mxu0 %v574
      %680 = vmatprep.subr.bf16.mxu0 0
      %681 = vmatpush1.bf16.msra.mxu0 %v575
      %682 = vmatprep.subr.bf16.mxu0 0
      %683 = vmatpush1.bf16.msra.mxu0 %v576
      %684 = vmatprep.subr.bf16.mxu0 0
      %685 = vmatpush1.bf16.msra.mxu0 %v577
      %686 = vmatprep.subr.bf16.mxu0 0
      %687 = vmatpush1.bf16.msra.mxu0 %v578
      %688 = vmatprep.subr.bf16.mxu0 0
      %689 = vmatpush1.bf16.msra.mxu0 %v579
      %690 = vmatprep.subr.bf16.mxu0 0
      %691 = vmatpush1.bf16.msra.mxu0 %v580
      %692 = vmatprep.subr.bf16.mxu0 0
      %693 = vmatpush1.bf16.msra.mxu0 %v581
      %694 = vmatprep.subr.bf16.mxu0 0
      %695 = vmatpush1.bf16.msra.mxu0 %v582
      %696 = vmatprep.subr.bf16.mxu0 0
      %697 = vmatpush1.bf16.msra.mxu0 %v583
      %698 = vmatprep.subr.bf16.mxu0 0
      %699 = vmatpush1.bf16.msra.mxu0 %v584
      %700 = vmatprep.subr.bf16.mxu0 0
      %701 = vmatpush1.bf16.msra.mxu0 %v585
      %702 = vmatprep.subr.bf16.mxu0 0
      %703 = vmatpush1.bf16.msra.mxu0 %v586
      %704 = vmatprep.mubr.bf16.mxu0 %v405
      %705 = vmatmul.mubr.bf16.gmra.mrb[0].mxu0 %v404
      %v706 = vpop.f32.mrb[0].mxu0
      %v707 = vadd.f32 %v666, %v706
      %v708 = vpop.f32.mrb[0].mxu0
      %v709 = vpop.f32.mrb[0].mxu0
      %v710 = vadd.f32 %v669, %v709
      %v711 = vpop.f32.mrb[0].mxu0
      %712 = vdwg.mxu0
      %713 = vmatprep.subr.bf16.mxu0 0
      %714 = vmatpush1.bf16.msra.mxu0 %v587
      %715 = vmatprep.subr.bf16.mxu0 0
      %716 = vmatpush1.bf16.msra.mxu0 %v588
      %717 = vmatprep.subr.bf16.mxu0 0
      %718 = vmatpush1.bf16.msra.mxu0 %v589
      %719 = vmatprep.subr.bf16.mxu0 0
      %720 = vmatpush1.bf16.msra.mxu0 %v590
      %721 = vmatprep.subr.bf16.mxu0 0
      %722 = vmatpush1.bf16.msra.mxu0 0
      %723 = vmatprep.subr.bf16.mxu0 0
      %724 = vmatpush1.bf16.msra.mxu0 0
      %725 = vmatprep.subr.bf16.mxu0 0
      %726 = vmatpush1.bf16.msra.mxu0 0
      %727 = vmatprep.subr.bf16.mxu0 0
      %728 = vmatpush1.bf16.msra.mxu0 0
      %729 = vmatprep.subr.bf16.mxu0 0
      %730 = vmatpush1.bf16.msra.mxu0 0
      %731 = vmatprep.subr.bf16.mxu0 0
      %732 = vmatpush1.bf16.msra.mxu0 0
      %733 = vmatprep.subr.bf16.mxu0 0
      %734 = vmatpush1.bf16.msra.mxu0 0
      %735 = vmatprep.subr.bf16.mxu0 0
      %736 = vmatpush1.bf16.msra.mxu0 0
      %737 = vmatprep.subr.bf16.mxu0 0
      %738 = vmatpush1.bf16.msra.mxu0 0
      %739 = vmatprep.subr.bf16.mxu0 0
      %740 = vmatpush1.bf16.msra.mxu0 0
      %741 = vmatprep.subr.bf16.mxu0 0
      %742 = vmatpush1.bf16.msra.mxu0 0
      %743 = vmatprep.subr.bf16.mxu0 0
      %744 = vmatpush1.bf16.msra.mxu0 0
      %745 = vmatprep.mubr.bf16.mxu0 0
      %746 = vmatmul.mubr.bf16.gmra.mrb[0].mxu0 %v629
      %v747 = vpop.f32.mrb[0].mxu0
      %v748 = vadd.f32 %v707, %v747
      %v749 = vpop.f32.mrb[0].mxu0
      %v750 = vpop.f32.mrb[0].mxu0
      %v751 = vadd.f32 %v710, %v750
      %v752 = vpop.f32.mrb[0].mxu0
      %753 = vdwg.mxu0
      %v754 = vmul.f32 %v748, 0.2
      %v755 = vmul.f32 %v751, 0.2
      %v756 = vmax.f32 %v748, %v754
      %v757 = vmax.f32 %v751, %v755
      %v758 = vpack.c.bf16 %v757, %v756
      %v760 = vunpack.c.l.b16 %v758
      %v761 = vunpack.c.h.b16 %v758
      %v762 = vpack.c.b16 %v760, %v760
      %v763 = vpack.c.b16 %v761, %v761
      %766 = vst [vmem:[%s286] sm:$0xf] %v762
      %767 = vst [vmem:[%s286 + $0x4] sm:$0xf] %v763
      %v768 = vadd.f32 %v756, %v757
      %v769 = vrot.slane %v768, 4
      %v770 = vadd.f32 %v768, %v769
      %v771 = vrot.slane %v770, 2
      %v772 = vadd.f32 %v770, %v771
      %v773 = vrot.slane %v772, 1
      %v774 = vadd.f32 %v772, %v773
      %775 = vst [vmem:[%s293] sm:$0x1] %v774
      %v776 = vmul.f32 %v756, %v756
      %v777 = vmul.f32 %v757, %v757
      %v778 = vadd.f32 %v776, %v777
      %v779 = vrot.slane %v778, 4
      %v780 = vadd.f32 %v778, %v779
      %v781 = vrot.slane %v780, 2
      %v782 = vadd.f32 %v780, %v781
      %v783 = vrot.slane %v782, 1
      %v784 = vadd.f32 %v782, %v783
      %785 = vst [vmem:[%s299] sm:$0x1] %v784
      %s786 = smul.u32 2, %s22
      %p787 = scmp.lt.s32.totalorder %s21, 1
      %s788 = scalar_select %p787, %s21, 1
      %p789 = scmp.lt.s32.totalorder %s786, 1
      %s790 = scalar_select %p789, %s786, 1
      %s791 = smul.addr %s788, 2
      %s792 = sadd.s32 %s790, %s791
      %s793 = smul.addr %s792, 4
      %s794 = scalar_lea.vmem %s3, %s793
      %p795 = scmp.lt.s32.totalorder %s21, 1
      %s796 = scalar_select %p795, %s21, 1
      %p797 = scmp.lt.s32.totalorder %s22, 0
      %s798 = scalar_select %p797, %s22, 0
      %s799 = sadd.s32 %s798, %s796
      %s800 = scalar_lea.vmem %s4, %s799
      %p801 = scmp.lt.s32.totalorder %s21, 1
      %s802 = scalar_select %p801, %s21, 1
      %p803 = scmp.lt.s32.totalorder %s22, 0
      %s804 = scalar_select %p803, %s22, 0
      %s805 = sadd.s32 %s804, %s802
      %s806 = scalar_lea.vmem %s5, %s805
      // Predicated region
      $region33: #{_lambda_.7} parent=31 // pred_check
        %p807 = pneg %p119
      $region34: #{_lambda_.7} parent=31 // pred_check_branch
        %809 = sbr.rel (%p807) target = $region36
      $region35: #{_lambda_.7} parent=31 // pred_region
        %s810 = smul.u32 2, %s22
      $region36: #{_lambda_.7} parent=31 // pred_fallthru
        _
      // Predicated region
      $region37: #{_lambda_.7} parent=31 // pred_check
        %p811 = pneg %p147
      $region38: #{_lambda_.7} parent=31 // pred_check_branch
        %813 = sbr.rel (%p811) target = $region40
      $region39: #{_lambda_.7} parent=31 // pred_region
        _
      $region40: #{_lambda_.7} parent=31 // pred_fallthru
        _
      // Predicated region
      $region41: #{_lambda_.7} parent=31 // pred_check
        %p814 = pneg %p175
      $region42: #{_lambda_.7} parent=31 // pred_check_branch
        %816 = sbr.rel (%p814) target = $region44
      $region43: #{_lambda_.7} parent=31 // pred_region
        _
      $region44: #{_lambda_.7} parent=31 // pred_fallthru
        _
    $region32: #{_lambda_.7} parent=5 // pred_fallthru
      _
    %p817 = scmp.le.s32.totalorder 2, %s12
    // Predicated region
    $region45: #{_lambda_.7} parent=5 // pred_check
      %p818 = pneg %p817
    $region46: #{_lambda_.7} parent=5 // pred_check_branch
      %820 = sbr.rel (%p818) target = $region48
    $region47: #{_lambda_.7} parent=5 // pred_region
      %s821 = ssub.s32 %s12, 2
      // Predicated region
      $region49: #{_lambda_.7} parent=47 // pred_check
        %p822 = pneg %p125
      $region50: #{_lambda_.7} parent=47 // pred_check_branch
        %824 = sbr.rel (%p822) target = $region52
      $region51: #{_lambda_.7} parent=47 // pred_region
        %s825 = smul.u32 2, %s24
        %p826 = scmp.lt.s32.totalorder %s23, 1
        %s827 = scalar_select %p826, %s23, 1
        %p828 = scmp.lt.s32.totalorder %s825, 1
        %s829 = scalar_select %p828, %s825, 1
        %s830 = smul.addr %s827, 2
        %s831 = sadd.s32 %s829, %s830
        %s832 = smul.addr %s831, 4
        %s833 = scalar_lea.vmem %s3, %s832
      $region52: #{_lambda_.7} parent=47 // pred_fallthru
        _
      // Predicated region
      $region53: #{_lambda_.7} parent=47 // pred_check
        %p834 = pneg %p153
      $region54: #{_lambda_.7} parent=47 // pred_check_branch
        %836 = sbr.rel (%p834) target = $region56
      $region55: #{_lambda_.7} parent=47 // pred_region
        %p837 = scmp.lt.s32.totalorder %s23, 1
        %s838 = scalar_select %p837, %s23, 1
        %p839 = scmp.lt.s32.totalorder %s24, 0
        %s840 = scalar_select %p839, %s24, 0
        %s841 = sadd.s32 %s840, %s838
        %s842 = scalar_lea.vmem %s4, %s841
      $region56: #{_lambda_.7} parent=47 // pred_fallthru
        _
      // Predicated region
      $region57: #{_lambda_.7} parent=47 // pred_check
        %p843 = pneg %p181
      $region58: #{_lambda_.7} parent=47 // pred_check_branch
        %845 = sbr.rel (%p843) target = $region60
      $region59: #{_lambda_.7} parent=47 // pred_region
        %p846 = scmp.lt.s32.totalorder %s23, 1
        %s847 = scalar_select %p846, %s23, 1
        %p848 = scmp.lt.s32.totalorder %s24, 0
        %s849 = scalar_select %p848, %s24, 0
        %s850 = sadd.s32 %s849, %s847
        %s851 = scalar_lea.vmem %s5, %s850
      $region60: #{_lambda_.7} parent=47 // pred_fallthru
        _
    $region48: #{_lambda_.7} parent=5 // pred_fallthru
      _
  $region6: #{_lambda_.7} parent=0 // loop_footer
    %s16 = sadd.s32 1, %s12
  $region7: #{_lambda_.7} parent=0 // loop_footer_branch
    %11 = sbr.rel target = $region3
  $region8: #{_lambda_.7} parent=0 // loop_exit
    _

// kernel: _lambda_.8
$region0: #{_lambda_.8}
  #allocation0 [shape = 'u32[]', space=smem, size = 0x4, offset = 0x4, fixed_abs, tag = 'smem constant byte address 0x4 - core index']
  #allocation1 [shape = 'u32[144,128]{1,0:T(1,128)}', space=vmem, size = 0x12000, scoped, tag = 'internal scratch']
  %s0 = inlined_call_operand.vmem [shape: bf16[2,16,576], index: 0, kind: input, shape index: {}]
  %s1 = inlined_call_operand.vmem [shape: bf16[576,128], index: 1, kind: input, shape index: {}]
  %s2 = inlined_call_operand.vmem [shape: f32[1,128], index: 2, kind: input, shape index: {}]
  %s3 = inlined_call_operand.vmem [shape: bf16[2,16,128], index: 3, kind: output, shape index: {0}]
  %s4 = inlined_call_operand.vmem [shape: f32[2,1,1,128], index: 4, kind: output, shape index: {1}]
  %s5 = inlined_call_operand.vmem [shape: f32[2,1,1,128], index: 5, kind: output, shape index: {2}]
  %6 = xla_tuple %s3, %s4, %s5
  %s7 = sld [smem:[#allocation0]]
  $region61: #{_lambda_.8} parent=0
    _
  %s9 = ssub.s32 1, %s7
  %s10 = scalar_select 0, %s9, %s7
  loop: start=0, step=1, limit=4
  $region2: #{_lambda_.8} parent=0 // loop_pre_header
    _
  $region3: #{_lambda_.8} parent=0 // loop_header
    %s12 = sphi 0, %s16
    %p13 = scmp.ge.s32.totalorder %s12, 4
    %s19 = sphi 0, %s31
    %s20 = sphi 0, %s27
    %s21 = sphi 0, %s19
    %s22 = sphi 0, %s20
    %s23 = sphi 0, %s21
    %s24 = sphi 0, %s22
    %s36 = sphi 0, %s38
    %s39 = sphi 0, %s36
    %s40 = sphi 0, %s39
    %s56 = sphi 0, %s40
    %s60 = sphi 0, %s60
    %s62 = sphi 0, %s60
    %s63 = sphi 0, %s62
    %s77 = sphi 0, %s63
    %s81 = sphi 0, %s81
    %s83 = sphi 0, %s81
    %s84 = sphi 0, %s83
    %s98 = sphi 0, %s84
    %s106 = sphi 0, %s108
    %s109 = sphi 0, %s106
    %s110 = sphi 0, %s109
    %s126 = sphi 0, %s110
    %s134 = sphi 0, %s136
    %s137 = sphi 0, %s134
    %s138 = sphi 0, %s137
    %s154 = sphi 0, %s138
    %s162 = sphi 0, %s164
    %s165 = sphi 0, %s162
    %s166 = sphi 0, %s165
    %s182 = sphi 0, %s166
  $region4: #{_lambda_.8} parent=0 // loop_header_branch
    %15 = sbr.rel (%p13) target = $region8
  $region5: #{_lambda_.8} parent=0 // loop_body
    %s17 = ssub.s32 %s12, 1
    %s18 = ssub.s32 %s12, 2
    %s25 = sadd.s32 1, %s20
    %p26 = scmp.ge.s32.totalorder %s25, 1
    %s27 = scalar_select %p26, 0, %s25
    %s28 = sadd.s32 1, %s19
    %s29 = scalar_select %p26, %s28, %s19
    %p30 = scmp.ge.s32.totalorder %s29, 2
    %s31 = scalar_select %p30, 0, %s29
    %s32 = ssub.s32 %s19, %s31
    %s33 = ssub.s32 %s20, %s27
    %s34 = sor.u32 %s32, %s33
    %p35 = scmp.eq.s32.totalorder %s34, 0
    %s37 = sadd.s32 %s36, 1
    %s38 = scalar_select %p35, %s36, %s37
    %p41 = pneg %p35
    %p42 = scmp.eq.s32.totalorder %s12, 1
    %p43 = por %p41, %p42
    %p44 = scmp.ne.s32.totalorder %s36, %s39
    %p45 = scmp.eq.s32.totalorder %s12, 0
    %p46 = por %p44, %p45
    %p47 = scmp.ne.s32.totalorder %s36, %s39
    %p48 = scmp.eq.s32.totalorder %s17, 1
    %p49 = por %p47, %p48
    %p50 = scmp.ne.s32.totalorder %s39, %s40
    %p51 = scmp.eq.s32.totalorder %s17, 0
    %p52 = por %p50, %p51
    %p53 = scmp.ne.s32.totalorder %s39, %s40
    %p54 = scmp.eq.s32.totalorder %s18, 1
    %p55 = por %p53, %p54
    %p57 = scmp.ne.s32.totalorder %s40, %s56
    %p58 = scmp.eq.s32.totalorder %s18, 0
    %p59 = por %p57, %p58
    %s61 = sadd.s32 %s60, 1
    %p64 = scmp.eq.s32.totalorder %s12, 1
    %p65 = scmp.ne.s32.totalorder %s60, %s62
    %p66 = scmp.eq.s32.totalorder %s12, 0
    %p67 = por %p65, %p66
    %p68 = scmp.ne.s32.totalorder %s60, %s62
    %p69 = scmp.eq.s32.totalorder %s17, 1
    %p70 = por %p68, %p69
    %p71 = scmp.ne.s32.totalorder %s62, %s63
    %p72 = scmp.eq.s32.totalorder %s17, 0
    %p73 = por %p71, %p72
    %p74 = scmp.ne.s32.totalorder %s62, %s63
    %p75 = scmp.eq.s32.totalorder %s18, 1
    %p76 = por %p74, %p75
    %p78 = scmp.ne.s32.totalorder %s63, %s77
    %p79 = scmp.eq.s32.totalorder %s18, 0
    %p80 = por %p78, %p79
    %s82 = sadd.s32 %s81, 1
    %p85 = scmp.eq.s32.totalorder %s12, 1
    %p86 = scmp.ne.s32.totalorder %s81, %s83
    %p87 = scmp.eq.s32.totalorder %s12, 0
    %p88 = por %p86, %p87
    %p89 = scmp.ne.s32.totalorder %s81, %s83
    %p90 = scmp.eq.s32.totalorder %s17, 1
    %p91 = por %p89, %p90
    %p92 = scmp.ne.s32.totalorder %s83, %s84
    %p93 = scmp.eq.s32.totalorder %s17, 0
    %p94 = por %p92, %p93
    %p95 = scmp.ne.s32.totalorder %s83, %s84
    %p96 = scmp.eq.s32.totalorder %s18, 1
    %p97 = por %p95, %p96
    %p99 = scmp.ne.s32.totalorder %s84, %s98
    %p100 = scmp.eq.s32.totalorder %s18, 0
    %p101 = por %p99, %p100
    %s102 = ssub.s32 %s19, %s31
    %s103 = ssub.s32 %s20, %s27
    %s104 = sor.u32 %s102, %s103
    %p105 = scmp.eq.s32.totalorder %s104, 0
    %s107 = sadd.s32 %s106, 1
    %s108 = scalar_select %p105, %s106, %s107
    %p111 = pneg %p105
    %p112 = scmp.eq.s32.totalorder %s12, 1
    %p113 = por %p111, %p112
    %p114 = scmp.ne.s32.totalorder %s106, %s109
    %p115 = scmp.eq.s32.totalorder %s12, 0
    %p116 = por %p114, %p115
    %p117 = scmp.ne.s32.totalorder %s106, %s109
    %p118 = scmp.eq.s32.totalorder %s17, 1
    %p119 = por %p117, %p118
    %p120 = scmp.ne.s32.totalorder %s109, %s110
    %p121 = scmp.eq.s32.totalorder %s17, 0
    %p122 = por %p120, %p121
    %p123 = scmp.ne.s32.totalorder %s109, %s110
    %p124 = scmp.eq.s32.totalorder %s18, 1
    %p125 = por %p123, %p124
    %p127 = scmp.ne.s32.totalorder %s110, %s126
    %p128 = scmp.eq.s32.totalorder %s18, 0
    %p129 = por %p127, %p128
    %s130 = ssub.s32 %s19, %s31
    %s131 = ssub.s32 %s20, %s27
    %s132 = sor.u32 %s130, %s131
    %p133 = scmp.eq.s32.totalorder %s132, 0
    %s135 = sadd.s32 %s134, 1
    %s136 = scalar_select %p133, %s134, %s135
    %p139 = pneg %p133
    %p140 = scmp.eq.s32.totalorder %s12, 1
    %p141 = por %p139, %p140
    %p142 = scmp.ne.s32.totalorder %s134, %s137
    %p143 = scmp.eq.s32.totalorder %s12, 0
    %p144 = por %p142, %p143
    %p145 = scmp.ne.s32.totalorder %s134, %s137
    %p146 = scmp.eq.s32.totalorder %s17, 1
    %p147 = por %p145, %p146
    %p148 = scmp.ne.s32.totalorder %s137, %s138
    %p149 = scmp.eq.s32.totalorder %s17, 0
    %p150 = por %p148, %p149
    %p151 = scmp.ne.s32.totalorder %s137, %s138
    %p152 = scmp.eq.s32.totalorder %s18, 1
    %p153 = por %p151, %p152
    %p155 = scmp.ne.s32.totalorder %s138, %s154
    %p156 = scmp.eq.s32.totalorder %s18, 0
    %p157 = por %p155, %p156
    %s158 = ssub.s32 %s19, %s31
    %s159 = ssub.s32 %s20, %s27
    %s160 = sor.u32 %s158, %s159
    %p161 = scmp.eq.s32.totalorder %s160, 0
    %s163 = sadd.s32 %s162, 1
    %s164 = scalar_select %p161, %s162, %s163
    %p167 = pneg %p161
    %p168 = scmp.eq.s32.totalorder %s12, 1
    %p169 = por %p167, %p168
    %p170 = scmp.ne.s32.totalorder %s162, %s165
    %p171 = scmp.eq.s32.totalorder %s12, 0
    %p172 = por %p170, %p171
    %p173 = scmp.ne.s32.totalorder %s162, %s165
    %p174 = scmp.eq.s32.totalorder %s17, 1
    %p175 = por %p173, %p174
    %p176 = scmp.ne.s32.totalorder %s165, %s166
    %p177 = scmp.eq.s32.totalorder %s17, 0
    %p178 = por %p176, %p177
    %p179 = scmp.ne.s32.totalorder %s165, %s166
    %p180 = scmp.eq.s32.totalorder %s18, 1
    %p181 = por %p179, %p180
    %p183 = scmp.ne.s32.totalorder %s166, %s182
    %p184 = scmp.eq.s32.totalorder %s18, 0
    %p185 = por %p183, %p184
    %p186 = scmp.le.s32.totalorder 1, %s12
    %p187 = scmp.lt.s32.totalorder %s12, 3
    %p188 = pnand %p186, %p187
    %p189 = pneg %p188
    // Predicated region
    $region9: #{_lambda_.8} parent=5 // pred_check
      _
    $region10: #{_lambda_.8} parent=5 // pred_check_branch
      %191 = sbr.rel (%p188) target = $region12
    $region11: #{_lambda_.8} parent=5 // pred_region
      %s192 = ssub.s32 %s12, 1
      // Predicated region
      $region13: #{_lambda_.8} parent=11 // pred_check
        %p193 = pneg %p73
      $region14: #{_lambda_.8} parent=11 // pred_check_branch
        %195 = sbr.rel (%p193) target = $region16
      $region15: #{_lambda_.8} parent=11 // pred_region
        _
      $region16: #{_lambda_.8} parent=11 // pred_fallthru
        _
      // Predicated region
      $region17: #{_lambda_.8} parent=11 // pred_check
        %p196 = pneg %p94
      $region18: #{_lambda_.8} parent=11 // pred_check_branch
        %198 = sbr.rel (%p196) target = $region20
      $region19: #{_lambda_.8} parent=11 // pred_region
        _
      $region20: #{_lambda_.8} parent=11 // pred_fallthru
        _
    $region12: #{_lambda_.8} parent=5 // pred_fallthru
      _
    %p199 = scmp.lt.s32.totalorder %s12, 2
    // Predicated region
    $region21: #{_lambda_.8} parent=5 // pred_check
      %p200 = pneg %p199
    $region22: #{_lambda_.8} parent=5 // pred_check_branch
      %202 = sbr.rel (%p200) target = $region24
    $region23: #{_lambda_.8} parent=5 // pred_region
      // Predicated region
      $region25: #{_lambda_.8} parent=23 // pred_check
        %p203 = pneg %p46
      $region26: #{_lambda_.8} parent=23 // pred_check_branch
        %205 = sbr.rel (%p203) target = $region28
      $region27: #{_lambda_.8} parent=23 // pred_region
        %s206 = smul.u32 2, %s20
        %p207 = scmp.lt.s32.totalorder %s19, 1
        %s208 = scalar_select %p207, %s19, 1
        %p209 = scmp.lt.s32.totalorder %s206, 1
        %s210 = scalar_select %p209, %s206, 1
        %s211 = smul.addr %s210, 5
        %s212 = smul.addr %s208, 10
        %s213 = sadd.s32 %s211, %s212
        %s214 = smul.addr %s213, 4
        %s215 = scalar_lea.vmem %s0, %s214
        %s216 = smul.u32 2, %s20
      $region28: #{_lambda_.8} parent=23 // pred_fallthru
        _
    $region24: #{_lambda_.8} parent=5 // pred_fallthru
      _
    %p217 = scmp.le.s32.totalorder 1, %s12
    %p218 = scmp.lt.s32.totalorder %s12, 3
    %p219 = pnand %p217, %p218
    %p220 = pneg %p219
    // Predicated region
    $region29: #{_lambda_.8} parent=5 // pred_check
      _
    $region30: #{_lambda_.8} parent=5 // pred_check_branch
      %222 = sbr.rel (%p219) target = $region32
    $region31: #{_lambda_.8} parent=5 // pred_region
      %s223 = ssub.s32 %s12, 1
      %s224 = smul.u32 2, %s22
      %p225 = scmp.lt.s32.totalorder %s21, 1
      %s226 = scalar_select %p225, %s21, 1
      %p227 = scmp.lt.s32.totalorder %s224, 1
      %s228 = scalar_select %p227, %s224, 1
      %s229 = smul.addr %s228, 5
      %s230 = smul.addr %s226, 10
      %s231 = sadd.s32 %s229, %s230
      %s232 = smul.addr %s231, 4
      %s233 = scalar_lea.vmem %s0, %s232
      %p234 = pneg %p52
      %p235 = pneg %p49
      %p236 = pneg %p73
      %p237 = pneg %p70
      %p238 = pneg %p94
      %p239 = pneg %p91
      %p240 = pneg %p122
      %p241 = pneg %p119
      %s242 = smul.u32 2, %s22
      %p243 = scmp.lt.s32.totalorder %s21, 1
      %s244 = scalar_select %p243, %s21, 1
      %p245 = scmp.lt.s32.totalorder %s242, 1
      %s246 = scalar_select %p245, %s242, 1
      %s247 = smul.addr %s244, 2
      %s248 = sadd.s32 %s246, %s247
      %s249 = smul.addr %s248, 4
      %s250 = scalar_lea.vmem %s3, %s249
      %p251 = pneg %p150
      %p252 = pneg %p147
      %p253 = scmp.lt.s32.totalorder %s21, 1
      %s254 = scalar_select %p253, %s21, 1
      %p255 = scmp.lt.s32.totalorder %s22, 0
      %s256 = scalar_select %p255, %s22, 0
      %s257 = sadd.s32 %s256, %s254
      %s258 = scalar_lea.vmem %s4, %s257
      %p259 = pneg %p178
      %p260 = pneg %p175
      %p261 = scmp.lt.s32.totalorder %s21, 1
      %s262 = scalar_select %p261, %s21, 1
      %p263 = scmp.lt.s32.totalorder %s22, 0
      %s264 = scalar_select %p263, %s22, 0
      %s265 = sadd.s32 %s264, %s262
      %s266 = scalar_lea.vmem %s5, %s265
      %s267 = smul.u32 2, %s22
      %p268 = scmp.lt.s32.totalorder %s21, 1
      %s269 = scalar_select %p268, %s21, 1
      %p270 = scmp.lt.s32.totalorder %s267, 1
      %s271 = scalar_select %p270, %s267, 1
      %s272 = smul.addr %s271, 5
      %s273 = smul.addr %s269, 10
      %s274 = sadd.s32 %s272, %s273
      %s275 = smul.addr %s274, 4
      %s276 = scalar_lea.vmem %s0, %s275
      %s277 = smul.u32 2, %s22
      %s278 = smul.u32 2, %s22
      %p279 = scmp.lt.s32.totalorder %s21, 1
      %s280 = scalar_select %p279, %s21, 1
      %p281 = scmp.lt.s32.totalorder %s278, 1
      %s282 = scalar_select %p281, %s278, 1
      %s283 = smul.addr %s280, 2
      %s284 = sadd.s32 %s282, %s283
      %s285 = smul.addr %s284, 4
      %s286 = scalar_lea.vmem %s3, %s285
      %s287 = smul.u32 2, %s22
      %p288 = scmp.lt.s32.totalorder %s21, 1
      %s289 = scalar_select %p288, %s21, 1
      %p290 = scmp.lt.s32.totalorder %s22, 0
      %s291 = scalar_select %p290, %s22, 0
      %s292 = sadd.s32 %s291, %s289
      %s293 = scalar_lea.vmem %s4, %s292
      %p294 = scmp.lt.s32.totalorder %s21, 1
      %s295 = scalar_select %p294, %s21, 1
      %p296 = scmp.lt.s32.totalorder %s22, 0
      %s297 = scalar_select %p296, %s22, 0
      %s298 = sadd.s32 %s297, %s295
      %s299 = scalar_lea.vmem %s5, %s298
      %v301 = vld [vmem:[%s276] sm:$0xff]
      %v302 = vld [vmem:[%s276 + $0x8] sm:$0xff]
      %v303 = vld [vmem:[%s276 + $0x10] sm:$0xf]
      %v304 = vld [vmem:[%s276 + $0x14] sm:$0xff]
      %v305 = vld [vmem:[%s276 + $0x1c] sm:$0xff]
      %v306 = vld [vmem:[%s276 + $0x24] sm:$0xf]
      %v307 = vld [vmem:[%s1] sm:$0xf]
      %v308 = vld [vmem:[%s1 + $0x4] sm:$0xf]
      %v309 = vld [vmem:[%s1 + $0x8] sm:$0xf]
      %v310 = vld [vmem:[%s1 + $0xc] sm:$0xf]
      %v311 = vld [vmem:[%s1 + $0x10] sm:$0xf]
      %v312 = vld [vmem:[%s1 + $0x14] sm:$0xf]
      %v313 = vld [vmem:[%s1 + $0x18] sm:$0xf]
      %v314 = vld [vmem:[%s1 + $0x1c] sm:$0xf]
      %v315 = vld [vmem:[%s1 + $0x20] sm:$0xf]
      %v316 = vld [vmem:[%s1 + $0x24] sm:$0xf]
      %v317 = vld [vmem:[%s1 + $0x28] sm:$0xf]
      %v318 = vld [vmem:[%s1 + $0x2c] sm:$0xf]
      %v319 = vld [vmem:[%s1 + $0x30] sm:$0xf]
      %v320 = vld [vmem:[%s1 + $0x34] sm:$0xf]
      %v321 = vld [vmem:[%s1 + $0x38] sm:$0xf]
      %v322 = vld [vmem:[%s1 + $0x3c] sm:$0xf]
      %v323 = vld [vmem:[%s1 + $0x40] sm:$0xf]
      %v324 = vld [vmem:[%s1 + $0x44] sm:$0xf]
      %v325 = vld [vmem:[%s1 + $0x48] sm:$0xf]
      %v326 = vld [vmem:[%s1 + $0x4c] sm:$0xf]
      %v327 = vld [vmem:[%s1 + $0x50] sm:$0xf]
      %v328 = vld [vmem:[%s1 + $0x54] sm:$0xf]
      %v329 = vld [vmem:[%s1 + $0x58] sm:$0xf]
      %v330 = vld [vmem:[%s1 + $0x5c] sm:$0xf]
      %v331 = vld [vmem:[%s1 + $0x60] sm:$0xf]
      %v332 = vld [vmem:[%s1 + $0x64] sm:$0xf]
      %v333 = vld [vmem:[%s1 + $0x68] sm:$0xf]
      %v334 = vld [vmem:[%s1 + $0x6c] sm:$0xf]
      %v335 = vld [vmem:[%s1 + $0x70] sm:$0xf]
      %v336 = vld [vmem:[%s1 + $0x74] sm:$0xf]
      %v337 = vld [vmem:[%s1 + $0x78] sm:$0xf]
      %v338 = vld [vmem:[%s1 + $0x7c] sm:$0xf]
      %v339 = vld [vmem:[%s1 + $0x80] sm:$0xf]
      %v340 = vld [vmem:[%s1 + $0x84] sm:$0xf]
      %v341 = vld [vmem:[%s1 + $0x88] sm:$0xf]
      %v342 = vld [vmem:[%s1 + $0x8c] sm:$0xf]
      %v343 = vld [vmem:[%s1 + $0x90] sm:$0xf]
      %v344 = vld [vmem:[%s1 + $0x94] sm:$0xf]
      %v345 = vld [vmem:[%s1 + $0x98] sm:$0xf]
      %v346 = vld [vmem:[%s1 + $0x9c] sm:$0xf]
      %v347 = vld [vmem:[%s1 + $0xa0] sm:$0xf]
      %v348 = vld [vmem:[%s1 + $0xa4] sm:$0xf]
      %v349 = vld [vmem:[%s1 + $0xa8] sm:$0xf]
      %v350 = vld [vmem:[%s1 + $0xac] sm:$0xf]
      %v351 = vld [vmem:[%s1 + $0xb0] sm:$0xf]
      %v352 = vld [vmem:[%s1 + $0xb4] sm:$0xf]
      %v353 = vld [vmem:[%s1 + $0xb8] sm:$0xf]
      %v354 = vld [vmem:[%s1 + $0xbc] sm:$0xf]
      %v355 = vld [vmem:[%s1 + $0xc0] sm:$0xf]
      %v356 = vld [vmem:[%s1 + $0xc4] sm:$0xf]
      %v357 = vld [vmem:[%s1 + $0xc8] sm:$0xf]
      %v358 = vld [vmem:[%s1 + $0xcc] sm:$0xf]
      %v359 = vld [vmem:[%s1 + $0xd0] sm:$0xf]
      %v360 = vld [vmem:[%s1 + $0xd4] sm:$0xf]
      %v361 = vld [vmem:[%s1 + $0xd8] sm:$0xf]
      %v362 = vld [vmem:[%s1 + $0xdc] sm:$0xf]
      %v363 = vld [vmem:[%s1 + $0xe0] sm:$0xf]
      %v364 = vld [vmem:[%s1 + $0xe4] sm:$0xf]
      %v365 = vld [vmem:[%s1 + $0xe8] sm:$0xf]
      %v366 = vld [vmem:[%s1 + $0xec] sm:$0xf]
      %v367 = vld [vmem:[%s1 + $0xf0] sm:$0xf]
      %v368 = vld [vmem:[%s1 + $0xf4] sm:$0xf]
      %v369 = vld [vmem:[%s1 + $0xf8] sm:$0xf]
      %v370 = vld [vmem:[%s1 + $0xfc] sm:$0xf]
      %v371 = vld [vmem:[%s1 + $0x100] sm:$0xf]
      %v372 = vld [vmem:[%s1 + $0x104] sm:$0xf]
      %v373 = vld [vmem:[%s1 + $0x108] sm:$0xf]
      %v374 = vld [vmem:[%s1 + $0x10c] sm:$0xf]
      %v375 = vld [vmem:[%s1 + $0x110] sm:$0xf]
      %v376 = vld [vmem:[%s1 + $0x114] sm:$0xf]
      %v377 = vld [vmem:[%s1 + $0x118] sm:$0xf]
      %v378 = vld [vmem:[%s1 + $0x11c] sm:$0xf]
      %v379 = vld [vmem:[%s2] sm:$0x1]
      %v381 = vlaneseq
      %v382 = vshrl.u32 %v381, 7
      %v383 = vsub.s32 0, %v382
      %v384 = vrot.slane %v379, %v383
      %v392 = vunpack.c.l.b16 %v301
      %v393 = vunpack.c.h.b16 %v301
      %v394 = vunpack.c.l.b16 %v302
      %v395 = vunpack.c.h.b16 %v302
      %v396 = vunpack.c.l.b16 %v303
      %v397 = vunpack.c.l.b16 %v304
      %v398 = vunpack.c.h.b16 %v304
      %v399 = vunpack.c.l.b16 %v305
      %v400 = vunpack.c.h.b16 %v305
      %v401 = vunpack.c.l.b16 %v306
      %v402 = vpack.c.b16 %v397, %v392
      %v403 = vpack.c.b16 %v398, %v393
      %v404 = vpack.c.b16 %v399, %v394
      %v405 = vpack.c.b16 %v400, %v395
      %v406 = vpack.c.b16 %v401, %v396
      %v483 = vunpack.c.l.b16 %v307
      %v484 = vunpack.c.l.b16 %v308
      %v485 = vunpack.c.l.b16 %v309
      %v486 = vunpack.c.l.b16 %v310
      %v487 = vunpack.c.l.b16 %v311
      %v488 = vunpack.c.l.b16 %v312
      %v489 = vunpack.c.l.b16 %v313
      %v490 = vunpack.c.l.b16 %v314
      %v491 = vunpack.c.l.b16 %v315
      %v492 = vunpack.c.l.b16 %v316
      %v493 = vunpack.c.l.b16 %v317
      %v494 = vunpack.c.l.b16 %v318
      %v495 = vunpack.c.l.b16 %v319
      %v496 = vunpack.c.l.b16 %v320
      %v497 = vunpack.c.l.b16 %v321
      %v498 = vunpack.c.l.b16 %v322
      %v499 = vunpack.c.l.b16 %v323
      %v500 = vunpack.c.l.b16 %v324
      %v501 = vunpack.c.l.b16 %v325
      %v502 = vunpack.c.l.b16 %v326
      %v503 = vunpack.c.l.b16 %v327
      %v504 = vunpack.c.l.b16 %v328
      %v505 = vunpack.c.l.b16 %v329
      %v506 = vunpack.c.l.b16 %v330
      %v507 = vunpack.c.l.b16 %v331
      %v508 = vunpack.c.l.b16 %v332
      %v509 = vunpack.c.l.b16 %v333
      %v510 = vunpack.c.l.b16 %v334
      %v511 = vunpack.c.l.b16 %v335
      %v512 = vunpack.c.l.b16 %v336
      %v513 = vunpack.c.l.b16 %v337
      %v514 = vunpack.c.l.b16 %v338
      %v515 = vunpack.c.l.b16 %v339
      %v516 = vunpack.c.l.b16 %v340
      %v517 = vunpack.c.l.b16 %v341
      %v518 = vunpack.c.l.b16 %v342
      %v519 = vunpack.c.l.b16 %v343
      %v520 = vunpack.c.l.b16 %v344
      %v521 = vunpack.c.l.b16 %v345
      %v522 = vunpack.c.l.b16 %v346
      %v523 = vunpack.c.l.b16 %v347
      %v524 = vunpack.c.l.b16 %v348
      %v525 = vunpack.c.l.b16 %v349
      %v526 = vunpack.c.l.b16 %v350
      %v527 = vunpack.c.l.b16 %v351
      %v528 = vunpack.c.l.b16 %v352
      %v529 = vunpack.c.l.b16 %v353
      %v530 = vunpack.c.l.b16 %v354
      %v531 = vunpack.c.l.b16 %v355
      %v532 = vunpack.c.l.b16 %v356
      %v533 = vunpack.c.l.b16 %v357
      %v534 = vunpack.c.l.b16 %v358
      %v535 = vunpack.c.l.b16 %v359
      %v536 = vunpack.c.l.b16 %v360
      %v537 = vunpack.c.l.b16 %v361
      %v538 = vunpack.c.l.b16 %v362
      %v539 = vunpack.c.l.b16 %v363
      %v540 = vunpack.c.l.b16 %v364
      %v541 = vunpack.c.l.b16 %v365
      %v542 = vunpack.c.l.b16 %v366
      %v543 = vunpack.c.l.b16 %v367
      %v544 = vunpack.c.l.b16 %v368
      %v545 = vunpack.c.l.b16 %v369
      %v546 = vunpack.c.l.b16 %v370
      %v547 = vunpack.c.l.b16 %v371
      %v548 = vunpack.c.l.b16 %v372
      %v549 = vunpack.c.l.b16 %v373
      %v550 = vunpack.c.l.b16 %v374
      %v551 = vunpack.c.l.b16 %v375
      %v552 = vunpack.c.l.b16 %v376
      %v553 = vunpack.c.l.b16 %v377
      %v554 = vunpack.c.l.b16 %v378
      %v555 = vpack.c.b16 %v484, %v483
      %v556 = vpack.c.b16 %v486, %v485
      %v557 = vpack.c.b16 %v488, %v487
      %v558 = vpack.c.b16 %v490, %v489
      %v559 = vpack.c.b16 %v492, %v491
      %v560 = vpack.c.b16 %v494, %v493
      %v561 = vpack.c.b16 %v496, %v495
      %v562 = vpack.c.b16 %v498, %v497
      %v563 = vpack.c.b16 %v500, %v499
      %v564 = vpack.c.b16 %v502, %v501
      %v565 = vpack.c.b16 %v504, %v503
      %v566 = vpack.c.b16 %v506, %v505
      %v567 = vpack.c.b16 %v508, %v507
      %v568 = vpack.c.b16 %v510, %v509
      %v569 = vpack.c.b16 %v512, %v511
      %v570 = vpack.c.b16 %v514, %v513
      %v571 = vpack.c.b16 %v516, %v515
      %v572 = vpack.c.b16 %v518, %v517
      %v573 = vpack.c.b16 %v520, %v519
      %v574 = vpack.c.b16 %v522, %v521
      %v575 = vpack.c.b16 %v524, %v523
      %v576 = vpack.c.b16 %v526, %v525
      %v577 = vpack.c.b16 %v528, %v527
      %v578 = vpack.c.b16 %v530, %v529
      %v579 = vpack.c.b16 %v532, %v531
      %v580 = vpack.c.b16 %v534, %v533
      %v581 = vpack.c.b16 %v536, %v535
      %v582 = vpack.c.b16 %v538, %v537
      %v583 = vpack.c.b16 %v540, %v539
      %v584 = vpack.c.b16 %v542, %v541
      %v585 = vpack.c.b16 %v544, %v543
      %v586 = vpack.c.b16 %v546, %v545
      %v587 = vpack.c.b16 %v548, %v547
      %v588 = vpack.c.b16 %v550, %v549
      %v589 = vpack.c.b16 %v552, %v551
      %v590 = vpack.c.b16 %v554, %v553
      %vm627 = vcmask 523264
      %v629 = vsel %vm627, %v406, 0
      %631 = vmatprep.subr.bf16.mxu0 0
      %632 = vmatpush1.bf16.msra.mxu0 %v555
      %633 = vmatprep.subr.bf16.mxu0 0
      %634 = vmatpush1.bf16.msra.mxu0 %v556
      %635 = vmatprep.subr.bf16.mxu0 0
      %636 = vmatpush1.bf16.msra.mxu0 %v557
      %637 = vmatprep.subr.bf16.mxu0 0
      %638 = vmatpush1.bf16.msra.mxu0 %v558
      %639 = vmatprep.subr.bf16.mxu0 0
      %640 = vmatpush1.bf16.msra.mxu0 %v559
      %641 = vmatprep.subr.bf16.mxu0 0
      %642 = vmatpush1.bf16.msra.mxu0 %v560
      %643 = vmatprep.subr.bf16.mxu0 0
      %644 = vmatpush1.bf16.msra.mxu0 %v561
      %645 = vmatprep.subr.bf16.mxu0 0
      %646 = vmatpush1.bf16.msra.mxu0 %v562
      %647 = vmatprep.subr.bf16.mxu0 0
      %648 = vmatpush1.bf16.msra.mxu0 %v563
      %649 = vmatprep.subr.bf16.mxu0 0
      %650 = vmatpush1.bf16.msra.mxu0 %v564
      %651 = vmatprep.subr.bf16.mxu0 0
      %652 = vmatpush1.bf16.msra.mxu0 %v565
      %653 = vmatprep.subr.bf16.mxu0 0
      %654 = vmatpush1.bf16.msra.mxu0 %v566
      %655 = vmatprep.subr.bf16.mxu0 0
      %656 = vmatpush1.bf16.msra.mxu0 %v567
      %657 = vmatprep.subr.bf16.mxu0 0
      %658 = vmatpush1.bf16.msra.mxu0 %v568
      %659 = vmatprep.subr.bf16.mxu0 0
      %660 = vmatpush1.bf16.msra.mxu0 %v569
      %661 = vmatprep.subr.bf16.mxu0 0
      %662 = vmatpush1.bf16.msra.mxu0 %v570
      %663 = vmatprep.mubr.bf16.mxu0 %v403
      %664 = vmatmul.mubr.bf16.gmra.mrb[0].mxu0 %v402
      %v665 = vpop.f32.mrb[0].mxu0
      %v666 = vadd.f32 %v384, %v665
      %v667 = vpop.f32.mrb[0].mxu0
      %v668 = vpop.f32.mrb[0].mxu0
      %v669 = vadd.f32 %v384, %v668
      %v670 = vpop.f32.mrb[0].mxu0
      %671 = vdwg.mxu0
      %672 = vmatprep.subr.bf16.mxu0 0
      %673 = vmatpush1.bf16.msra.mxu0 %v571
      %674 = vmatprep.subr.bf16.mxu0 0
      %675 = vmatpush1.bf16.msra.mxu0 %v572
      %676 = vmatprep.subr.bf16.mxu0 0
      %677 = vmatpush1.bf16.msra.mxu0 %v573
      %678 = vmatprep.subr.bf16.mxu0 0
      %679 = vmatpush1.bf16.msra.mxu0 %v574
      %680 = vmatprep.subr.bf16.mxu0 0
      %681 = vmatpush1.bf16.msra.mxu0 %v575
      %682 = vmatprep.subr.bf16.mxu0 0
      %683 = vmatpush1.bf16.msra.mxu0 %v576
      %684 = vmatprep.subr.bf16.mxu0 0
      %685 = vmatpush1.bf16.msra.mxu0 %v577
      %686 = vmatprep.subr.bf16.mxu0 0
      %687 = vmatpush1.bf16.msra.mxu0 %v578
      %688 = vmatprep.subr.bf16.mxu0 0
      %689 = vmatpush1.bf16.msra.mxu0 %v579
      %690 = vmatprep.subr.bf16.mxu0 0
      %691 = vmatpush1.bf16.msra.mxu0 %v580
      %692 = vmatprep.subr.bf16.mxu0 0
      %693 = vmatpush1.bf16.msra.mxu0 %v581
      %694 = vmatprep.subr.bf16.mxu0 0
      %695 = vmatpush1.bf16.msra.mxu0 %v582
      %696 = vmatprep.subr.bf16.mxu0 0
      %697 = vmatpush1.bf16.msra.mxu0 %v583
      %698 = vmatprep.subr.bf16.mxu0 0
      %699 = vmatpush1.bf16.msra.mxu0 %v584
      %700 = vmatprep.subr.bf16.mxu0 0
      %701 = vmatpush1.bf16.msra.mxu0 %v585
      %702 = vmatprep.subr.bf16.mxu0 0
      %703 = vmatpush1.bf16.msra.mxu0 %v586
      %704 = vmatprep.mubr.bf16.mxu0 %v405
      %705 = vmatmul.mubr.bf16.gmra.mrb[0].mxu0 %v404
      %v706 = vpop.f32.mrb[0].mxu0
      %v707 = vadd.f32 %v666, %v706
      %v708 = vpop.f32.mrb[0].mxu0
      %v709 = vpop.f32.mrb[0].mxu0
      %v710 = vadd.f32 %v669, %v709
      %v711 = vpop.f32.mrb[0].mxu0
      %712 = vdwg.mxu0
      %713 = vmatprep.subr.bf16.mxu0 0
      %714 = vmatpush1.bf16.msra.mxu0 %v587
      %715 = vmatprep.subr.bf16.mxu0 0
      %716 = vmatpush1.bf16.msra.mxu0 %v588
      %717 = vmatprep.subr.bf16.mxu0 0
      %718 = vmatpush1.bf16.msra.mxu0 %v589
      %719 = vmatprep.subr.bf16.mxu0 0
      %720 = vmatpush1.bf16.msra.mxu0 %v590
      %721 = vmatprep.subr.bf16.mxu0 0
      %722 = vmatpush1.bf16.msra.mxu0 0
      %723 = vmatprep.subr.bf16.mxu0 0
      %724 = vmatpush1.bf16.msra.mxu0 0
      %725 = vmatprep.subr.bf16.mxu0 0
      %726 = vmatpush1.bf16.msra.mxu0 0
      %727 = vmatprep.subr.bf16.mxu0 0
      %728 = vmatpush1.bf16.msra.mxu0 0
      %729 = vmatprep.subr.bf16.mxu0 0
      %730 = vmatpush1.bf16.msra.mxu0 0
      %731 = vmatprep.subr.bf16.mxu0 0
      %732 = vmatpush1.bf16.msra.mxu0 0
      %733 = vmatprep.subr.bf16.mxu0 0
      %734 = vmatpush1.bf16.msra.mxu0 0
      %735 = vmatprep.subr.bf16.mxu0 0
      %736 = vmatpush1.bf16.msra.mxu0 0
      %737 = vmatprep.subr.bf16.mxu0 0
      %738 = vmatpush1.bf16.msra.mxu0 0
      %739 = vmatprep.subr.bf16.mxu0 0
      %740 = vmatpush1.bf16.msra.mxu0 0
      %741 = vmatprep.subr.bf16.mxu0 0
      %742 = vmatpush1.bf16.msra.mxu0 0
      %743 = vmatprep.subr.bf16.mxu0 0
      %744 = vmatpush1.bf16.msra.mxu0 0
      %745 = vmatprep.mubr.bf16.mxu0 0
      %746 = vmatmul.mubr.bf16.gmra.mrb[0].mxu0 %v629
      %v747 = vpop.f32.mrb[0].mxu0
      %v748 = vadd.f32 %v707, %v747
      %v749 = vpop.f32.mrb[0].mxu0
      %v750 = vpop.f32.mrb[0].mxu0
      %v751 = vadd.f32 %v710, %v750
      %v752 = vpop.f32.mrb[0].mxu0
      %753 = vdwg.mxu0
      %v754 = vmul.f32 %v748, 0.2
      %v755 = vmul.f32 %v751, 0.2
      %v756 = vmax.f32 %v748, %v754
      %v757 = vmax.f32 %v751, %v755
      %v758 = vpack.c.bf16 %v757, %v756
      %v760 = vunpack.c.l.b16 %v758
      %v761 = vunpack.c.h.b16 %v758
      %v762 = vpack.c.b16 %v760, %v760
      %v763 = vpack.c.b16 %v761, %v761
      %766 = vst [vmem:[%s286] sm:$0xf] %v762
      %767 = vst [vmem:[%s286 + $0x4] sm:$0xf] %v763
      %s768 = smul.u32 %s22, 16
      %v769 = vlaneseq
      %v770 = vshrl.u32 %v769, 7
      %v771 = vadd.s32 %v770, 8
      %v772 = vstv %s768
      %v773 = vadd.s32 %v772, %v770
      %v774 = vadd.s32 %v772, %v771
      %vm775 = vcmp.lt.s32.totalorder %v773, 4
      %vm776 = vcmp.lt.s32.totalorder %v774, 4
      %v777 = vsel %vm775, 1, 0
      %v778 = vsel %vm776, 1, 0
      %vm779 = vcmp.eq.s32.totalorder %v777, 1
      %vm780 = vcmp.eq.s32.totalorder %v778, 1
      %v781 = vsel %vm779, %v756, 0.0
      %v782 = vsel %vm780, %v757, 0.0
      %v783 = vadd.f32 %v781, %v782
      %v784 = vrot.slane %v783, 4
      %v785 = vadd.f32 %v783, %v784
      %v786 = vrot.slane %v785, 2
      %v787 = vadd.f32 %v785, %v786
      %v788 = vrot.slane %v787, 1
      %v789 = vadd.f32 %v787, %v788
      %790 = vst [vmem:[%s293] sm:$0x1] %v789
      %v791 = vmul.f32 %v781, %v781
      %v792 = vmul.f32 %v782, %v782
      %v793 = vadd.f32 %v791, %v792
      %v794 = vrot.slane %v793, 4
      %v795 = vadd.f32 %v793, %v794
      %v796 = vrot.slane %v795, 2
      %v797 = vadd.f32 %v795, %v796
      %v798 = vrot.slane %v797, 1
      %v799 = vadd.f32 %v797, %v798
      %800 = vst [vmem:[%s299] sm:$0x1] %v799
      %s801 = smul.u32 2, %s22
      %p802 = scmp.lt.s32.totalorder %s21, 1
      %s803 = scalar_select %p802, %s21, 1
      %p804 = scmp.lt.s32.totalorder %s801, 1
      %s805 = scalar_select %p804, %s801, 1
      %s806 = smul.addr %s803, 2
      %s807 = sadd.s32 %s805, %s806
      %s808 = smul.addr %s807, 4
      %s809 = scalar_lea.vmem %s3, %s808
      %p810 = scmp.lt.s32.totalorder %s21, 1
      %s811 = scalar_select %p810, %s21, 1
      %p812 = scmp.lt.s32.totalorder %s22, 0
      %s813 = scalar_select %p812, %s22, 0
      %s814 = sadd.s32 %s813, %s811
      %s815 = scalar_lea.vmem %s4, %s814
      %p816 = scmp.lt.s32.totalorder %s21, 1
      %s817 = scalar_select %p816, %s21, 1
      %p818 = scmp.lt.s32.totalorder %s22, 0
      %s819 = scalar_select %p818, %s22, 0
      %s820 = sadd.s32 %s819, %s817
      %s821 = scalar_lea.vmem %s5, %s820
      // Predicated region
      $region33: #{_lambda_.8} parent=31 // pred_check
        %p822 = pneg %p119
      $region34: #{_lambda_.8} parent=31 // pred_check_branch
        %824 = sbr.rel (%p822) target = $region36
      $region35: #{_lambda_.8} parent=31 // pred_region
        %s825 = smul.u32 2, %s22
      $region36: #{_lambda_.8} parent=31 // pred_fallthru
        _
      // Predicated region
      $region37: #{_lambda_.8} parent=31 // pred_check
        %p826 = pneg %p147
      $region38: #{_lambda_.8} parent=31 // pred_check_branch
        %828 = sbr.rel (%p826) target = $region40
      $region39: #{_lambda_.8} parent=31 // pred_region
        _
      $region40: #{_lambda_.8} parent=31 // pred_fallthru
        _
      // Predicated region
      $region41: #{_lambda_.8} parent=31 // pred_check
        %p829 = pneg %p175
      $region42: #{_lambda_.8} parent=31 // pred_check_branch
        %831 = sbr.rel (%p829) target = $region44
      $region43: #{_lambda_.8} parent=31 // pred_region
        _
      $region44: #{_lambda_.8} parent=31 // pred_fallthru
        _
    $region32: #{_lambda_.8} parent=5 // pred_fallthru
      _
    %p832 = scmp.le.s32.totalorder 2, %s12
    // Predicated region
    $region45: #{_lambda_.8} parent=5 // pred_check
      %p833 = pneg %p832
    $region46: #{_lambda_.8} parent=5 // pred_check_branch
      %835 = sbr.rel (%p833) target = $region48
    $region47: #{_lambda_.8} parent=5 // pred_region
      %s836 = ssub.s32 %s12, 2
      // Predicated region
      $region49: #{_lambda_.8} parent=47 // pred_check
        %p837 = pneg %p125
      $region50: #{_lambda_.8} parent=47 // pred_check_branch
        %839 = sbr.rel (%p837) target = $region52
      $region51: #{_lambda_.8} parent=47 // pred_region
        %s840 = smul.u32 2, %s24
        %p841 = scmp.lt.s32.totalorder %s23, 1
        %s842 = scalar_select %p841, %s23, 1
        %p843 = scmp.lt.s32.totalorder %s840, 1
        %s844 = scalar_select %p843, %s840, 1
        %s845 = smul.addr %s842, 2
        %s846 = sadd.s32 %s844, %s845
        %s847 = smul.addr %s846, 4
        %s848 = scalar_lea.vmem %s3, %s847
      $region52: #{_lambda_.8} parent=47 // pred_fallthru
        _
      // Predicated region
      $region53: #{_lambda_.8} parent=47 // pred_check
        %p849 = pneg %p153
      $region54: #{_lambda_.8} parent=47 // pred_check_branch
        %851 = sbr.rel (%p849) target = $region56
      $region55: #{_lambda_.8} parent=47 // pred_region
        %p852 = scmp.lt.s32.totalorder %s23, 1
        %s853 = scalar_select %p852, %s23, 1
        %p854 = scmp.lt.s32.totalorder %s24, 0
        %s855 = scalar_select %p854, %s24, 0
        %s856 = sadd.s32 %s855, %s853
        %s857 = scalar_lea.vmem %s4, %s856
      $region56: #{_lambda_.8} parent=47 // pred_fallthru
        _
      // Predicated region
      $region57: #{_lambda_.8} parent=47 // pred_check
        %p858 = pneg %p181
      $region58: #{_lambda_.8} parent=47 // pred_check_branch
        %860 = sbr.rel (%p858) target = $region60
      $region59: #{_lambda_.8} parent=47 // pred_region
        %p861 = scmp.lt.s32.totalorder %s23, 1
        %s862 = scalar_select %p861, %s23, 1
        %p863 = scmp.lt.s32.totalorder %s24, 0
        %s864 = scalar_select %p863, %s24, 0
        %s865 = sadd.s32 %s864, %s862
        %s866 = scalar_lea.vmem %s5, %s865
      $region60: #{_lambda_.8} parent=47 // pred_fallthru
        _
    $region48: #{_lambda_.8} parent=5 // pred_fallthru
      _
  $region6: #{_lambda_.8} parent=0 // loop_footer
    %s16 = sadd.s32 1, %s12
  $region7: #{_lambda_.8} parent=0 // loop_footer_branch
    %11 = sbr.rel target = $region3
  $region8: #{_lambda_.8} parent=0 // loop_exit
    _

// kernel: _lambda_.10
$region0: #{_lambda_.10}
  #allocation0 [shape = 'u32[]', space=smem, size = 0x4, offset = 0x4, fixed_abs, tag = 'smem constant byte address 0x4 - core index']
  #allocation1 [shape = 'u32[144,128]{1,0:T(1,128)}', space=vmem, size = 0x12000, scoped, tag = 'internal scratch']
  %s0 = inlined_call_operand.vmem [shape: bf16[2,2,2,256], index: 0, kind: input, shape index: {}]
  %s1 = inlined_call_operand.vmem [shape: bf16[2,1,1,256], index: 1, kind: output, shape index: {}]
  %s2 = sld [smem:[#allocation0]]
  $region37: #{_lambda_.10} parent=0
    _
  %s4 = ssub.s32 1, %s2
  %s5 = scalar_select 0, %s4, %s2
  loop: start=0, step=1, limit=4
  $region2: #{_lambda_.10} parent=0 // loop_pre_header
    _
  $region3: #{_lambda_.10} parent=0 // loop_header
    %s7 = sphi 0, %s11
    %p8 = scmp.ge.s32.totalorder %s7, 4
    %s14 = sphi 0, %s26
    %s15 = sphi 0, %s22
    %s16 = sphi 0, %s14
    %s17 = sphi 0, %s15
    %s18 = sphi 0, %s16
    %s19 = sphi 0, %s17
    %s31 = sphi 0, %s33
    %s34 = sphi 0, %s31
    %s35 = sphi 0, %s34
    %s51 = sphi 0, %s35
    %s59 = sphi 0, %s61
    %s62 = sphi 0, %s59
    %s63 = sphi 0, %s62
    %s79 = sphi 0, %s63
  $region4: #{_lambda_.10} parent=0 // loop_header_branch
    %10 = sbr.rel (%p8) target = $region8
  $region5: #{_lambda_.10} parent=0 // loop_body
    %s12 = ssub.s32 %s7, 1
    %s13 = ssub.s32 %s7, 2
    %s20 = sadd.s32 1, %s15
    %p21 = scmp.ge.s32.totalorder %s20, 1
    %s22 = scalar_select %p21, 0, %s20
    %s23 = sadd.s32 1, %s14
    %s24 = scalar_select %p21, %s23, %s14
    %p25 = scmp.ge.s32.totalorder %s24, 2
    %s26 = scalar_select %p25, 0, %s24
    %s27 = ssub.s32 %s14, %s26
    %s28 = ssub.s32 %s15, %s22
    %s29 = sor.u32 %s27, %s28
    %p30 = scmp.eq.s32.totalorder %s29, 0
    %s32 = sadd.s32 %s31, 1
    %s33 = scalar_select %p30, %s31, %s32
    %p36 = pneg %p30
    %p37 = scmp.eq.s32.totalorder %s7, 1
    %p38 = por %p36, %p37
    %p39 = scmp.ne.s32.totalorder %s31, %s34
    %p40 = scmp.eq.s32.totalorder %s7, 0
    %p41 = por %p39, %p40
    %p42 = scmp.ne.s32.totalorder %s31, %s34
    %p43 = scmp.eq.s32.totalorder %s12, 1
    %p44 = por %p42, %p43
    %p45 = scmp.ne.s32.totalorder %s34, %s35
    %p46 = scmp.eq.s32.totalorder %s12, 0
    %p47 = por %p45, %p46
    %p48 = scmp.ne.s32.totalorder %s34, %s35
    %p49 = scmp.eq.s32.totalorder %s13, 1
    %p50 = por %p48, %p49
    %p52 = scmp.ne.s32.totalorder %s35, %s51
    %p53 = scmp.eq.s32.totalorder %s13, 0
    %p54 = por %p52, %p53
    %s55 = ssub.s32 %s14, %s26
    %s56 = ssub.s32 %s15, %s22
    %s57 = sor.u32 %s55, %s56
    %p58 = scmp.eq.s32.totalorder %s57, 0
    %s60 = sadd.s32 %s59, 1
    %s61 = scalar_select %p58, %s59, %s60
    %p64 = pneg %p58
    %p65 = scmp.eq.s32.totalorder %s7, 1
    %p66 = por %p64, %p65
    %p67 = scmp.ne.s32.totalorder %s59, %s62
    %p68 = scmp.eq.s32.totalorder %s7, 0
    %p69 = por %p67, %p68
    %p70 = scmp.ne.s32.totalorder %s59, %s62
    %p71 = scmp.eq.s32.totalorder %s12, 1
    %p72 = por %p70, %p71
    %p73 = scmp.ne.s32.totalorder %s62, %s63
    %p74 = scmp.eq.s32.totalorder %s12, 0
    %p75 = por %p73, %p74
    %p76 = scmp.ne.s32.totalorder %s62, %s63
    %p77 = scmp.eq.s32.totalorder %s13, 1
    %p78 = por %p76, %p77
    %p80 = scmp.ne.s32.totalorder %s63, %s79
    %p81 = scmp.eq.s32.totalorder %s13, 0
    %p82 = por %p80, %p81
    %p83 = scmp.le.s32.totalorder 1, %s7
    %p84 = scmp.lt.s32.totalorder %s7, 3
    %p85 = pnand %p83, %p84
    %p86 = pneg %p85
    // Predicated region
    $region9: #{_lambda_.10} parent=5 // pred_check
      _
    $region10: #{_lambda_.10} parent=5 // pred_check_branch
      %88 = sbr.rel (%p85) target = $region12
    $region11: #{_lambda_.10} parent=5 // pred_region
      %s89 = ssub.s32 %s7, 1
    $region12: #{_lambda_.10} parent=5 // pred_fallthru
      _
    %p90 = scmp.lt.s32.totalorder %s7, 2
    // Predicated region
    $region13: #{_lambda_.10} parent=5 // pred_check
      %p91 = pneg %p90
    $region14: #{_lambda_.10} parent=5 // pred_check_branch
      %93 = sbr.rel (%p91) target = $region16
    $region15: #{_lambda_.10} parent=5 // pred_region
      // Predicated region
      $region17: #{_lambda_.10} parent=15 // pred_check
        %p94 = pneg %p41
      $region18: #{_lambda_.10} parent=15 // pred_check_branch
        %96 = sbr.rel (%p94) target = $region20
      $region19: #{_lambda_.10} parent=15 // pred_region
        %s97 = smul.u32 2, %s15
        %p98 = scmp.lt.s32.totalorder %s14, 1
        %s99 = scalar_select %p98, %s14, 1
        %p100 = scmp.lt.s32.totalorder %s97, 1
        %s101 = scalar_select %p100, %s97, 1
        %s102 = smul.addr %s101, 2
        %s103 = smul.addr %s99, 4
        %s104 = sadd.s32 %s102, %s103
        %s105 = scalar_lea.vmem %s0, %s104
        %s106 = smul.u32 2, %s15
      $region20: #{_lambda_.10} parent=15 // pred_fallthru
        _
    $region16: #{_lambda_.10} parent=5 // pred_fallthru
      _
    %p107 = scmp.le.s32.totalorder 1, %s7
    %p108 = scmp.lt.s32.totalorder %s7, 3
    %p109 = pnand %p107, %p108
    %p110 = pneg %p109
    // Predicated region
    $region21: #{_lambda_.10} parent=5 // pred_check
      _
    $region22: #{_lambda_.10} parent=5 // pred_check_branch
      %112 = sbr.rel (%p109) target = $region24
    $region23: #{_lambda_.10} parent=5 // pred_region
      %s113 = ssub.s32 %s7, 1
      %s114 = smul.u32 2, %s17
      %p115 = scmp.lt.s32.totalorder %s16, 1
      %s116 = scalar_select %p115, %s16, 1
      %p117 = scmp.lt.s32.totalorder %s114, 1
      %s118 = scalar_select %p117, %s114, 1
      %s119 = smul.addr %s118, 2
      %s120 = smul.addr %s116, 4
      %s121 = sadd.s32 %s119, %s120
      %s122 = scalar_lea.vmem %s0, %s121
      %p123 = pneg %p47
      %p124 = pneg %p44
      %p125 = pneg %p75
      %p126 = pneg %p72
      %p127 = scmp.lt.s32.totalorder %s16, 1
      %s128 = scalar_select %p127, %s16, 1
      %p129 = scmp.lt.s32.totalorder %s17, 0
      %s130 = scalar_select %p129, %s17, 0
      %s131 = smul.addr %s130, 2
      %s132 = smul.addr %s128, 2
      %s133 = sadd.s32 %s131, %s132
      %s134 = scalar_lea.vmem %s1, %s133
      %s135 = smul.u32 2, %s17
      %p136 = scmp.lt.s32.totalorder %s16, 1
      %s137 = scalar_select %p136, %s16, 1
      %p138 = scmp.lt.s32.totalorder %s135, 1
      %s139 = scalar_select %p138, %s135, 1
      %s140 = smul.addr %s139, 2
      %s141 = smul.addr %s137, 4
      %s142 = sadd.s32 %s140, %s141
      %s143 = scalar_lea.vmem %s0, %s142
      %s144 = smul.u32 2, %s17
      %p145 = scmp.lt.s32.totalorder %s16, 1
      %s146 = scalar_select %p145, %s16, 1
      %p147 = scmp.lt.s32.totalorder %s17, 0
      %s148 = scalar_select %p147, %s17, 0
      %s149 = smul.addr %s148, 2
      %s150 = smul.addr %s146, 2
      %s151 = sadd.s32 %s149, %s150
      %s152 = scalar_lea.vmem %s1, %s151
      %v154 = vld [vmem:[%s143] sm:$0x3]
      %v155 = vld [vmem:[%s143 + $0x2] sm:$0x3]
      %vm156 = vcmask 1040384
      %vm157 = vcmask 1041409
      %vm158 = vmor %vm157, %vm156
      %v161 = vsel %vm158, %v154, 4286644096
      %v164 = vsel %vm158, %v155, 4286644096
      %v166 = vmax.bf16 %v161, %v164
      %v169 = vunpack.c.l.s4 1966171168
      %v170 = vunpack.c.0.s8 %v169
      %v171 = vlaneseq
      %v172 = vshrl.u32 %v171, 7
      %v173 = vsub.s32 %v170, %v172
      %v174 = vrot.slane %v166, %v173
      %v175 = vcombine.high %v174, %v174
      %v177 = vunpack.c.l.s4 1966171168
      %v178 = vunpack.c.0.s8 %v177
      %v179 = vlaneseq
      %v180 = vshrl.u32 %v179, 7
      %v181 = vsub.s32 %v178, %v180
      %v182 = vrot.slane %v174, %v181
      %v184 = vunpack.c.l.s4 1966171168
      %v185 = vunpack.c.0.s8 %v184
      %v186 = vlaneseq
      %v187 = vshrl.u32 %v186, 7
      %v188 = vsub.s32 %v185, %v187
      %v189 = vrot.slane %v175, %v188
      %v191 = vsel %vm156, %v182, 4286644096
      %v193 = vunpack.i.l.bf16 %v191
      %v194 = vunpack.i.h.bf16 %v191
      %v195 = vmax.f32 %v193, %v194
      %v196 = vrot.slane %v195, 4
      %v197 = vmax.f32 %v195, %v196
      %v198 = vrot.slane %v197, 2
      %v199 = vmax.f32 %v197, %v198
      %v200 = vrot.slane %v199, 1
      %v201 = vmax.f32 %v199, %v200
      %v202 = vpack.i.bf16 %v201, %v201
      %v204 = vsel %vm156, %v189, 4286644096
      %v206 = vunpack.i.l.bf16 %v204
      %v207 = vunpack.i.h.bf16 %v204
      %v208 = vmax.f32 %v206, %v207
      %v209 = vrot.slane %v208, 4
      %v210 = vmax.f32 %v208, %v209
      %v211 = vrot.slane %v210, 2
      %v212 = vmax.f32 %v210, %v211
      %v213 = vrot.slane %v212, 1
      %v214 = vmax.f32 %v212, %v213
      %v215 = vpack.i.bf16 %v214, %v214
      %v218 = vcombine.low %v202, %v215
      %v220 = vunpack.c.l.s4 1966171168
      %v221 = vunpack.c.0.s8 %v220
      %v222 = vlaneseq
      %v223 = vshrl.u32 %v222, 7
      %v224 = vsub.s32 %v221, %v223
      %v225 = vrot.slane %v218, %v224
      %v227 = vunpack.c.l.s4 1966171168
      %v228 = vunpack.c.0.s8 %v227
      %v229 = vlaneseq
      %v230 = vshrl.u32 %v229, 7
      %v231 = vsub.s32 %v228, %v230
      %v232 = vrot.slane %v225, %v231
      %vm234 = vcmask 1040384
      %vm235 = vsmask.f32 256
      %vm236 = vmand %vm234, %vm235
      %vm237 = vcmask 1041409
      %vm238 = vsmask.f32 1280
      %vm239 = vmand %vm237, %vm238
      %vm240 = vmor %vm239, %vm236
      %v241 = vld [vmem:[%s152] sm:$0x3]
      %v242 = vsel %vm240, %v232, %v241
      %243 = vst [vmem:[%s152] sm:$0x3] %v242
      %p244 = scmp.lt.s32.totalorder %s16, 1
      %s245 = scalar_select %p244, %s16, 1
      %p246 = scmp.lt.s32.totalorder %s17, 0
      %s247 = scalar_select %p246, %s17, 0
      %s248 = smul.addr %s247, 2
      %s249 = smul.addr %s245, 2
      %s250 = sadd.s32 %s248, %s249
      %s251 = scalar_lea.vmem %s1, %s250
      // Predicated region
      $region25: #{_lambda_.10} parent=23 // pred_check
        %p252 = pneg %p72
      $region26: #{_lambda_.10} parent=23 // pred_check_branch
        %254 = sbr.rel (%p252) target = $region28
      $region27: #{_lambda_.10} parent=23 // pred_region
        _
      $region28: #{_lambda_.10} parent=23 // pred_fallthru
        _
    $region24: #{_lambda_.10} parent=5 // pred_fallthru
      _
    %p255 = scmp.le.s32.totalorder 2, %s7
    // Predicated region
    $region29: #{_lambda_.10} parent=5 // pred_check
      %p256 = pneg %p255
    $region30: #{_lambda_.10} parent=5 // pred_check_branch
      %258 = sbr.rel (%p256) target = $region32
    $region31: #{_lambda_.10} parent=5 // pred_region
      %s259 = ssub.s32 %s7, 2
      // Predicated region
      $region33: #{_lambda_.10} parent=31 // pred_check
        %p260 = pneg %p78
      $region34: #{_lambda_.10} parent=31 // pred_check_branch
        %262 = sbr.rel (%p260) target = $region36
      $region35: #{_lambda_.10} parent=31 // pred_region
        %p263 = scmp.lt.s32.totalorder %s18, 1
        %s264 = scalar_select %p263, %s18, 1
        %p265 = scmp.lt.s32.totalorder %s19, 0
        %s266 = scalar_select %p265, %s19, 0
        %s267 = smul.addr %s266, 2
        %s268 = smul.addr %s264, 2
        %s269 = sadd.s32 %s267, %s268
        %s270 = scalar_lea.vmem %s1, %s269
      $region36: #{_lambda_.10} parent=31 // pred_fallthru
        _
    $region32: #{_lambda_.10} parent=5 // pred_fallthru
      _
  $region6: #{_lambda_.10} parent=0 // loop_footer
    %s11 = sadd.s32 1, %s7
  $region7: #{_lambda_.10} parent=0 // loop_footer_branch
    %6 = sbr.rel target = $region3
  $region8: #{_lambda_.10} parent=0 // loop_exit
    _

// kernel: _lambda_.9
$region0: #{_lambda_.9}
  #allocation0 [shape = 'u32[]', space=smem, size = 0x4, offset = 0x4, fixed_abs, tag = 'smem constant byte address 0x4 - core index']
  #allocation1 [shape = 'u32[144,128]{1,0:T(1,128)}', space=vmem, size = 0x12000, scoped, tag = 'internal scratch']
  %s0 = inlined_call_operand.vmem [shape: bf16[16,1152], index: 0, kind: input, shape index: {}]
  %s1 = inlined_call_operand.vmem [shape: bf16[1152,256], index: 1, kind: input, shape index: {}]
  %s2 = inlined_call_operand.vmem [shape: f32[1,256], index: 2, kind: input, shape index: {}]
  %s3 = inlined_call_operand.vmem [shape: bf16[16,256], index: 3, kind: output, shape index: {}]
  %s4 = sld [smem:[#allocation0]]
  $region22: #{_lambda_.9} parent=0
    _
  %s6 = ssub.s32 1, %s4
  %s7 = scalar_select 0, %s6, %s4
  // Predicated region
  $region2: #{_lambda_.9} parent=0 // pred_check
    _
  $region3: #{_lambda_.9} parent=0 // pred_check_branch
    %9 = sbr.rel (0) target = $region5
  $region4: #{_lambda_.9} parent=0 // pred_region
    _
  $region5: #{_lambda_.9} parent=0 // pred_fallthru
    _
  // Predicated region
  $region6: #{_lambda_.9} parent=0 // pred_check
    _
  $region7: #{_lambda_.9} parent=0 // pred_check_branch
    %11 = sbr.rel (0) target = $region9
  $region8: #{_lambda_.9} parent=0 // pred_region
    _
  $region9: #{_lambda_.9} parent=0 // pred_fallthru
    _
  // Predicated region
  $region10: #{_lambda_.9} parent=0 // pred_check
    _
  $region11: #{_lambda_.9} parent=0 // pred_check_branch
    %13 = sbr.rel (0) target = $region13
  $region12: #{_lambda_.9} parent=0 // pred_region
    _
  $region13: #{_lambda_.9} parent=0 // pred_fallthru
    _
  %v15 = vld [vmem:[%s0] sm:$0xff]
  %v16 = vld [vmem:[%s0 + $0x8] sm:$0xff]
  %v17 = vld [vmem:[%s0 + $0x10] sm:$0xff]
  %v18 = vld [vmem:[%s0 + $0x18] sm:$0xff]
  %v19 = vld [vmem:[%s0 + $0x20] sm:$0xf]
  %v20 = vld [vmem:[%s0 + $0x24] sm:$0xff]
  %v21 = vld [vmem:[%s0 + $0x2c] sm:$0xff]
  %v22 = vld [vmem:[%s0 + $0x34] sm:$0xff]
  %v23 = vld [vmem:[%s0 + $0x3c] sm:$0xff]
  %v24 = vld [vmem:[%s0 + $0x44] sm:$0xf]
  %v25 = vld [vmem:[%s1] sm:$0xff]
  %v26 = vld [vmem:[%s1 + $0x8] sm:$0xff]
  %v27 = vld [vmem:[%s1 + $0x10] sm:$0xff]
  %v28 = vld [vmem:[%s1 + $0x18] sm:$0xff]
  %v29 = vld [vmem:[%s1 + $0x20] sm:$0xff]
  %v30 = vld [vmem:[%s1 + $0x28] sm:$0xff]
  %v31 = vld [vmem:[%s1 + $0x30] sm:$0xff]
  %v32 = vld [vmem:[%s1 + $0x38] sm:$0xff]
  %v33 = vld [vmem:[%s1 + $0x40] sm:$0xff]
  %v34 = vld [vmem:[%s1 + $0x48] sm:$0xff]
  %v35 = vld [vmem:[%s1 + $0x50] sm:$0xff]
  %v36 = vld [vmem:[%s1 + $0x58] sm:$0xff]
  %v37 = vld [vmem:[%s1 + $0x60] sm:$0xff]
  %v38 = vld [vmem:[%s1 + $0x68] sm:$0xff]
  %v39 = vld [vmem:[%s1 + $0x70] sm:$0xff]
  %v40 = vld [vmem:[%s1 + $0x78] sm:$0xff]
  %v41 = vld [vmem:[%s1 + $0x80] sm:$0xff]
  %v42 = vld [vmem:[%s1 + $0x88] sm:$0xff]
  %v43 = vld [vmem:[%s1 + $0x90] sm:$0xff]
  %v44 = vld [vmem:[%s1 + $0x98] sm:$0xff]
  %v45 = vld [vmem:[%s1 + $0xa0] sm:$0xff]
  %v46 = vld [vmem:[%s1 + $0xa8] sm:$0xff]
  %v47 = vld [vmem:[%s1 + $0xb0] sm:$0xff]
  %v48 = vld [vmem:[%s1 + $0xb8] sm:$0xff]
  %v49 = vld [vmem:[%s1 + $0xc0] sm:$0xff]
  %v50 = vld [vmem:[%s1 + $0xc8] sm:$0xff]
  %v51 = vld [vmem:[%s1 + $0xd0] sm:$0xff]
  %v52 = vld [vmem:[%s1 + $0xd8] sm:$0xff]
  %v53 = vld [vmem:[%s1 + $0xe0] sm:$0xff]
  %v54 = vld [vmem:[%s1 + $0xe8] sm:$0xff]
  %v55 = vld [vmem:[%s1 + $0xf0] sm:$0xff]
  %v56 = vld [vmem:[%s1 + $0xf8] sm:$0xff]
  %v57 = vld [vmem:[%s1 + $0x100] sm:$0xff]
  %v58 = vld [vmem:[%s1 + $0x108] sm:$0xff]
  %v59 = vld [vmem:[%s1 + $0x110] sm:$0xff]
  %v60 = vld [vmem:[%s1 + $0x118] sm:$0xff]
  %v61 = vld [vmem:[%s1 + $0x120] sm:$0xff]
  %v62 = vld [vmem:[%s1 + $0x128] sm:$0xff]
  %v63 = vld [vmem:[%s1 + $0x130] sm:$0xff]
  %v64 = vld [vmem:[%s1 + $0x138] sm:$0xff]
  %v65 = vld [vmem:[%s1 + $0x140] sm:$0xff]
  %v66 = vld [vmem:[%s1 + $0x148] sm:$0xff]
  %v67 = vld [vmem:[%s1 + $0x150] sm:$0xff]
  %v68 = vld [vmem:[%s1 + $0x158] sm:$0xff]
  %v69 = vld [vmem:[%s1 + $0x160] sm:$0xff]
  %v70 = vld [vmem:[%s1 + $0x168] sm:$0xff]
  %v71 = vld [vmem:[%s1 + $0x170] sm:$0xff]
  %v72 = vld [vmem:[%s1 + $0x178] sm:$0xff]
  %v73 = vld [vmem:[%s1 + $0x180] sm:$0xff]
  %v74 = vld [vmem:[%s1 + $0x188] sm:$0xff]
  %v75 = vld [vmem:[%s1 + $0x190] sm:$0xff]
  %v76 = vld [vmem:[%s1 + $0x198] sm:$0xff]
  %v77 = vld [vmem:[%s1 + $0x1a0] sm:$0xff]
  %v78 = vld [vmem:[%s1 + $0x1a8] sm:$0xff]
  %v79 = vld [vmem:[%s1 + $0x1b0] sm:$0xff]
  %v80 = vld [vmem:[%s1 + $0x1b8] sm:$0xff]
  %v81 = vld [vmem:[%s1 + $0x1c0] sm:$0xff]
  %v82 = vld [vmem:[%s1 + $0x1c8] sm:$0xff]
  %v83 = vld [vmem:[%s1 + $0x1d0] sm:$0xff]
  %v84 = vld [vmem:[%s1 + $0x1d8] sm:$0xff]
  %v85 = vld [vmem:[%s1 + $0x1e0] sm:$0xff]
  %v86 = vld [vmem:[%s1 + $0x1e8] sm:$0xff]
  %v87 = vld [vmem:[%s1 + $0x1f0] sm:$0xff]
  %v88 = vld [vmem:[%s1 + $0x1f8] sm:$0xff]
  %v89 = vld [vmem:[%s1 + $0x200] sm:$0xff]
  %v90 = vld [vmem:[%s1 + $0x208] sm:$0xff]
  %v91 = vld [vmem:[%s1 + $0x210] sm:$0xff]
  %v92 = vld [vmem:[%s1 + $0x218] sm:$0xff]
  %v93 = vld [vmem:[%s1 + $0x220] sm:$0xff]
  %v94 = vld [vmem:[%s1 + $0x228] sm:$0xff]
  %v95 = vld [vmem:[%s1 + $0x230] sm:$0xff]
  %v96 = vld [vmem:[%s1 + $0x238] sm:$0xff]
  %v97 = vld [vmem:[%s1 + $0x240] sm:$0xff]
  %v98 = vld [vmem:[%s1 + $0x248] sm:$0xff]
  %v99 = vld [vmem:[%s1 + $0x250] sm:$0xff]
  %v100 = vld [vmem:[%s1 + $0x258] sm:$0xff]
  %v101 = vld [vmem:[%s1 + $0x260] sm:$0xff]
  %v102 = vld [vmem:[%s1 + $0x268] sm:$0xff]
  %v103 = vld [vmem:[%s1 + $0x270] sm:$0xff]
  %v104 = vld [vmem:[%s1 + $0x278] sm:$0xff]
  %v105 = vld [vmem:[%s1 + $0x280] sm:$0xff]
  %v106 = vld [vmem:[%s1 + $0x288] sm:$0xff]
  %v107 = vld [vmem:[%s1 + $0x290] sm:$0xff]
  %v108 = vld [vmem:[%s1 + $0x298] sm:$0xff]
  %v109 = vld [vmem:[%s1 + $0x2a0] sm:$0xff]
  %v110 = vld [vmem:[%s1 + $0x2a8] sm:$0xff]
  %v111 = vld [vmem:[%s1 + $0x2b0] sm:$0xff]
  %v112 = vld [vmem:[%s1 + $0x2b8] sm:$0xff]
  %v113 = vld [vmem:[%s1 + $0x2c0] sm:$0xff]
  %v114 = vld [vmem:[%s1 + $0x2c8] sm:$0xff]
  %v115 = vld [vmem:[%s1 + $0x2d0] sm:$0xff]
  %v116 = vld [vmem:[%s1 + $0x2d8] sm:$0xff]
  %v117 = vld [vmem:[%s1 + $0x2e0] sm:$0xff]
  %v118 = vld [vmem:[%s1 + $0x2e8] sm:$0xff]
  %v119 = vld [vmem:[%s1 + $0x2f0] sm:$0xff]
  %v120 = vld [vmem:[%s1 + $0x2f8] sm:$0xff]
  %v121 = vld [vmem:[%s1 + $0x300] sm:$0xff]
  %v122 = vld [vmem:[%s1 + $0x308] sm:$0xff]
  %v123 = vld [vmem:[%s1 + $0x310] sm:$0xff]
  %v124 = vld [vmem:[%s1 + $0x318] sm:$0xff]
  %v125 = vld [vmem:[%s1 + $0x320] sm:$0xff]
  %v126 = vld [vmem:[%s1 + $0x328] sm:$0xff]
  %v127 = vld [vmem:[%s1 + $0x330] sm:$0xff]
  %v128 = vld [vmem:[%s1 + $0x338] sm:$0xff]
  %v129 = vld [vmem:[%s1 + $0x340] sm:$0xff]
  %v130 = vld [vmem:[%s1 + $0x348] sm:$0xff]
  %v131 = vld [vmem:[%s1 + $0x350] sm:$0xff]
  %v132 = vld [vmem:[%s1 + $0x358] sm:$0xff]
  %v133 = vld [vmem:[%s1 + $0x360] sm:$0xff]
  %v134 = vld [vmem:[%s1 + $0x368] sm:$0xff]
  %v135 = vld [vmem:[%s1 + $0x370] sm:$0xff]
  %v136 = vld [vmem:[%s1 + $0x378] sm:$0xff]
  %v137 = vld [vmem:[%s1 + $0x380] sm:$0xff]
  %v138 = vld [vmem:[%s1 + $0x388] sm:$0xff]
  %v139 = vld [vmem:[%s1 + $0x390] sm:$0xff]
  %v140 = vld [vmem:[%s1 + $0x398] sm:$0xff]
  %v141 = vld [vmem:[%s1 + $0x3a0] sm:$0xff]
  %v142 = vld [vmem:[%s1 + $0x3a8] sm:$0xff]
  %v143 = vld [vmem:[%s1 + $0x3b0] sm:$0xff]
  %v144 = vld [vmem:[%s1 + $0x3b8] sm:$0xff]
  %v145 = vld [vmem:[%s1 + $0x3c0] sm:$0xff]
  %v146 = vld [vmem:[%s1 + $0x3c8] sm:$0xff]
  %v147 = vld [vmem:[%s1 + $0x3d0] sm:$0xff]
  %v148 = vld [vmem:[%s1 + $0x3d8] sm:$0xff]
  %v149 = vld [vmem:[%s1 + $0x3e0] sm:$0xff]
  %v150 = vld [vmem:[%s1 + $0x3e8] sm:$0xff]
  %v151 = vld [vmem:[%s1 + $0x3f0] sm:$0xff]
  %v152 = vld [vmem:[%s1 + $0x3f8] sm:$0xff]
  %v153 = vld [vmem:[%s1 + $0x400] sm:$0xff]
  %v154 = vld [vmem:[%s1 + $0x408] sm:$0xff]
  %v155 = vld [vmem:[%s1 + $0x410] sm:$0xff]
  %v156 = vld [vmem:[%s1 + $0x418] sm:$0xff]
  %v157 = vld [vmem:[%s1 + $0x420] sm:$0xff]
  %v158 = vld [vmem:[%s1 + $0x428] sm:$0xff]
  %v159 = vld [vmem:[%s1 + $0x430] sm:$0xff]
  %v160 = vld [vmem:[%s1 + $0x438] sm:$0xff]
  %v161 = vld [vmem:[%s1 + $0x440] sm:$0xff]
  %v162 = vld [vmem:[%s1 + $0x448] sm:$0xff]
  %v163 = vld [vmem:[%s1 + $0x450] sm:$0xff]
  %v164 = vld [vmem:[%s1 + $0x458] sm:$0xff]
  %v165 = vld [vmem:[%s1 + $0x460] sm:$0xff]
  %v166 = vld [vmem:[%s1 + $0x468] sm:$0xff]
  %v167 = vld [vmem:[%s1 + $0x470] sm:$0xff]
  %v168 = vld [vmem:[%s1 + $0x478] sm:$0xff]
  %v169 = vld [vmem:[%s2] sm:$0x3]
  %v171 = vlaneseq
  %v172 = vshrl.u32 %v171, 7
  %v173 = vsub.s32 0, %v172
  %v174 = vrot.slane %v169, %v173
  %v175 = vlaneseq
  %v176 = vshrl.u32 %v175, 7
  %v177 = vsub.s32 1, %v176
  %v178 = vrot.slane %v169, %v177
  %v191 = vunpack.c.l.b16 %v15
  %v192 = vunpack.c.h.b16 %v15
  %v193 = vunpack.c.l.b16 %v16
  %v194 = vunpack.c.h.b16 %v16
  %v195 = vunpack.c.l.b16 %v17
  %v196 = vunpack.c.h.b16 %v17
  %v197 = vunpack.c.l.b16 %v18
  %v198 = vunpack.c.h.b16 %v18
  %v199 = vunpack.c.l.b16 %v19
  %v200 = vunpack.c.l.b16 %v20
  %v201 = vunpack.c.h.b16 %v20
  %v202 = vunpack.c.l.b16 %v21
  %v203 = vunpack.c.h.b16 %v21
  %v204 = vunpack.c.l.b16 %v22
  %v205 = vunpack.c.h.b16 %v22
  %v206 = vunpack.c.l.b16 %v23
  %v207 = vunpack.c.h.b16 %v23
  %v208 = vunpack.c.l.b16 %v24
  %v209 = vpack.c.b16 %v200, %v191
  %v210 = vpack.c.b16 %v201, %v192
  %v211 = vpack.c.b16 %v202, %v193
  %v212 = vpack.c.b16 %v203, %v194
  %v213 = vpack.c.b16 %v204, %v195
  %v214 = vpack.c.b16 %v205, %v196
  %v215 = vpack.c.b16 %v206, %v197
  %v216 = vpack.c.b16 %v207, %v198
  %v217 = vpack.c.b16 %v208, %v199
  %v371 = vunpack.c.l.b16 %v25
  %v372 = vunpack.c.h.b16 %v25
  %v373 = vunpack.c.l.b16 %v26
  %v374 = vunpack.c.h.b16 %v26
  %v375 = vunpack.c.l.b16 %v27
  %v376 = vunpack.c.h.b16 %v27
  %v377 = vunpack.c.l.b16 %v28
  %v378 = vunpack.c.h.b16 %v28
  %v379 = vunpack.c.l.b16 %v29
  %v380 = vunpack.c.h.b16 %v29
  %v381 = vunpack.c.l.b16 %v30
  %v382 = vunpack.c.h.b16 %v30
  %v383 = vunpack.c.l.b16 %v31
  %v384 = vunpack.c.h.b16 %v31
  %v385 = vunpack.c.l.b16 %v32
  %v386 = vunpack.c.h.b16 %v32
  %v387 = vunpack.c.l.b16 %v33
  %v388 = vunpack.c.h.b16 %v33
  %v389 = vunpack.c.l.b16 %v34
  %v390 = vunpack.c.h.b16 %v34
  %v391 = vunpack.c.l.b16 %v35
  %v392 = vunpack.c.h.b16 %v35
  %v393 = vunpack.c.l.b16 %v36
  %v394 = vunpack.c.h.b16 %v36
  %v395 = vunpack.c.l.b16 %v37
  %v396 = vunpack.c.h.b16 %v37
  %v397 = vunpack.c.l.b16 %v38
  %v398 = vunpack.c.h.b16 %v38
  %v399 = vunpack.c.l.b16 %v39
  %v400 = vunpack.c.h.b16 %v39
  %v401 = vunpack.c.l.b16 %v40
  %v402 = vunpack.c.h.b16 %v40
  %v403 = vunpack.c.l.b16 %v41
  %v404 = vunpack.c.h.b16 %v41
  %v405 = vunpack.c.l.b16 %v42
  %v406 = vunpack.c.h.b16 %v42
  %v407 = vunpack.c.l.b16 %v43
  %v408 = vunpack.c.h.b16 %v43
  %v409 = vunpack.c.l.b16 %v44
  %v410 = vunpack.c.h.b16 %v44
  %v411 = vunpack.c.l.b16 %v45
  %v412 = vunpack.c.h.b16 %v45
  %v413 = vunpack.c.l.b16 %v46
  %v414 = vunpack.c.h.b16 %v46
  %v415 = vunpack.c.l.b16 %v47
  %v416 = vunpack.c.h.b16 %v47
  %v417 = vunpack.c.l.b16 %v48
  %v418 = vunpack.c.h.b16 %v48
  %v419 = vunpack.c.l.b16 %v49
  %v420 = vunpack.c.h.b16 %v49
  %v421 = vunpack.c.l.b16 %v50
  %v422 = vunpack.c.h.b16 %v50
  %v423 = vunpack.c.l.b16 %v51
  %v424 = vunpack.c.h.b16 %v51
  %v425 = vunpack.c.l.b16 %v52
  %v426 = vunpack.c.h.b16 %v52
  %v427 = vunpack.c.l.b16 %v53
  %v428 = vunpack.c.h.b16 %v53
  %v429 = vunpack.c.l.b16 %v54
  %v430 = vunpack.c.h.b16 %v54
  %v431 = vunpack.c.l.b16 %v55
  %v432 = vunpack.c.h.b16 %v55
  %v433 = vunpack.c.l.b16 %v56
  %v434 = vunpack.c.h.b16 %v56
  %v435 = vunpack.c.l.b16 %v57
  %v436 = vunpack.c.h.b16 %v57
  %v437 = vunpack.c.l.b16 %v58
  %v438 = vunpack.c.h.b16 %v58
  %v439 = vunpack.c.l.b16 %v59
  %v440 = vunpack.c.h.b16 %v59
  %v441 = vunpack.c.l.b16 %v60
  %v442 = vunpack.c.h.b16 %v60
  %v443 = vunpack.c.l.b16 %v61
  %v444 = vunpack.c.h.b16 %v61
  %v445 = vunpack.c.l.b16 %v62
  %v446 = vunpack.c.h.b16 %v62
  %v447 = vunpack.c.l.b16 %v63
  %v448 = vunpack.c.h.b16 %v63
  %v449 = vunpack.c.l.b16 %v64
  %v450 = vunpack.c.h.b16 %v64
  %v451 = vunpack.c.l.b16 %v65
  %v452 = vunpack.c.h.b16 %v65
  %v453 = vunpack.c.l.b16 %v66
  %v454 = vunpack.c.h.b16 %v66
  %v455 = vunpack.c.l.b16 %v67
  %v456 = vunpack.c.h.b16 %v67
  %v457 = vunpack.c.l.b16 %v68
  %v458 = vunpack.c.h.b16 %v68
  %v459 = vunpack.c.l.b16 %v69
  %v460 = vunpack.c.h.b16 %v69
  %v461 = vunpack.c.l.b16 %v70
  %v462 = vunpack.c.h.b16 %v70
  %v463 = vunpack.c.l.b16 %v71
  %v464 = vunpack.c.h.b16 %v71
  %v465 = vunpack.c.l.b16 %v72
  %v466 = vunpack.c.h.b16 %v72
  %v467 = vunpack.c.l.b16 %v73
  %v468 = vunpack.c.h.b16 %v73
  %v469 = vunpack.c.l.b16 %v74
  %v470 = vunpack.c.h.b16 %v74
  %v471 = vunpack.c.l.b16 %v75
  %v472 = vunpack.c.h.b16 %v75
  %v473 = vunpack.c.l.b16 %v76
  %v474 = vunpack.c.h.b16 %v76
  %v475 = vunpack.c.l.b16 %v77
  %v476 = vunpack.c.h.b16 %v77
  %v477 = vunpack.c.l.b16 %v78
  %v478 = vunpack.c.h.b16 %v78
  %v479 = vunpack.c.l.b16 %v79
  %v480 = vunpack.c.h.b16 %v79
  %v481 = vunpack.c.l.b16 %v80
  %v482 = vunpack.c.h.b16 %v80
  %v483 = vunpack.c.l.b16 %v81
  %v484 = vunpack.c.h.b16 %v81
  %v485 = vunpack.c.l.b16 %v82
  %v486 = vunpack.c.h.b16 %v82
  %v487 = vunpack.c.l.b16 %v83
  %v488 = vunpack.c.h.b16 %v83
  %v489 = vunpack.c.l.b16 %v84
  %v490 = vunpack.c.h.b16 %v84
  %v491 = vunpack.c.l.b16 %v85
  %v492 = vunpack.c.h.b16 %v85
  %v493 = vunpack.c.l.b16 %v86
  %v494 = vunpack.c.h.b16 %v86
  %v495 = vunpack.c.l.b16 %v87
  %v496 = vunpack.c.h.b16 %v87
  %v497 = vunpack.c.l.b16 %v88
  %v498 = vunpack.c.h.b16 %v88
  %v499 = vunpack.c.l.b16 %v89
  %v500 = vunpack.c.h.b16 %v89
  %v501 = vunpack.c.l.b16 %v90
  %v502 = vunpack.c.h.b16 %v90
  %v503 = vunpack.c.l.b16 %v91
  %v504 = vunpack.c.h.b16 %v91
  %v505 = vunpack.c.l.b16 %v92
  %v506 = vunpack.c.h.b16 %v92
  %v507 = vunpack.c.l.b16 %v93
  %v508 = vunpack.c.h.b16 %v93
  %v509 = vunpack.c.l.b16 %v94
  %v510 = vunpack.c.h.b16 %v94
  %v511 = vunpack.c.l.b16 %v95
  %v512 = vunpack.c.h.b16 %v95
  %v513 = vunpack.c.l.b16 %v96
  %v514 = vunpack.c.h.b16 %v96
  %v515 = vunpack.c.l.b16 %v97
  %v516 = vunpack.c.h.b16 %v97
  %v517 = vunpack.c.l.b16 %v98
  %v518 = vunpack.c.h.b16 %v98
  %v519 = vunpack.c.l.b16 %v99
  %v520 = vunpack.c.h.b16 %v99
  %v521 = vunpack.c.l.b16 %v100
  %v522 = vunpack.c.h.b16 %v100
  %v523 = vunpack.c.l.b16 %v101
  %v524 = vunpack.c.h.b16 %v101
  %v525 = vunpack.c.l.b16 %v102
  %v526 = vunpack.c.h.b16 %v102
  %v527 = vunpack.c.l.b16 %v103
  %v528 = vunpack.c.h.b16 %v103
  %v529 = vunpack.c.l.b16 %v104
  %v530 = vunpack.c.h.b16 %v104
  %v531 = vunpack.c.l.b16 %v105
  %v532 = vunpack.c.h.b16 %v105
  %v533 = vunpack.c.l.b16 %v106
  %v534 = vunpack.c.h.b16 %v106
  %v535 = vunpack.c.l.b16 %v107
  %v536 = vunpack.c.h.b16 %v107
  %v537 = vunpack.c.l.b16 %v108
  %v538 = vunpack.c.h.b16 %v108
  %v539 = vunpack.c.l.b16 %v109
  %v540 = vunpack.c.h.b16 %v109
  %v541 = vunpack.c.l.b16 %v110
  %v542 = vunpack.c.h.b16 %v110
  %v543 = vunpack.c.l.b16 %v111
  %v544 = vunpack.c.h.b16 %v111
  %v545 = vunpack.c.l.b16 %v112
  %v546 = vunpack.c.h.b16 %v112
  %v547 = vunpack.c.l.b16 %v113
  %v548 = vunpack.c.h.b16 %v113
  %v549 = vunpack.c.l.b16 %v114
  %v550 = vunpack.c.h.b16 %v114
  %v551 = vunpack.c.l.b16 %v115
  %v552 = vunpack.c.h.b16 %v115
  %v553 = vunpack.c.l.b16 %v116
  %v554 = vunpack.c.h.b16 %v116
  %v555 = vunpack.c.l.b16 %v117
  %v556 = vunpack.c.h.b16 %v117
  %v557 = vunpack.c.l.b16 %v118
  %v558 = vunpack.c.h.b16 %v118
  %v559 = vunpack.c.l.b16 %v119
  %v560 = vunpack.c.h.b16 %v119
  %v561 = vunpack.c.l.b16 %v120
  %v562 = vunpack.c.h.b16 %v120
  %v563 = vunpack.c.l.b16 %v121
  %v564 = vunpack.c.h.b16 %v121
  %v565 = vunpack.c.l.b16 %v122
  %v566 = vunpack.c.h.b16 %v122
  %v567 = vunpack.c.l.b16 %v123
  %v568 = vunpack.c.h.b16 %v123
  %v569 = vunpack.c.l.b16 %v124
  %v570 = vunpack.c.h.b16 %v124
  %v571 = vunpack.c.l.b16 %v125
  %v572 = vunpack.c.h.b16 %v125
  %v573 = vunpack.c.l.b16 %v126
  %v574 = vunpack.c.h.b16 %v126
  %v575 = vunpack.c.l.b16 %v127
  %v576 = vunpack.c.h.b16 %v127
  %v577 = vunpack.c.l.b16 %v128
  %v578 = vunpack.c.h.b16 %v128
  %v579 = vunpack.c.l.b16 %v129
  %v580 = vunpack.c.h.b16 %v129
  %v581 = vunpack.c.l.b16 %v130
  %v582 = vunpack.c.h.b16 %v130
  %v583 = vunpack.c.l.b16 %v131
  %v584 = vunpack.c.h.b16 %v131
  %v585 = vunpack.c.l.b16 %v132
  %v586 = vunpack.c.h.b16 %v132
  %v587 = vunpack.c.l.b16 %v133
  %v588 = vunpack.c.h.b16 %v133
  %v589 = vunpack.c.l.b16 %v134
  %v590 = vunpack.c.h.b16 %v134
  %v591 = vunpack.c.l.b16 %v135
  %v592 = vunpack.c.h.b16 %v135
  %v593 = vunpack.c.l.b16 %v136
  %v594 = vunpack.c.h.b16 %v136
  %v595 = vunpack.c.l.b16 %v137
  %v596 = vunpack.c.h.b16 %v137
  %v597 = vunpack.c.l.b16 %v138
  %v598 = vunpack.c.h.b16 %v138
  %v599 = vunpack.c.l.b16 %v139
  %v600 = vunpack.c.h.b16 %v139
  %v601 = vunpack.c.l.b16 %v140
  %v602 = vunpack.c.h.b16 %v140
  %v603 = vunpack.c.l.b16 %v141
  %v604 = vunpack.c.h.b16 %v141
  %v605 = vunpack.c.l.b16 %v142
  %v606 = vunpack.c.h.b16 %v142
  %v607 = vunpack.c.l.b16 %v143
  %v608 = vunpack.c.h.b16 %v143
  %v609 = vunpack.c.l.b16 %v144
  %v610 = vunpack.c.h.b16 %v144
  %v611 = vunpack.c.l.b16 %v145
  %v612 = vunpack.c.h.b16 %v145
  %v613 = vunpack.c.l.b16 %v146
  %v614 = vunpack.c.h.b16 %v146
  %v615 = vunpack.c.l.b16 %v147
  %v616 = vunpack.c.h.b16 %v147
  %v617 = vunpack.c.l.b16 %v148
  %v618 = vunpack.c.h.b16 %v148
  %v619 = vunpack.c.l.b16 %v149
  %v620 = vunpack.c.h.b16 %v149
  %v621 = vunpack.c.l.b16 %v150
  %v622 = vunpack.c.h.b16 %v150
  %v623 = vunpack.c.l.b16 %v151
  %v624 = vunpack.c.h.b16 %v151
  %v625 = vunpack.c.l.b16 %v152
  %v626 = vunpack.c.h.b16 %v152
  %v627 = vunpack.c.l.b16 %v153
  %v628 = vunpack.c.h.b16 %v153
  %v629 = vunpack.c.l.b16 %v154
  %v630 = vunpack.c.h.b16 %v154
  %v631 = vunpack.c.l.b16 %v155
  %v632 = vunpack.c.h.b16 %v155
  %v633 = vunpack.c.l.b16 %v156
  %v634 = vunpack.c.h.b16 %v156
  %v635 = vunpack.c.l.b16 %v157
  %v636 = vunpack.c.h.b16 %v157
  %v637 = vunpack.c.l.b16 %v158
  %v638 = vunpack.c.h.b16 %v158
  %v639 = vunpack.c.l.b16 %v159
  %v640 = vunpack.c.h.b16 %v159
  %v641 = vunpack.c.l.b16 %v160
  %v642 = vunpack.c.h.b16 %v160
  %v643 = vunpack.c.l.b16 %v161
  %v644 = vunpack.c.h.b16 %v161
  %v645 = vunpack.c.l.b16 %v162
  %v646 = vunpack.c.h.b16 %v162
  %v647 = vunpack.c.l.b16 %v163
  %v648 = vunpack.c.h.b16 %v163
  %v649 = vunpack.c.l.b16 %v164
  %v650 = vunpack.c.h.b16 %v164
  %v651 = vunpack.c.l.b16 %v165
  %v652 = vunpack.c.h.b16 %v165
  %v653 = vunpack.c.l.b16 %v166
  %v654 = vunpack.c.h.b16 %v166
  %v655 = vunpack.c.l.b16 %v167
  %v656 = vunpack.c.h.b16 %v167
  %v657 = vunpack.c.l.b16 %v168
  %v658 = vunpack.c.h.b16 %v168
  %v659 = vpack.c.b16 %v373, %v371
  %v660 = vpack.c.b16 %v374, %v372
  %v661 = vpack.c.b16 %v377, %v375
  %v662 = vpack.c.b16 %v378, %v376
  %v663 = vpack.c.b16 %v381, %v379
  %v664 = vpack.c.b16 %v382, %v380
  %v665 = vpack.c.b16 %v385, %v383
  %v666 = vpack.c.b16 %v386, %v384
  %v667 = vpack.c.b16 %v389, %v387
  %v668 = vpack.c.b16 %v390, %v388
  %v669 = vpack.c.b16 %v393, %v391
  %v670 = vpack.c.b16 %v394, %v392
  %v671 = vpack.c.b16 %v397, %v395
  %v672 = vpack.c.b16 %v398, %v396
  %v673 = vpack.c.b16 %v401, %v399
  %v674 = vpack.c.b16 %v402, %v400
  %v675 = vpack.c.b16 %v405, %v403
  %v676 = vpack.c.b16 %v406, %v404
  %v677 = vpack.c.b16 %v409, %v407
  %v678 = vpack.c.b16 %v410, %v408
  %v679 = vpack.c.b16 %v413, %v411
  %v680 = vpack.c.b16 %v414, %v412
  %v681 = vpack.c.b16 %v417, %v415
  %v682 = vpack.c.b16 %v418, %v416
  %v683 = vpack.c.b16 %v421, %v419
  %v684 = vpack.c.b16 %v422, %v420
  %v685 = vpack.c.b16 %v425, %v423
  %v686 = vpack.c.b16 %v426, %v424
  %v687 = vpack.c.b16 %v429, %v427
  %v688 = vpack.c.b16 %v430, %v428
  %v689 = vpack.c.b16 %v433, %v431
  %v690 = vpack.c.b16 %v434, %v432
  %v691 = vpack.c.b16 %v437, %v435
  %v692 = vpack.c.b16 %v438, %v436
  %v693 = vpack.c.b16 %v441, %v439
  %v694 = vpack.c.b16 %v442, %v440
  %v695 = vpack.c.b16 %v445, %v443
  %v696 = vpack.c.b16 %v446, %v444
  %v697 = vpack.c.b16 %v449, %v447
  %v698 = vpack.c.b16 %v450, %v448
  %v699 = vpack.c.b16 %v453, %v451
  %v700 = vpack.c.b16 %v454, %v452
  %v701 = vpack.c.b16 %v457, %v455
  %v702 = vpack.c.b16 %v458, %v456
  %v703 = vpack.c.b16 %v461, %v459
  %v704 = vpack.c.b16 %v462, %v460
  %v705 = vpack.c.b16 %v465, %v463
  %v706 = vpack.c.b16 %v466, %v464
  %v707 = vpack.c.b16 %v469, %v467
  %v708 = vpack.c.b16 %v470, %v468
  %v709 = vpack.c.b16 %v473, %v471
  %v710 = vpack.c.b16 %v474, %v472
  %v711 = vpack.c.b16 %v477, %v475
  %v712 = vpack.c.b16 %v478, %v476
  %v713 = vpack.c.b16 %v481, %v479
  %v714 = vpack.c.b16 %v482, %v480
  %v715 = vpack.c.b16 %v485, %v483
  %v716 = vpack.c.b16 %v486, %v484
  %v717 = vpack.c.b16 %v489, %v487
  %v718 = vpack.c.b16 %v490, %v488
  %v719 = vpack.c.b16 %v493, %v491
  %v720 = vpack.c.b16 %v494, %v492
  %v721 = vpack.c.b16 %v497, %v495
  %v722 = vpack.c.b16 %v498, %v496
  %v723 = vpack.c.b16 %v501, %v499
  %v724 = vpack.c.b16 %v502, %v500
  %v725 = vpack.c.b16 %v505, %v503
  %v726 = vpack.c.b16 %v506, %v504
  %v727 = vpack.c.b16 %v509, %v507
  %v728 = vpack.c.b16 %v510, %v508
  %v729 = vpack.c.b16 %v513, %v511
  %v730 = vpack.c.b16 %v514, %v512
  %v731 = vpack.c.b16 %v517, %v515
  %v732 = vpack.c.b16 %v518, %v516
  %v733 = vpack.c.b16 %v521, %v519
  %v734 = vpack.c.b16 %v522, %v520
  %v735 = vpack.c.b16 %v525, %v523
  %v736 = vpack.c.b16 %v526, %v524
  %v737 = vpack.c.b16 %v529, %v527
  %v738 = vpack.c.b16 %v530, %v528
  %v739 = vpack.c.b16 %v533, %v531
  %v740 = vpack.c.b16 %v534, %v532
  %v741 = vpack.c.b16 %v537, %v535
  %v742 = vpack.c.b16 %v538, %v536
  %v743 = vpack.c.b16 %v541, %v539
  %v744 = vpack.c.b16 %v542, %v540
  %v745 = vpack.c.b16 %v545, %v543
  %v746 = vpack.c.b16 %v546, %v544
  %v747 = vpack.c.b16 %v549, %v547
  %v748 = vpack.c.b16 %v550, %v548
  %v749 = vpack.c.b16 %v553, %v551
  %v750 = vpack.c.b16 %v554, %v552
  %v751 = vpack.c.b16 %v557, %v555
  %v752 = vpack.c.b16 %v558, %v556
  %v753 = vpack.c.b16 %v561, %v559
  %v754 = vpack.c.b16 %v562, %v560
  %v755 = vpack.c.b16 %v565, %v563
  %v756 = vpack.c.b16 %v566, %v564
  %v757 = vpack.c.b16 %v569, %v567
  %v758 = vpack.c.b16 %v570, %v568
  %v759 = vpack.c.b16 %v573, %v571
  %v760 = vpack.c.b16 %v574, %v572
  %v761 = vpack.c.b16 %v577, %v575
  %v762 = vpack.c.b16 %v578, %v576
  %v763 = vpack.c.b16 %v581, %v579
  %v764 = vpack.c.b16 %v582, %v580
  %v765 = vpack.c.b16 %v585, %v583
  %v766 = vpack.c.b16 %v586, %v584
  %v767 = vpack.c.b16 %v589, %v587
  %v768 = vpack.c.b16 %v590, %v588
  %v769 = vpack.c.b16 %v593, %v591
  %v770 = vpack.c.b16 %v594, %v592
  %v771 = vpack.c.b16 %v597, %v595
  %v772 = vpack.c.b16 %v598, %v596
  %v773 = vpack.c.b16 %v601, %v599
  %v774 = vpack.c.b16 %v602, %v600
  %v775 = vpack.c.b16 %v605, %v603
  %v776 = vpack.c.b16 %v606, %v604
  %v777 = vpack.c.b16 %v609, %v607
  %v778 = vpack.c.b16 %v610, %v608
  %v779 = vpack.c.b16 %v613, %v611
  %v780 = vpack.c.b16 %v614, %v612
  %v781 = vpack.c.b16 %v617, %v615
  %v782 = vpack.c.b16 %v618, %v616
  %v783 = vpack.c.b16 %v621, %v619
  %v784 = vpack.c.b16 %v622, %v620
  %v785 = vpack.c.b16 %v625, %v623
  %v786 = vpack.c.b16 %v626, %v624
  %v787 = vpack.c.b16 %v629, %v627
  %v788 = vpack.c.b16 %v630, %v628
  %v789 = vpack.c.b16 %v633, %v631
  %v790 = vpack.c.b16 %v634, %v632
  %v791 = vpack.c.b16 %v637, %v635
  %v792 = vpack.c.b16 %v638, %v636
  %v793 = vpack.c.b16 %v641, %v639
  %v794 = vpack.c.b16 %v642, %v640
  %v795 = vpack.c.b16 %v645, %v643
  %v796 = vpack.c.b16 %v646, %v644
  %v797 = vpack.c.b16 %v649, %v647
  %v798 = vpack.c.b16 %v650, %v648
  %v799 = vpack.c.b16 %v653, %v651
  %v800 = vpack.c.b16 %v654, %v652
  %v801 = vpack.c.b16 %v657, %v655
  %v802 = vpack.c.b16 %v658, %v656
  %947 = vmatprep.subr.bf16.mxu0 %v660
  %948 = vmatpush1.bf16.msra.mxu0 %v659
  %949 = vmatprep.subr.bf16.mxu0 %v662
  %950 = vmatpush1.bf16.msra.mxu0 %v661
  %951 = vmatprep.subr.bf16.mxu0 %v664
  %952 = vmatpush1.bf16.msra.mxu0 %v663
  %953 = vmatprep.subr.bf16.mxu0 %v666
  %954 = vmatpush1.bf16.msra.mxu0 %v665
  %955 = vmatprep.subr.bf16.mxu0 %v668
  %956 = vmatpush1.bf16.msra.mxu0 %v667
  %957 = vmatprep.subr.bf16.mxu0 %v670
  %958 = vmatpush1.bf16.msra.mxu0 %v669
  %959 = vmatprep.subr.bf16.mxu0 %v672
  %960 = vmatpush1.bf16.msra.mxu0 %v671
  %961 = vmatprep.subr.bf16.mxu0 %v674
  %962 = vmatpush1.bf16.msra.mxu0 %v673
  %963 = vmatprep.subr.bf16.mxu0 %v676
  %964 = vmatpush1.bf16.msra.mxu0 %v675
  %965 = vmatprep.subr.bf16.mxu0 %v678
  %966 = vmatpush1.bf16.msra.mxu0 %v677
  %967 = vmatprep.subr.bf16.mxu0 %v680
  %968 = vmatpush1.bf16.msra.mxu0 %v679
  %969 = vmatprep.subr.bf16.mxu0 %v682
  %970 = vmatpush1.bf16.msra.mxu0 %v681
  %971 = vmatprep.subr.bf16.mxu0 %v684
  %972 = vmatpush1.bf16.msra.mxu0 %v683
  %973 = vmatprep.subr.bf16.mxu0 %v686
  %974 = vmatpush1.bf16.msra.mxu0 %v685
  %975 = vmatprep.subr.bf16.mxu0 %v688
  %976 = vmatpush1.bf16.msra.mxu0 %v687
  %977 = vmatprep.subr.bf16.mxu0 %v690
  %978 = vmatpush1.bf16.msra.mxu0 %v689
  %979 = vmatprep.mubr.bf16.mxu0 %v210
  %980 = vmatmul.mubr.bf16.gmra.mrb[0].mxu0 %v209
  %v981 = vpop.f32.mrb[0].mxu0
  %v982 = vadd.f32 %v174, %v981
  %v983 = vpop.f32.mrb[0].mxu0
  %v984 = vadd.f32 %v178, %v983
  %v985 = vpop.f32.mrb[0].mxu0
  %v986 = vadd.f32 %v174, %v985
  %v987 = vpop.f32.mrb[0].mxu0
  %v988 = vadd.f32 %v178, %v987
  %989 = vdwg.mxu0
  %990 = vmatprep.subr.bf16.mxu0 %v692
  %991 = vmatpush1.bf16.msra.mxu0 %v691
  %992 = vmatprep.subr.bf16.mxu0 %v694
  %993 = vmatpush1.bf16.msra.mxu0 %v693
  %994 = vmatprep.subr.bf16.mxu0 %v696
  %995 = vmatpush1.bf16.msra.mxu0 %v695
  %996 = vmatprep.subr.bf16.mxu0 %v698
  %997 = vmatpush1.bf16.msra.mxu0 %v697
  %998 = vmatprep.subr.bf16.mxu0 %v700
  %999 = vmatpush1.bf16.msra.mxu0 %v699
  %1000 = vmatprep.subr.bf16.mxu0 %v702
  %1001 = vmatpush1.bf16.msra.mxu0 %v701
  %1002 = vmatprep.subr.bf16.mxu0 %v704
  %1003 = vmatpush1.bf16.msra.mxu0 %v703
  %1004 = vmatprep.subr.bf16.mxu0 %v706
  %1005 = vmatpush1.bf16.msra.mxu0 %v705
  %1006 = vmatprep.subr.bf16.mxu0 %v708
  %1007 = vmatpush1.bf16.msra.mxu0 %v707
  %1008 = vmatprep.subr.bf16.mxu0 %v710
  %1009 = vmatpush1.bf16.msra.mxu0 %v709
  %1010 = vmatprep.subr.bf16.mxu0 %v712
  %1011 = vmatpush1.bf16.msra.mxu0 %v711
  %1012 = vmatprep.subr.bf16.mxu0 %v714
  %1013 = vmatpush1.bf16.msra.mxu0 %v713
  %1014 = vmatprep.subr.bf16.mxu0 %v716
  %1015 = vmatpush1.bf16.msra.mxu0 %v715
  %1016 = vmatprep.subr.bf16.mxu0 %v718
  %1017 = vmatpush1.bf16.msra.mxu0 %v717
  %1018 = vmatprep.subr.bf16.mxu0 %v720
  %1019 = vmatpush1.bf16.msra.mxu0 %v719
  %1020 = vmatprep.subr.bf16.mxu0 %v722
  %1021 = vmatpush1.bf16.msra.mxu0 %v721
  %1022 = vmatprep.mubr.bf16.mxu0 %v212
  %1023 = vmatmul.mubr.bf16.gmra.mrb[0].mxu0 %v211
  %v1024 = vpop.f32.mrb[0].mxu0
  %v1025 = vadd.f32 %v982, %v1024
  %v1026 = vpop.f32.mrb[0].mxu0
  %v1027 = vadd.f32 %v984, %v1026
  %v1028 = vpop.f32.mrb[0].mxu0
  %v1029 = vadd.f32 %v986, %v1028
  %v1030 = vpop.f32.mrb[0].mxu0
  %v1031 = vadd.f32 %v988, %v1030
  %1032 = vdwg.mxu0
  %1033 = vmatprep.subr.bf16.mxu0 %v724
  %1034 = vmatpush1.bf16.msra.mxu0 %v723
  %1035 = vmatprep.subr.bf16.mxu0 %v726
  %1036 = vmatpush1.bf16.msra.mxu0 %v725
  %1037 = vmatprep.subr.bf16.mxu0 %v728
  %1038 = vmatpush1.bf16.msra.mxu0 %v727
  %1039 = vmatprep.subr.bf16.mxu0 %v730
  %1040 = vmatpush1.bf16.msra.mxu0 %v729
  %1041 = vmatprep.subr.bf16.mxu0 %v732
  %1042 = vmatpush1.bf16.msra.mxu0 %v731
  %1043 = vmatprep.subr.bf16.mxu0 %v734
  %1044 = vmatpush1.bf16.msra.mxu0 %v733
  %1045 = vmatprep.subr.bf16.mxu0 %v736
  %1046 = vmatpush1.bf16.msra.mxu0 %v735
  %1047 = vmatprep.subr.bf16.mxu0 %v738
  %1048 = vmatpush1.bf16.msra.mxu0 %v737
  %1049 = vmatprep.subr.bf16.mxu0 %v740
  %1050 = vmatpush1.bf16.msra.mxu0 %v739
  %1051 = vmatprep.subr.bf16.mxu0 %v742
  %1052 = vmatpush1.bf16.msra.mxu0 %v741
  %1053 = vmatprep.subr.bf16.mxu0 %v744
  %1054 = vmatpush1.bf16.msra.mxu0 %v743
  %1055 = vmatprep.subr.bf16.mxu0 %v746
  %1056 = vmatpush1.bf16.msra.mxu0 %v745
  %1057 = vmatprep.subr.bf16.mxu0 %v748
  %1058 = vmatpush1.bf16.msra.mxu0 %v747
  %1059 = vmatprep.subr.bf16.mxu0 %v750
  %1060 = vmatpush1.bf16.msra.mxu0 %v749
  %1061 = vmatprep.subr.bf16.mxu0 %v752
  %1062 = vmatpush1.bf16.msra.mxu0 %v751
  %1063 = vmatprep.subr.bf16.mxu0 %v754
  %1064 = vmatpush1.bf16.msra.mxu0 %v753
  %1065 = vmatprep.mubr.bf16.mxu0 %v214
  %1066 = vmatmul.mubr.bf16.gmra.mrb[0].mxu0 %v213
  %v1067 = vpop.f32.mrb[0].mxu0
  %v1068 = vadd.f32 %v1025, %v1067
  %v1069 = vpop.f32.mrb[0].mxu0
  %v1070 = vadd.f32 %v1027, %v1069
  %v1071 = vpop.f32.mrb[0].mxu0
  %v1072 = vadd.f32 %v1029, %v1071
  %v1073 = vpop.f32.mrb[0].mxu0
  %v1074 = vadd.f32 %v1031, %v1073
  %1075 = vdwg.mxu0
  %1076 = vmatprep.subr.bf16.mxu0 %v756
  %1077 = vmatpush1.bf16.msra.mxu0 %v755
  %1078 = vmatprep.subr.bf16.mxu0 %v758
  %1079 = vmatpush1.bf16.msra.mxu0 %v757
  %1080 = vmatprep.subr.bf16.mxu0 %v760
  %1081 = vmatpush1.bf16.msra.mxu0 %v759
  %1082 = vmatprep.subr.bf16.mxu0 %v762
  %1083 = vmatpush1.bf16.msra.mxu0 %v761
  %1084 = vmatprep.subr.bf16.mxu0 %v764
  %1085 = vmatpush1.bf16.msra.mxu0 %v763
  %1086 = vmatprep.subr.bf16.mxu0 %v766
  %1087 = vmatpush1.bf16.msra.mxu0 %v765
  %1088 = vmatprep.subr.bf16.mxu0 %v768
  %1089 = vmatpush1.bf16.msra.mxu0 %v767
  %1090 = vmatprep.subr.bf16.mxu0 %v770
  %1091 = vmatpush1.bf16.msra.mxu0 %v769
  %1092 = vmatprep.subr.bf16.mxu0 %v772
  %1093 = vmatpush1.bf16.msra.mxu0 %v771
  %1094 = vmatprep.subr.bf16.mxu0 %v774
  %1095 = vmatpush1.bf16.msra.mxu0 %v773
  %1096 = vmatprep.subr.bf16.mxu0 %v776
  %1097 = vmatpush1.bf16.msra.mxu0 %v775
  %1098 = vmatprep.subr.bf16.mxu0 %v778
  %1099 = vmatpush1.bf16.msra.mxu0 %v777
  %1100 = vmatprep.subr.bf16.mxu0 %v780
  %1101 = vmatpush1.bf16.msra.mxu0 %v779
  %1102 = vmatprep.subr.bf16.mxu0 %v782
  %1103 = vmatpush1.bf16.msra.mxu0 %v781
  %1104 = vmatprep.subr.bf16.mxu0 %v784
  %1105 = vmatpush1.bf16.msra.mxu0 %v783
  %1106 = vmatprep.subr.bf16.mxu0 %v786
  %1107 = vmatpush1.bf16.msra.mxu0 %v785
  %1108 = vmatprep.mubr.bf16.mxu0 %v216
  %1109 = vmatmul.mubr.bf16.gmra.mrb[0].mxu0 %v215
  %v1110 = vpop.f32.mrb[0].mxu0
  %v1111 = vadd.f32 %v1068, %v1110
  %v1112 = vpop.f32.mrb[0].mxu0
  %v1113 = vadd.f32 %v1070, %v1112
  %v1114 = vpop.f32.mrb[0].mxu0
  %v1115 = vadd.f32 %v1072, %v1114
  %v1116 = vpop.f32.mrb[0].mxu0
  %v1117 = vadd.f32 %v1074, %v1116
  %1118 = vdwg.mxu0
  %1119 = vmatprep.subr.bf16.mxu0 %v788
  %1120 = vmatpush1.bf16.msra.mxu0 %v787
  %1121 = vmatprep.subr.bf16.mxu0 %v790
  %1122 = vmatpush1.bf16.msra.mxu0 %v789
  %1123 = vmatprep.subr.bf16.mxu0 %v792
  %1124 = vmatpush1.bf16.msra.mxu0 %v791
  %1125 = vmatprep.subr.bf16.mxu0 %v794
  %1126 = vmatpush1.bf16.msra.mxu0 %v793
  %1127 = vmatprep.subr.bf16.mxu0 %v796
  %1128 = vmatpush1.bf16.msra.mxu0 %v795
  %1129 = vmatprep.subr.bf16.mxu0 %v798
  %1130 = vmatpush1.bf16.msra.mxu0 %v797
  %1131 = vmatprep.subr.bf16.mxu0 %v800
  %1132 = vmatpush1.bf16.msra.mxu0 %v799
  %1133 = vmatprep.subr.bf16.mxu0 %v802
  %1134 = vmatpush1.bf16.msra.mxu0 %v801
  %1135 = vmatprep.subr.bf16.mxu0 0
  %1136 = vmatpush1.bf16.msra.mxu0 0
  %1137 = vmatprep.subr.bf16.mxu0 0
  %1138 = vmatpush1.bf16.msra.mxu0 0
  %1139 = vmatprep.subr.bf16.mxu0 0
  %1140 = vmatpush1.bf16.msra.mxu0 0
  %1141 = vmatprep.subr.bf16.mxu0 0
  %1142 = vmatpush1.bf16.msra.mxu0 0
  %1143 = vmatprep.subr.bf16.mxu0 0
  %1144 = vmatpush1.bf16.msra.mxu0 0
  %1145 = vmatprep.subr.bf16.mxu0 0
  %1146 = vmatpush1.bf16.msra.mxu0 0
  %1147 = vmatprep.subr.bf16.mxu0 0
  %1148 = vmatpush1.bf16.msra.mxu0 0
  %1149 = vmatprep.subr.bf16.mxu0 0
  %1150 = vmatpush1.bf16.msra.mxu0 0
  %1151 = vmatprep.mubr.bf16.mxu0 0
  %1152 = vmatmul.mubr.bf16.gmra.mrb[0].mxu0 %v217
  %v1153 = vpop.f32.mrb[0].mxu0
  %v1154 = vadd.f32 %v1111, %v1153
  %v1155 = vpop.f32.mrb[0].mxu0
  %v1156 = vadd.f32 %v1113, %v1155
  %v1157 = vpop.f32.mrb[0].mxu0
  %v1158 = vadd.f32 %v1115, %v1157
  %v1159 = vpop.f32.mrb[0].mxu0
  %v1160 = vadd.f32 %v1117, %v1159
  %1161 = vdwg.mxu0
  %v1162 = vmul.f32 %v1154, 0.2
  %v1163 = vmul.f32 %v1156, 0.2
  %v1164 = vmul.f32 %v1158, 0.2
  %v1165 = vmul.f32 %v1160, 0.2
  %v1166 = vmax.f32 %v1154, %v1162
  %v1167 = vmax.f32 %v1156, %v1163
  %v1168 = vmax.f32 %v1158, %v1164
  %v1169 = vmax.f32 %v1160, %v1165
  %v1170 = vpack.c.bf16 %v1168, %v1166
  %v1171 = vpack.c.bf16 %v1169, %v1167
  %v1174 = vunpack.c.l.b16 %v1170
  %v1175 = vunpack.c.l.b16 %v1171
  %v1176 = vunpack.c.h.b16 %v1170
  %v1177 = vunpack.c.h.b16 %v1171
  %v1178 = vpack.c.b16 %v1175, %v1174
  %v1179 = vpack.c.b16 %v1177, %v1176
  %1182 = vst [vmem:[%s3] sm:$0xff] %v1178
  %1183 = vst [vmem:[%s3 + $0x8] sm:$0xff] %v1179
  // Predicated region
  $region14: #{_lambda_.9} parent=0 // pred_check
    _
  $region15: #{_lambda_.9} parent=0 // pred_check_branch
    %1185 = sbr.rel (0) target = $region17
  $region16: #{_lambda_.9} parent=0 // pred_region
    _
  $region17: #{_lambda_.9} parent=0 // pred_fallthru
    _
  // Predicated region
  $region18: #{_lambda_.9} parent=0 // pred_check
    _
  $region19: #{_lambda_.9} parent=0 // pred_check_branch
    %1187 = sbr.rel (0) target = $region21
  $region20: #{_lambda_.9} parent=0 // pred_region
    _
  $region21: #{_lambda_.9} parent=0 // pred_fallthru
    _

// kernel: _lambda_.11
$region0: #{_lambda_.11}
  #allocation0 [shape = 'u32[]', space=smem, size = 0x4, offset = 0x4, fixed_abs, tag = 'smem constant byte address 0x4 - core index']
  #allocation1 [shape = 'u32[144,128]{1,0:T(1,128)}', space=vmem, size = 0x12000, scoped, tag = 'internal scratch']
  %s0 = inlined_call_operand.vmem [shape: bf16[16,2304], index: 0, kind: input, shape index: {}]
  %s1 = inlined_call_operand.vmem [shape: bf16[2304,128], index: 1, kind: input, shape index: {}]
  %s2 = inlined_call_operand.vmem [shape: f32[1,128], index: 2, kind: input, shape index: {}]
  %s3 = inlined_call_operand.vmem [shape: f32[16,128], index: 3, kind: output, shape index: {}]
  %s4 = sld [smem:[#allocation0]]
  $region22: #{_lambda_.11} parent=0
    _
  %s6 = ssub.s32 1, %s4
  %s7 = scalar_select 0, %s6, %s4
  // Predicated region
  $region2: #{_lambda_.11} parent=0 // pred_check
    _
  $region3: #{_lambda_.11} parent=0 // pred_check_branch
    %9 = sbr.rel (0) target = $region5
  $region4: #{_lambda_.11} parent=0 // pred_region
    _
  $region5: #{_lambda_.11} parent=0 // pred_fallthru
    _
  // Predicated region
  $region6: #{_lambda_.11} parent=0 // pred_check
    _
  $region7: #{_lambda_.11} parent=0 // pred_check_branch
    %11 = sbr.rel (0) target = $region9
  $region8: #{_lambda_.11} parent=0 // pred_region
    _
  $region9: #{_lambda_.11} parent=0 // pred_fallthru
    _
  // Predicated region
  $region10: #{_lambda_.11} parent=0 // pred_check
    _
  $region11: #{_lambda_.11} parent=0 // pred_check_branch
    %13 = sbr.rel (0) target = $region13
  $region12: #{_lambda_.11} parent=0 // pred_region
    _
  $region13: #{_lambda_.11} parent=0 // pred_fallthru
    _
  %v15 = vld [vmem:[%s0] sm:$0xff]
  %v16 = vld [vmem:[%s0 + $0x8] sm:$0xff]
  %v17 = vld [vmem:[%s0 + $0x10] sm:$0xff]
  %v18 = vld [vmem:[%s0 + $0x18] sm:$0xff]
  %v19 = vld [vmem:[%s0 + $0x20] sm:$0xff]
  %v20 = vld [vmem:[%s0 + $0x28] sm:$0xff]
  %v21 = vld [vmem:[%s0 + $0x30] sm:$0xff]
  %v22 = vld [vmem:[%s0 + $0x38] sm:$0xff]
  %v23 = vld [vmem:[%s0 + $0x40] sm:$0xff]
  %v24 = vld [vmem:[%s0 + $0x48] sm:$0xff]
  %v25 = vld [vmem:[%s0 + $0x50] sm:$0xff]
  %v26 = vld [vmem:[%s0 + $0x58] sm:$0xff]
  %v27 = vld [vmem:[%s0 + $0x60] sm:$0xff]
  %v28 = vld [vmem:[%s0 + $0x68] sm:$0xff]
  %v29 = vld [vmem:[%s0 + $0x70] sm:$0xff]
  %v30 = vld [vmem:[%s0 + $0x78] sm:$0xff]
  %v31 = vld [vmem:[%s0 + $0x80] sm:$0xff]
  %v32 = vld [vmem:[%s0 + $0x88] sm:$0xff]
  %v33 = vld [vmem:[%s1] sm:$0xf]
  %v34 = vld [vmem:[%s1 + $0x4] sm:$0xf]
  %v35 = vld [vmem:[%s1 + $0x8] sm:$0xf]
  %v36 = vld [vmem:[%s1 + $0xc] sm:$0xf]
  %v37 = vld [vmem:[%s1 + $0x10] sm:$0xf]
  %v38 = vld [vmem:[%s1 + $0x14] sm:$0xf]
  %v39 = vld [vmem:[%s1 + $0x18] sm:$0xf]
  %v40 = vld [vmem:[%s1 + $0x1c] sm:$0xf]
  %v41 = vld [vmem:[%s1 + $0x20] sm:$0xf]
  %v42 = vld [vmem:[%s1 + $0x24] sm:$0xf]
  %v43 = vld [vmem:[%s1 + $0x28] sm:$0xf]
  %v44 = vld [vmem:[%s1 + $0x2c] sm:$0xf]
  %v45 = vld [vmem:[%s1 + $0x30] sm:$0xf]
  %v46 = vld [vmem:[%s1 + $0x34] sm:$0xf]
  %v47 = vld [vmem:[%s1 + $0x38] sm:$0xf]
  %v48 = vld [vmem:[%s1 + $0x3c] sm:$0xf]
  %v49 = vld [vmem:[%s1 + $0x40] sm:$0xf]
  %v50 = vld [vmem:[%s1 + $0x44] sm:$0xf]
  %v51 = vld [vmem:[%s1 + $0x48] sm:$0xf]
  %v52 = vld [vmem:[%s1 + $0x4c] sm:$0xf]
  %v53 = vld [vmem:[%s1 + $0x50] sm:$0xf]
  %v54 = vld [vmem:[%s1 + $0x54] sm:$0xf]
  %v55 = vld [vmem:[%s1 + $0x58] sm:$0xf]
  %v56 = vld [vmem:[%s1 + $0x5c] sm:$0xf]
  %v57 = vld [vmem:[%s1 + $0x60] sm:$0xf]
  %v58 = vld [vmem:[%s1 + $0x64] sm:$0xf]
  %v59 = vld [vmem:[%s1 + $0x68] sm:$0xf]
  %v60 = vld [vmem:[%s1 + $0x6c] sm:$0xf]
  %v61 = vld [vmem:[%s1 + $0x70] sm:$0xf]
  %v62 = vld [vmem:[%s1 + $0x74] sm:$0xf]
  %v63 = vld [vmem:[%s1 + $0x78] sm:$0xf]
  %v64 = vld [vmem:[%s1 + $0x7c] sm:$0xf]
  %v65 = vld [vmem:[%s1 + $0x80] sm:$0xf]
  %v66 = vld [vmem:[%s1 + $0x84] sm:$0xf]
  %v67 = vld [vmem:[%s1 + $0x88] sm:$0xf]
  %v68 = vld [vmem:[%s1 + $0x8c] sm:$0xf]
  %v69 = vld [vmem:[%s1 + $0x90] sm:$0xf]
  %v70 = vld [vmem:[%s1 + $0x94] sm:$0xf]
  %v71 = vld [vmem:[%s1 + $0x98] sm:$0xf]
  %v72 = vld [vmem:[%s1 + $0x9c] sm:$0xf]
  %v73 = vld [vmem:[%s1 + $0xa0] sm:$0xf]
  %v74 = vld [vmem:[%s1 + $0xa4] sm:$0xf]
  %v75 = vld [vmem:[%s1 + $0xa8] sm:$0xf]
  %v76 = vld [vmem:[%s1 + $0xac] sm:$0xf]
  %v77 = vld [vmem:[%s1 + $0xb0] sm:$0xf]
  %v78 = vld [vmem:[%s1 + $0xb4] sm:$0xf]
  %v79 = vld [vmem:[%s1 + $0xb8] sm:$0xf]
  %v80 = vld [vmem:[%s1 + $0xbc] sm:$0xf]
  %v81 = vld [vmem:[%s1 + $0xc0] sm:$0xf]
  %v82 = vld [vmem:[%s1 + $0xc4] sm:$0xf]
  %v83 = vld [vmem:[%s1 + $0xc8] sm:$0xf]
  %v84 = vld [vmem:[%s1 + $0xcc] sm:$0xf]
  %v85 = vld [vmem:[%s1 + $0xd0] sm:$0xf]
  %v86 = vld [vmem:[%s1 + $0xd4] sm:$0xf]
  %v87 = vld [vmem:[%s1 + $0xd8] sm:$0xf]
  %v88 = vld [vmem:[%s1 + $0xdc] sm:$0xf]
  %v89 = vld [vmem:[%s1 + $0xe0] sm:$0xf]
  %v90 = vld [vmem:[%s1 + $0xe4] sm:$0xf]
  %v91 = vld [vmem:[%s1 + $0xe8] sm:$0xf]
  %v92 = vld [vmem:[%s1 + $0xec] sm:$0xf]
  %v93 = vld [vmem:[%s1 + $0xf0] sm:$0xf]
  %v94 = vld [vmem:[%s1 + $0xf4] sm:$0xf]
  %v95 = vld [vmem:[%s1 + $0xf8] sm:$0xf]
  %v96 = vld [vmem:[%s1 + $0xfc] sm:$0xf]
  %v97 = vld [vmem:[%s1 + $0x100] sm:$0xf]
  %v98 = vld [vmem:[%s1 + $0x104] sm:$0xf]
  %v99 = vld [vmem:[%s1 + $0x108] sm:$0xf]
  %v100 = vld [vmem:[%s1 + $0x10c] sm:$0xf]
  %v101 = vld [vmem:[%s1 + $0x110] sm:$0xf]
  %v102 = vld [vmem:[%s1 + $0x114] sm:$0xf]
  %v103 = vld [vmem:[%s1 + $0x118] sm:$0xf]
  %v104 = vld [vmem:[%s1 + $0x11c] sm:$0xf]
  %v105 = vld [vmem:[%s1 + $0x120] sm:$0xf]
  %v106 = vld [vmem:[%s1 + $0x124] sm:$0xf]
  %v107 = vld [vmem:[%s1 + $0x128] sm:$0xf]
  %v108 = vld [vmem:[%s1 + $0x12c] sm:$0xf]
  %v109 = vld [vmem:[%s1 + $0x130] sm:$0xf]
  %v110 = vld [vmem:[%s1 + $0x134] sm:$0xf]
  %v111 = vld [vmem:[%s1 + $0x138] sm:$0xf]
  %v112 = vld [vmem:[%s1 + $0x13c] sm:$0xf]
  %v113 = vld [vmem:[%s1 + $0x140] sm:$0xf]
  %v114 = vld [vmem:[%s1 + $0x144] sm:$0xf]
  %v115 = vld [vmem:[%s1 + $0x148] sm:$0xf]
  %v116 = vld [vmem:[%s1 + $0x14c] sm:$0xf]
  %v117 = vld [vmem:[%s1 + $0x150] sm:$0xf]
  %v118 = vld [vmem:[%s1 + $0x154] sm:$0xf]
  %v119 = vld [vmem:[%s1 + $0x158] sm:$0xf]
  %v120 = vld [vmem:[%s1 + $0x15c] sm:$0xf]
  %v121 = vld [vmem:[%s1 + $0x160] sm:$0xf]
  %v122 = vld [vmem:[%s1 + $0x164] sm:$0xf]
  %v123 = vld [vmem:[%s1 + $0x168] sm:$0xf]
  %v124 = vld [vmem:[%s1 + $0x16c] sm:$0xf]
  %v125 = vld [vmem:[%s1 + $0x170] sm:$0xf]
  %v126 = vld [vmem:[%s1 + $0x174] sm:$0xf]
  %v127 = vld [vmem:[%s1 + $0x178] sm:$0xf]
  %v128 = vld [vmem:[%s1 + $0x17c] sm:$0xf]
  %v129 = vld [vmem:[%s1 + $0x180] sm:$0xf]
  %v130 = vld [vmem:[%s1 + $0x184] sm:$0xf]
  %v131 = vld [vmem:[%s1 + $0x188] sm:$0xf]
  %v132 = vld [vmem:[%s1 + $0x18c] sm:$0xf]
  %v133 = vld [vmem:[%s1 + $0x190] sm:$0xf]
  %v134 = vld [vmem:[%s1 + $0x194] sm:$0xf]
  %v135 = vld [vmem:[%s1 + $0x198] sm:$0xf]
  %v136 = vld [vmem:[%s1 + $0x19c] sm:$0xf]
  %v137 = vld [vmem:[%s1 + $0x1a0] sm:$0xf]
  %v138 = vld [vmem:[%s1 + $0x1a4] sm:$0xf]
  %v139 = vld [vmem:[%s1 + $0x1a8] sm:$0xf]
  %v140 = vld [vmem:[%s1 + $0x1ac] sm:$0xf]
  %v141 = vld [vmem:[%s1 + $0x1b0] sm:$0xf]
  %v142 = vld [vmem:[%s1 + $0x1b4] sm:$0xf]
  %v143 = vld [vmem:[%s1 + $0x1b8] sm:$0xf]
  %v144 = vld [vmem:[%s1 + $0x1bc] sm:$0xf]
  %v145 = vld [vmem:[%s1 + $0x1c0] sm:$0xf]
  %v146 = vld [vmem:[%s1 + $0x1c4] sm:$0xf]
  %v147 = vld [vmem:[%s1 + $0x1c8] sm:$0xf]
  %v148 = vld [vmem:[%s1 + $0x1cc] sm:$0xf]
  %v149 = vld [vmem:[%s1 + $0x1d0] sm:$0xf]
  %v150 = vld [vmem:[%s1 + $0x1d4] sm:$0xf]
  %v151 = vld [vmem:[%s1 + $0x1d8] sm:$0xf]
  %v152 = vld [vmem:[%s1 + $0x1dc] sm:$0xf]
  %v153 = vld [vmem:[%s1 + $0x1e0] sm:$0xf]
  %v154 = vld [vmem:[%s1 + $0x1e4] sm:$0xf]
  %v155 = vld [vmem:[%s1 + $0x1e8] sm:$0xf]
  %v156 = vld [vmem:[%s1 + $0x1ec] sm:$0xf]
  %v157 = vld [vmem:[%s1 + $0x1f0] sm:$0xf]
  %v158 = vld [vmem:[%s1 + $0x1f4] sm:$0xf]
  %v159 = vld [vmem:[%s1 + $0x1f8] sm:$0xf]
  %v160 = vld [vmem:[%s1 + $0x1fc] sm:$0xf]
  %v161 = vld [vmem:[%s1 + $0x200] sm:$0xf]
  %v162 = vld [vmem:[%s1 + $0x204] sm:$0xf]
  %v163 = vld [vmem:[%s1 + $0x208] sm:$0xf]
  %v164 = vld [vmem:[%s1 + $0x20c] sm:$0xf]
  %v165 = vld [vmem:[%s1 + $0x210] sm:$0xf]
  %v166 = vld [vmem:[%s1 + $0x214] sm:$0xf]
  %v167 = vld [vmem:[%s1 + $0x218] sm:$0xf]
  %v168 = vld [vmem:[%s1 + $0x21c] sm:$0xf]
  %v169 = vld [vmem:[%s1 + $0x220] sm:$0xf]
  %v170 = vld [vmem:[%s1 + $0x224] sm:$0xf]
  %v171 = vld [vmem:[%s1 + $0x228] sm:$0xf]
  %v172 = vld [vmem:[%s1 + $0x22c] sm:$0xf]
  %v173 = vld [vmem:[%s1 + $0x230] sm:$0xf]
  %v174 = vld [vmem:[%s1 + $0x234] sm:$0xf]
  %v175 = vld [vmem:[%s1 + $0x238] sm:$0xf]
  %v176 = vld [vmem:[%s1 + $0x23c] sm:$0xf]
  %v177 = vld [vmem:[%s1 + $0x240] sm:$0xf]
  %v178 = vld [vmem:[%s1 + $0x244] sm:$0xf]
  %v179 = vld [vmem:[%s1 + $0x248] sm:$0xf]
  %v180 = vld [vmem:[%s1 + $0x24c] sm:$0xf]
  %v181 = vld [vmem:[%s1 + $0x250] sm:$0xf]
  %v182 = vld [vmem:[%s1 + $0x254] sm:$0xf]
  %v183 = vld [vmem:[%s1 + $0x258] sm:$0xf]
  %v184 = vld [vmem:[%s1 + $0x25c] sm:$0xf]
  %v185 = vld [vmem:[%s1 + $0x260] sm:$0xf]
  %v186 = vld [vmem:[%s1 + $0x264] sm:$0xf]
  %v187 = vld [vmem:[%s1 + $0x268] sm:$0xf]
  %v188 = vld [vmem:[%s1 + $0x26c] sm:$0xf]
  %v189 = vld [vmem:[%s1 + $0x270] sm:$0xf]
  %v190 = vld [vmem:[%s1 + $0x274] sm:$0xf]
  %v191 = vld [vmem:[%s1 + $0x278] sm:$0xf]
  %v192 = vld [vmem:[%s1 + $0x27c] sm:$0xf]
  %v193 = vld [vmem:[%s1 + $0x280] sm:$0xf]
  %v194 = vld [vmem:[%s1 + $0x284] sm:$0xf]
  %v195 = vld [vmem:[%s1 + $0x288] sm:$0xf]
  %v196 = vld [vmem:[%s1 + $0x28c] sm:$0xf]
  %v197 = vld [vmem:[%s1 + $0x290] sm:$0xf]
  %v198 = vld [vmem:[%s1 + $0x294] sm:$0xf]
  %v199 = vld [vmem:[%s1 + $0x298] sm:$0xf]
  %v200 = vld [vmem:[%s1 + $0x29c] sm:$0xf]
  %v201 = vld [vmem:[%s1 + $0x2a0] sm:$0xf]
  %v202 = vld [vmem:[%s1 + $0x2a4] sm:$0xf]
  %v203 = vld [vmem:[%s1 + $0x2a8] sm:$0xf]
  %v204 = vld [vmem:[%s1 + $0x2ac] sm:$0xf]
  %v205 = vld [vmem:[%s1 + $0x2b0] sm:$0xf]
  %v206 = vld [vmem:[%s1 + $0x2b4] sm:$0xf]
  %v207 = vld [vmem:[%s1 + $0x2b8] sm:$0xf]
  %v208 = vld [vmem:[%s1 + $0x2bc] sm:$0xf]
  %v209 = vld [vmem:[%s1 + $0x2c0] sm:$0xf]
  %v210 = vld [vmem:[%s1 + $0x2c4] sm:$0xf]
  %v211 = vld [vmem:[%s1 + $0x2c8] sm:$0xf]
  %v212 = vld [vmem:[%s1 + $0x2cc] sm:$0xf]
  %v213 = vld [vmem:[%s1 + $0x2d0] sm:$0xf]
  %v214 = vld [vmem:[%s1 + $0x2d4] sm:$0xf]
  %v215 = vld [vmem:[%s1 + $0x2d8] sm:$0xf]
  %v216 = vld [vmem:[%s1 + $0x2dc] sm:$0xf]
  %v217 = vld [vmem:[%s1 + $0x2e0] sm:$0xf]
  %v218 = vld [vmem:[%s1 + $0x2e4] sm:$0xf]
  %v219 = vld [vmem:[%s1 + $0x2e8] sm:$0xf]
  %v220 = vld [vmem:[%s1 + $0x2ec] sm:$0xf]
  %v221 = vld [vmem:[%s1 + $0x2f0] sm:$0xf]
  %v222 = vld [vmem:[%s1 + $0x2f4] sm:$0xf]
  %v223 = vld [vmem:[%s1 + $0x2f8] sm:$0xf]
  %v224 = vld [vmem:[%s1 + $0x2fc] sm:$0xf]
  %v225 = vld [vmem:[%s1 + $0x300] sm:$0xf]
  %v226 = vld [vmem:[%s1 + $0x304] sm:$0xf]
  %v227 = vld [vmem:[%s1 + $0x308] sm:$0xf]
  %v228 = vld [vmem:[%s1 + $0x30c] sm:$0xf]
  %v229 = vld [vmem:[%s1 + $0x310] sm:$0xf]
  %v230 = vld [vmem:[%s1 + $0x314] sm:$0xf]
  %v231 = vld [vmem:[%s1 + $0x318] sm:$0xf]
  %v232 = vld [vmem:[%s1 + $0x31c] sm:$0xf]
  %v233 = vld [vmem:[%s1 + $0x320] sm:$0xf]
  %v234 = vld [vmem:[%s1 + $0x324] sm:$0xf]
  %v235 = vld [vmem:[%s1 + $0x328] sm:$0xf]
  %v236 = vld [vmem:[%s1 + $0x32c] sm:$0xf]
  %v237 = vld [vmem:[%s1 + $0x330] sm:$0xf]
  %v238 = vld [vmem:[%s1 + $0x334] sm:$0xf]
  %v239 = vld [vmem:[%s1 + $0x338] sm:$0xf]
  %v240 = vld [vmem:[%s1 + $0x33c] sm:$0xf]
  %v241 = vld [vmem:[%s1 + $0x340] sm:$0xf]
  %v242 = vld [vmem:[%s1 + $0x344] sm:$0xf]
  %v243 = vld [vmem:[%s1 + $0x348] sm:$0xf]
  %v244 = vld [vmem:[%s1 + $0x34c] sm:$0xf]
  %v245 = vld [vmem:[%s1 + $0x350] sm:$0xf]
  %v246 = vld [vmem:[%s1 + $0x354] sm:$0xf]
  %v247 = vld [vmem:[%s1 + $0x358] sm:$0xf]
  %v248 = vld [vmem:[%s1 + $0x35c] sm:$0xf]
  %v249 = vld [vmem:[%s1 + $0x360] sm:$0xf]
  %v250 = vld [vmem:[%s1 + $0x364] sm:$0xf]
  %v251 = vld [vmem:[%s1 + $0x368] sm:$0xf]
  %v252 = vld [vmem:[%s1 + $0x36c] sm:$0xf]
  %v253 = vld [vmem:[%s1 + $0x370] sm:$0xf]
  %v254 = vld [vmem:[%s1 + $0x374] sm:$0xf]
  %v255 = vld [vmem:[%s1 + $0x378] sm:$0xf]
  %v256 = vld [vmem:[%s1 + $0x37c] sm:$0xf]
  %v257 = vld [vmem:[%s1 + $0x380] sm:$0xf]
  %v258 = vld [vmem:[%s1 + $0x384] sm:$0xf]
  %v259 = vld [vmem:[%s1 + $0x388] sm:$0xf]
  %v260 = vld [vmem:[%s1 + $0x38c] sm:$0xf]
  %v261 = vld [vmem:[%s1 + $0x390] sm:$0xf]
  %v262 = vld [vmem:[%s1 + $0x394] sm:$0xf]
  %v263 = vld [vmem:[%s1 + $0x398] sm:$0xf]
  %v264 = vld [vmem:[%s1 + $0x39c] sm:$0xf]
  %v265 = vld [vmem:[%s1 + $0x3a0] sm:$0xf]
  %v266 = vld [vmem:[%s1 + $0x3a4] sm:$0xf]
  %v267 = vld [vmem:[%s1 + $0x3a8] sm:$0xf]
  %v268 = vld [vmem:[%s1 + $0x3ac] sm:$0xf]
  %v269 = vld [vmem:[%s1 + $0x3b0] sm:$0xf]
  %v270 = vld [vmem:[%s1 + $0x3b4] sm:$0xf]
  %v271 = vld [vmem:[%s1 + $0x3b8] sm:$0xf]
  %v272 = vld [vmem:[%s1 + $0x3bc] sm:$0xf]
  %v273 = vld [vmem:[%s1 + $0x3c0] sm:$0xf]
  %v274 = vld [vmem:[%s1 + $0x3c4] sm:$0xf]
  %v275 = vld [vmem:[%s1 + $0x3c8] sm:$0xf]
  %v276 = vld [vmem:[%s1 + $0x3cc] sm:$0xf]
  %v277 = vld [vmem:[%s1 + $0x3d0] sm:$0xf]
  %v278 = vld [vmem:[%s1 + $0x3d4] sm:$0xf]
  %v279 = vld [vmem:[%s1 + $0x3d8] sm:$0xf]
  %v280 = vld [vmem:[%s1 + $0x3dc] sm:$0xf]
  %v281 = vld [vmem:[%s1 + $0x3e0] sm:$0xf]
  %v282 = vld [vmem:[%s1 + $0x3e4] sm:$0xf]
  %v283 = vld [vmem:[%s1 + $0x3e8] sm:$0xf]
  %v284 = vld [vmem:[%s1 + $0x3ec] sm:$0xf]
  %v285 = vld [vmem:[%s1 + $0x3f0] sm:$0xf]
  %v286 = vld [vmem:[%s1 + $0x3f4] sm:$0xf]
  %v287 = vld [vmem:[%s1 + $0x3f8] sm:$0xf]
  %v288 = vld [vmem:[%s1 + $0x3fc] sm:$0xf]
  %v289 = vld [vmem:[%s1 + $0x400] sm:$0xf]
  %v290 = vld [vmem:[%s1 + $0x404] sm:$0xf]
  %v291 = vld [vmem:[%s1 + $0x408] sm:$0xf]
  %v292 = vld [vmem:[%s1 + $0x40c] sm:$0xf]
  %v293 = vld [vmem:[%s1 + $0x410] sm:$0xf]
  %v294 = vld [vmem:[%s1 + $0x414] sm:$0xf]
  %v295 = vld [vmem:[%s1 + $0x418] sm:$0xf]
  %v296 = vld [vmem:[%s1 + $0x41c] sm:$0xf]
  %v297 = vld [vmem:[%s1 + $0x420] sm:$0xf]
  %v298 = vld [vmem:[%s1 + $0x424] sm:$0xf]
  %v299 = vld [vmem:[%s1 + $0x428] sm:$0xf]
  %v300 = vld [vmem:[%s1 + $0x42c] sm:$0xf]
  %v301 = vld [vmem:[%s1 + $0x430] sm:$0xf]
  %v302 = vld [vmem:[%s1 + $0x434] sm:$0xf]
  %v303 = vld [vmem:[%s1 + $0x438] sm:$0xf]
  %v304 = vld [vmem:[%s1 + $0x43c] sm:$0xf]
  %v305 = vld [vmem:[%s1 + $0x440] sm:$0xf]
  %v306 = vld [vmem:[%s1 + $0x444] sm:$0xf]
  %v307 = vld [vmem:[%s1 + $0x448] sm:$0xf]
  %v308 = vld [vmem:[%s1 + $0x44c] sm:$0xf]
  %v309 = vld [vmem:[%s1 + $0x450] sm:$0xf]
  %v310 = vld [vmem:[%s1 + $0x454] sm:$0xf]
  %v311 = vld [vmem:[%s1 + $0x458] sm:$0xf]
  %v312 = vld [vmem:[%s1 + $0x45c] sm:$0xf]
  %v313 = vld [vmem:[%s1 + $0x460] sm:$0xf]
  %v314 = vld [vmem:[%s1 + $0x464] sm:$0xf]
  %v315 = vld [vmem:[%s1 + $0x468] sm:$0xf]
  %v316 = vld [vmem:[%s1 + $0x46c] sm:$0xf]
  %v317 = vld [vmem:[%s1 + $0x470] sm:$0xf]
  %v318 = vld [vmem:[%s1 + $0x474] sm:$0xf]
  %v319 = vld [vmem:[%s1 + $0x478] sm:$0xf]
  %v320 = vld [vmem:[%s1 + $0x47c] sm:$0xf]
  %v321 = vld [vmem:[%s2] sm:$0x1]
  %v323 = vlaneseq
  %v324 = vshrl.u32 %v323, 7
  %v325 = vsub.s32 0, %v324
  %v326 = vrot.slane %v321, %v325
  %v346 = vunpack.c.l.b16 %v15
  %v347 = vunpack.c.h.b16 %v15
  %v348 = vunpack.c.l.b16 %v16
  %v349 = vunpack.c.h.b16 %v16
  %v350 = vunpack.c.l.b16 %v17
  %v351 = vunpack.c.h.b16 %v17
  %v352 = vunpack.c.l.b16 %v18
  %v353 = vunpack.c.h.b16 %v18
  %v354 = vunpack.c.l.b16 %v19
  %v355 = vunpack.c.h.b16 %v19
  %v356 = vunpack.c.l.b16 %v20
  %v357 = vunpack.c.h.b16 %v20
  %v358 = vunpack.c.l.b16 %v21
  %v359 = vunpack.c.h.b16 %v21
  %v360 = vunpack.c.l.b16 %v22
  %v361 = vunpack.c.h.b16 %v22
  %v362 = vunpack.c.l.b16 %v23
  %v363 = vunpack.c.h.b16 %v23
  %v364 = vunpack.c.l.b16 %v24
  %v365 = vunpack.c.h.b16 %v24
  %v366 = vunpack.c.l.b16 %v25
  %v367 = vunpack.c.h.b16 %v25
  %v368 = vunpack.c.l.b16 %v26
  %v369 = vunpack.c.h.b16 %v26
  %v370 = vunpack.c.l.b16 %v27
  %v371 = vunpack.c.h.b16 %v27
  %v372 = vunpack.c.l.b16 %v28
  %v373 = vunpack.c.h.b16 %v28
  %v374 = vunpack.c.l.b16 %v29
  %v375 = vunpack.c.h.b16 %v29
  %v376 = vunpack.c.l.b16 %v30
  %v377 = vunpack.c.h.b16 %v30
  %v378 = vunpack.c.l.b16 %v31
  %v379 = vunpack.c.h.b16 %v31
  %v380 = vunpack.c.l.b16 %v32
  %v381 = vunpack.c.h.b16 %v32
  %v382 = vpack.c.b16 %v364, %v346
  %v383 = vpack.c.b16 %v365, %v347
  %v384 = vpack.c.b16 %v366, %v348
  %v385 = vpack.c.b16 %v367, %v349
  %v386 = vpack.c.b16 %v368, %v350
  %v387 = vpack.c.b16 %v369, %v351
  %v388 = vpack.c.b16 %v370, %v352
  %v389 = vpack.c.b16 %v371, %v353
  %v390 = vpack.c.b16 %v372, %v354
  %v391 = vpack.c.b16 %v373, %v355
  %v392 = vpack.c.b16 %v374, %v356
  %v393 = vpack.c.b16 %v375, %v357
  %v394 = vpack.c.b16 %v376, %v358
  %v395 = vpack.c.b16 %v377, %v359
  %v396 = vpack.c.b16 %v378, %v360
  %v397 = vpack.c.b16 %v379, %v361
  %v398 = vpack.c.b16 %v380, %v362
  %v399 = vpack.c.b16 %v381, %v363
  %v706 = vunpack.c.l.b16 %v33
  %v707 = vunpack.c.l.b16 %v34
  %v708 = vunpack.c.l.b16 %v35
  %v709 = vunpack.c.l.b16 %v36
  %v710 = vunpack.c.l.b16 %v37
  %v711 = vunpack.c.l.b16 %v38
  %v712 = vunpack.c.l.b16 %v39
  %v713 = vunpack.c.l.b16 %v40
  %v714 = vunpack.c.l.b16 %v41
  %v715 = vunpack.c.l.b16 %v42
  %v716 = vunpack.c.l.b16 %v43
  %v717 = vunpack.c.l.b16 %v44
  %v718 = vunpack.c.l.b16 %v45
  %v719 = vunpack.c.l.b16 %v46
  %v720 = vunpack.c.l.b16 %v47
  %v721 = vunpack.c.l.b16 %v48
  %v722 = vunpack.c.l.b16 %v49
  %v723 = vunpack.c.l.b16 %v50
  %v724 = vunpack.c.l.b16 %v51
  %v725 = vunpack.c.l.b16 %v52
  %v726 = vunpack.c.l.b16 %v53
  %v727 = vunpack.c.l.b16 %v54
  %v728 = vunpack.c.l.b16 %v55
  %v729 = vunpack.c.l.b16 %v56
  %v730 = vunpack.c.l.b16 %v57
  %v731 = vunpack.c.l.b16 %v58
  %v732 = vunpack.c.l.b16 %v59
  %v733 = vunpack.c.l.b16 %v60
  %v734 = vunpack.c.l.b16 %v61
  %v735 = vunpack.c.l.b16 %v62
  %v736 = vunpack.c.l.b16 %v63
  %v737 = vunpack.c.l.b16 %v64
  %v738 = vunpack.c.l.b16 %v65
  %v739 = vunpack.c.l.b16 %v66
  %v740 = vunpack.c.l.b16 %v67
  %v741 = vunpack.c.l.b16 %v68
  %v742 = vunpack.c.l.b16 %v69
  %v743 = vunpack.c.l.b16 %v70
  %v744 = vunpack.c.l.b16 %v71
  %v745 = vunpack.c.l.b16 %v72
  %v746 = vunpack.c.l.b16 %v73
  %v747 = vunpack.c.l.b16 %v74
  %v748 = vunpack.c.l.b16 %v75
  %v749 = vunpack.c.l.b16 %v76
  %v750 = vunpack.c.l.b16 %v77
  %v751 = vunpack.c.l.b16 %v78
  %v752 = vunpack.c.l.b16 %v79
  %v753 = vunpack.c.l.b16 %v80
  %v754 = vunpack.c.l.b16 %v81
  %v755 = vunpack.c.l.b16 %v82
  %v756 = vunpack.c.l.b16 %v83
  %v757 = vunpack.c.l.b16 %v84
  %v758 = vunpack.c.l.b16 %v85
  %v759 = vunpack.c.l.b16 %v86
  %v760 = vunpack.c.l.b16 %v87
  %v761 = vunpack.c.l.b16 %v88
  %v762 = vunpack.c.l.b16 %v89
  %v763 = vunpack.c.l.b16 %v90
  %v764 = vunpack.c.l.b16 %v91
  %v765 = vunpack.c.l.b16 %v92
  %v766 = vunpack.c.l.b16 %v93
  %v767 = vunpack.c.l.b16 %v94
  %v768 = vunpack.c.l.b16 %v95
  %v769 = vunpack.c.l.b16 %v96
  %v770 = vunpack.c.l.b16 %v97
  %v771 = vunpack.c.l.b16 %v98
  %v772 = vunpack.c.l.b16 %v99
  %v773 = vunpack.c.l.b16 %v100
  %v774 = vunpack.c.l.b16 %v101
  %v775 = vunpack.c.l.b16 %v102
  %v776 = vunpack.c.l.b16 %v103
  %v777 = vunpack.c.l.b16 %v104
  %v778 = vunpack.c.l.b16 %v105
  %v779 = vunpack.c.l.b16 %v106
  %v780 = vunpack.c.l.b16 %v107
  %v781 = vunpack.c.l.b16 %v108
  %v782 = vunpack.c.l.b16 %v109
  %v783 = vunpack.c.l.b16 %v110
  %v784 = vunpack.c.l.b16 %v111
  %v785 = vunpack.c.l.b16 %v112
  %v786 = vunpack.c.l.b16 %v113
  %v787 = vunpack.c.l.b16 %v114
  %v788 = vunpack.c.l.b16 %v115
  %v789 = vunpack.c.l.b16 %v116
  %v790 = vunpack.c.l.b16 %v117
  %v791 = vunpack.c.l.b16 %v118
  %v792 = vunpack.c.l.b16 %v119
  %v793 = vunpack.c.l.b16 %v120
  %v794 = vunpack.c.l.b16 %v121
  %v795 = vunpack.c.l.b16 %v122
  %v796 = vunpack.c.l.b16 %v123
  %v797 = vunpack.c.l.b16 %v124
  %v798 = vunpack.c.l.b16 %v125
  %v799 = vunpack.c.l.b16 %v126
  %v800 = vunpack.c.l.b16 %v127
  %v801 = vunpack.c.l.b16 %v128
  %v802 = vunpack.c.l.b16 %v129
  %v803 = vunpack.c.l.b16 %v130
  %v804 = vunpack.c.l.b16 %v131
  %v805 = vunpack.c.l.b16 %v132
  %v806 = vunpack.c.l.b16 %v133
  %v807 = vunpack.c.l.b16 %v134
  %v808 = vunpack.c.l.b16 %v135
  %v809 = vunpack.c.l.b16 %v136
  %v810 = vunpack.c.l.b16 %v137
  %v811 = vunpack.c.l.b16 %v138
  %v812 = vunpack.c.l.b16 %v139
  %v813 = vunpack.c.l.b16 %v140
  %v814 = vunpack.c.l.b16 %v141
  %v815 = vunpack.c.l.b16 %v142
  %v816 = vunpack.c.l.b16 %v143
  %v817 = vunpack.c.l.b16 %v144
  %v818 = vunpack.c.l.b16 %v145
  %v819 = vunpack.c.l.b16 %v146
  %v820 = vunpack.c.l.b16 %v147
  %v821 = vunpack.c.l.b16 %v148
  %v822 = vunpack.c.l.b16 %v149
  %v823 = vunpack.c.l.b16 %v150
  %v824 = vunpack.c.l.b16 %v151
  %v825 = vunpack.c.l.b16 %v152
  %v826 = vunpack.c.l.b16 %v153
  %v827 = vunpack.c.l.b16 %v154
  %v828 = vunpack.c.l.b16 %v155
  %v829 = vunpack.c.l.b16 %v156
  %v830 = vunpack.c.l.b16 %v157
  %v831 = vunpack.c.l.b16 %v158
  %v832 = vunpack.c.l.b16 %v159
  %v833 = vunpack.c.l.b16 %v160
  %v834 = vunpack.c.l.b16 %v161
  %v835 = vunpack.c.l.b16 %v162
  %v836 = vunpack.c.l.b16 %v163
  %v837 = vunpack.c.l.b16 %v164
  %v838 = vunpack.c.l.b16 %v165
  %v839 = vunpack.c.l.b16 %v166
  %v840 = vunpack.c.l.b16 %v167
  %v841 = vunpack.c.l.b16 %v168
  %v842 = vunpack.c.l.b16 %v169
  %v843 = vunpack.c.l.b16 %v170
  %v844 = vunpack.c.l.b16 %v171
  %v845 = vunpack.c.l.b16 %v172
  %v846 = vunpack.c.l.b16 %v173
  %v847 = vunpack.c.l.b16 %v174
  %v848 = vunpack.c.l.b16 %v175
  %v849 = vunpack.c.l.b16 %v176
  %v850 = vunpack.c.l.b16 %v177
  %v851 = vunpack.c.l.b16 %v178
  %v852 = vunpack.c.l.b16 %v179
  %v853 = vunpack.c.l.b16 %v180
  %v854 = vunpack.c.l.b16 %v181
  %v855 = vunpack.c.l.b16 %v182
  %v856 = vunpack.c.l.b16 %v183
  %v857 = vunpack.c.l.b16 %v184
  %v858 = vunpack.c.l.b16 %v185
  %v859 = vunpack.c.l.b16 %v186
  %v860 = vunpack.c.l.b16 %v187
  %v861 = vunpack.c.l.b16 %v188
  %v862 = vunpack.c.l.b16 %v189
  %v863 = vunpack.c.l.b16 %v190
  %v864 = vunpack.c.l.b16 %v191
  %v865 = vunpack.c.l.b16 %v192
  %v866 = vunpack.c.l.b16 %v193
  %v867 = vunpack.c.l.b16 %v194
  %v868 = vunpack.c.l.b16 %v195
  %v869 = vunpack.c.l.b16 %v196
  %v870 = vunpack.c.l.b16 %v197
  %v871 = vunpack.c.l.b16 %v198
  %v872 = vunpack.c.l.b16 %v199
  %v873 = vunpack.c.l.b16 %v200
  %v874 = vunpack.c.l.b16 %v201
  %v875 = vunpack.c.l.b16 %v202
  %v876 = vunpack.c.l.b16 %v203
  %v877 = vunpack.c.l.b16 %v204
  %v878 = vunpack.c.l.b16 %v205
  %v879 = vunpack.c.l.b16 %v206
  %v880 = vunpack.c.l.b16 %v207
  %v881 = vunpack.c.l.b16 %v208
  %v882 = vunpack.c.l.b16 %v209
  %v883 = vunpack.c.l.b16 %v210
  %v884 = vunpack.c.l.b16 %v211
  %v885 = vunpack.c.l.b16 %v212
  %v886 = vunpack.c.l.b16 %v213
  %v887 = vunpack.c.l.b16 %v214
  %v888 = vunpack.c.l.b16 %v215
  %v889 = vunpack.c.l.b16 %v216
  %v890 = vunpack.c.l.b16 %v217
  %v891 = vunpack.c.l.b16 %v218
  %v892 = vunpack.c.l.b16 %v219
  %v893 = vunpack.c.l.b16 %v220
  %v894 = vunpack.c.l.b16 %v221
  %v895 = vunpack.c.l.b16 %v222
  %v896 = vunpack.c.l.b16 %v223
  %v897 = vunpack.c.l.b16 %v224
  %v898 = vunpack.c.l.b16 %v225
  %v899 = vunpack.c.l.b16 %v226
  %v900 = vunpack.c.l.b16 %v227
  %v901 = vunpack.c.l.b16 %v228
  %v902 = vunpack.c.l.b16 %v229
  %v903 = vunpack.c.l.b16 %v230
  %v904 = vunpack.c.l.b16 %v231
  %v905 = vunpack.c.l.b16 %v232
  %v906 = vunpack.c.l.b16 %v233
  %v907 = vunpack.c.l.b16 %v234
  %v908 = vunpack.c.l.b16 %v235
  %v909 = vunpack.c.l.b16 %v236
  %v910 = vunpack.c.l.b16 %v237
  %v911 = vunpack.c.l.b16 %v238
  %v912 = vunpack.c.l.b16 %v239
  %v913 = vunpack.c.l.b16 %v240
  %v914 = vunpack.c.l.b16 %v241
  %v915 = vunpack.c.l.b16 %v242
  %v916 = vunpack.c.l.b16 %v243
  %v917 = vunpack.c.l.b16 %v244
  %v918 = vunpack.c.l.b16 %v245
  %v919 = vunpack.c.l.b16 %v246
  %v920 = vunpack.c.l.b16 %v247
  %v921 = vunpack.c.l.b16 %v248
  %v922 = vunpack.c.l.b16 %v249
  %v923 = vunpack.c.l.b16 %v250
  %v924 = vunpack.c.l.b16 %v251
  %v925 = vunpack.c.l.b16 %v252
  %v926 = vunpack.c.l.b16 %v253
  %v927 = vunpack.c.l.b16 %v254
  %v928 = vunpack.c.l.b16 %v255
  %v929 = vunpack.c.l.b16 %v256
  %v930 = vunpack.c.l.b16 %v257
  %v931 = vunpack.c.l.b16 %v258
  %v932 = vunpack.c.l.b16 %v259
  %v933 = vunpack.c.l.b16 %v260
  %v934 = vunpack.c.l.b16 %v261
  %v935 = vunpack.c.l.b16 %v262
  %v936 = vunpack.c.l.b16 %v263
  %v937 = vunpack.c.l.b16 %v264
  %v938 = vunpack.c.l.b16 %v265
  %v939 = vunpack.c.l.b16 %v266
  %v940 = vunpack.c.l.b16 %v267
  %v941 = vunpack.c.l.b16 %v268
  %v942 = vunpack.c.l.b16 %v269
  %v943 = vunpack.c.l.b16 %v270
  %v944 = vunpack.c.l.b16 %v271
  %v945 = vunpack.c.l.b16 %v272
  %v946 = vunpack.c.l.b16 %v273
  %v947 = vunpack.c.l.b16 %v274
  %v948 = vunpack.c.l.b16 %v275
  %v949 = vunpack.c.l.b16 %v276
  %v950 = vunpack.c.l.b16 %v277
  %v951 = vunpack.c.l.b16 %v278
  %v952 = vunpack.c.l.b16 %v279
  %v953 = vunpack.c.l.b16 %v280
  %v954 = vunpack.c.l.b16 %v281
  %v955 = vunpack.c.l.b16 %v282
  %v956 = vunpack.c.l.b16 %v283
  %v957 = vunpack.c.l.b16 %v284
  %v958 = vunpack.c.l.b16 %v285
  %v959 = vunpack.c.l.b16 %v286
  %v960 = vunpack.c.l.b16 %v287
  %v961 = vunpack.c.l.b16 %v288
  %v962 = vunpack.c.l.b16 %v289
  %v963 = vunpack.c.l.b16 %v290
  %v964 = vunpack.c.l.b16 %v291
  %v965 = vunpack.c.l.b16 %v292
  %v966 = vunpack.c.l.b16 %v293
  %v967 = vunpack.c.l.b16 %v294
  %v968 = vunpack.c.l.b16 %v295
  %v969 = vunpack.c.l.b16 %v296
  %v970 = vunpack.c.l.b16 %v297
  %v971 = vunpack.c.l.b16 %v298
  %v972 = vunpack.c.l.b16 %v299
  %v973 = vunpack.c.l.b16 %v300
  %v974 = vunpack.c.l.b16 %v301
  %v975 = vunpack.c.l.b16 %v302
  %v976 = vunpack.c.l.b16 %v303
  %v977 = vunpack.c.l.b16 %v304
  %v978 = vunpack.c.l.b16 %v305
  %v979 = vunpack.c.l.b16 %v306
  %v980 = vunpack.c.l.b16 %v307
  %v981 = vunpack.c.l.b16 %v308
  %v982 = vunpack.c.l.b16 %v309
  %v983 = vunpack.c.l.b16 %v310
  %v984 = vunpack.c.l.b16 %v311
  %v985 = vunpack.c.l.b16 %v312
  %v986 = vunpack.c.l.b16 %v313
  %v987 = vunpack.c.l.b16 %v314
  %v988 = vunpack.c.l.b16 %v315
  %v989 = vunpack.c.l.b16 %v316
  %v990 = vunpack.c.l.b16 %v317
  %v991 = vunpack.c.l.b16 %v318
  %v992 = vunpack.c.l.b16 %v319
  %v993 = vunpack.c.l.b16 %v320
  %v994 = vpack.c.b16 %v707, %v706
  %v995 = vpack.c.b16 %v709, %v708
  %v996 = vpack.c.b16 %v711, %v710
  %v997 = vpack.c.b16 %v713, %v712
  %v998 = vpack.c.b16 %v715, %v714
  %v999 = vpack.c.b16 %v717, %v716
  %v1000 = vpack.c.b16 %v719, %v718
  %v1001 = vpack.c.b16 %v721, %v720
  %v1002 = vpack.c.b16 %v723, %v722
  %v1003 = vpack.c.b16 %v725, %v724
  %v1004 = vpack.c.b16 %v727, %v726
  %v1005 = vpack.c.b16 %v729, %v728
  %v1006 = vpack.c.b16 %v731, %v730
  %v1007 = vpack.c.b16 %v733, %v732
  %v1008 = vpack.c.b16 %v735, %v734
  %v1009 = vpack.c.b16 %v737, %v736
  %v1010 = vpack.c.b16 %v739, %v738
  %v1011 = vpack.c.b16 %v741, %v740
  %v1012 = vpack.c.b16 %v743, %v742
  %v1013 = vpack.c.b16 %v745, %v744
  %v1014 = vpack.c.b16 %v747, %v746
  %v1015 = vpack.c.b16 %v749, %v748
  %v1016 = vpack.c.b16 %v751, %v750
  %v1017 = vpack.c.b16 %v753, %v752
  %v1018 = vpack.c.b16 %v755, %v754
  %v1019 = vpack.c.b16 %v757, %v756
  %v1020 = vpack.c.b16 %v759, %v758
  %v1021 = vpack.c.b16 %v761, %v760
  %v1022 = vpack.c.b16 %v763, %v762
  %v1023 = vpack.c.b16 %v765, %v764
  %v1024 = vpack.c.b16 %v767, %v766
  %v1025 = vpack.c.b16 %v769, %v768
  %v1026 = vpack.c.b16 %v771, %v770
  %v1027 = vpack.c.b16 %v773, %v772
  %v1028 = vpack.c.b16 %v775, %v774
  %v1029 = vpack.c.b16 %v777, %v776
  %v1030 = vpack.c.b16 %v779, %v778
  %v1031 = vpack.c.b16 %v781, %v780
  %v1032 = vpack.c.b16 %v783, %v782
  %v1033 = vpack.c.b16 %v785, %v784
  %v1034 = vpack.c.b16 %v787, %v786
  %v1035 = vpack.c.b16 %v789, %v788
  %v1036 = vpack.c.b16 %v791, %v790
  %v1037 = vpack.c.b16 %v793, %v792
  %v1038 = vpack.c.b16 %v795, %v794
  %v1039 = vpack.c.b16 %v797, %v796
  %v1040 = vpack.c.b16 %v799, %v798
  %v1041 = vpack.c.b16 %v801, %v800
  %v1042 = vpack.c.b16 %v803, %v802
  %v1043 = vpack.c.b16 %v805, %v804
  %v1044 = vpack.c.b16 %v807, %v806
  %v1045 = vpack.c.b16 %v809, %v808
  %v1046 = vpack.c.b16 %v811, %v810
  %v1047 = vpack.c.b16 %v813, %v812
  %v1048 = vpack.c.b16 %v815, %v814
  %v1049 = vpack.c.b16 %v817, %v816
  %v1050 = vpack.c.b16 %v819, %v818
  %v1051 = vpack.c.b16 %v821, %v820
  %v1052 = vpack.c.b16 %v823, %v822
  %v1053 = vpack.c.b16 %v825, %v824
  %v1054 = vpack.c.b16 %v827, %v826
  %v1055 = vpack.c.b16 %v829, %v828
  %v1056 = vpack.c.b16 %v831, %v830
  %v1057 = vpack.c.b16 %v833, %v832
  %v1058 = vpack.c.b16 %v835, %v834
  %v1059 = vpack.c.b16 %v837, %v836
  %v1060 = vpack.c.b16 %v839, %v838
  %v1061 = vpack.c.b16 %v841, %v840
  %v1062 = vpack.c.b16 %v843, %v842
  %v1063 = vpack.c.b16 %v845, %v844
  %v1064 = vpack.c.b16 %v847, %v846
  %v1065 = vpack.c.b16 %v849, %v848
  %v1066 = vpack.c.b16 %v851, %v850
  %v1067 = vpack.c.b16 %v853, %v852
  %v1068 = vpack.c.b16 %v855, %v854
  %v1069 = vpack.c.b16 %v857, %v856
  %v1070 = vpack.c.b16 %v859, %v858
  %v1071 = vpack.c.b16 %v861, %v860
  %v1072 = vpack.c.b16 %v863, %v862
  %v1073 = vpack.c.b16 %v865, %v864
  %v1074 = vpack.c.b16 %v867, %v866
  %v1075 = vpack.c.b16 %v869, %v868
  %v1076 = vpack.c.b16 %v871, %v870
  %v1077 = vpack.c.b16 %v873, %v872
  %v1078 = vpack.c.b16 %v875, %v874
  %v1079 = vpack.c.b16 %v877, %v876
  %v1080 = vpack.c.b16 %v879, %v878
  %v1081 = vpack.c.b16 %v881, %v880
  %v1082 = vpack.c.b16 %v883, %v882
  %v1083 = vpack.c.b16 %v885, %v884
  %v1084 = vpack.c.b16 %v887, %v886
  %v1085 = vpack.c.b16 %v889, %v888
  %v1086 = vpack.c.b16 %v891, %v890
  %v1087 = vpack.c.b16 %v893, %v892
  %v1088 = vpack.c.b16 %v895, %v894
  %v1089 = vpack.c.b16 %v897, %v896
  %v1090 = vpack.c.b16 %v899, %v898
  %v1091 = vpack.c.b16 %v901, %v900
  %v1092 = vpack.c.b16 %v903, %v902
  %v1093 = vpack.c.b16 %v905, %v904
  %v1094 = vpack.c.b16 %v907, %v906
  %v1095 = vpack.c.b16 %v909, %v908
  %v1096 = vpack.c.b16 %v911, %v910
  %v1097 = vpack.c.b16 %v913, %v912
  %v1098 = vpack.c.b16 %v915, %v914
  %v1099 = vpack.c.b16 %v917, %v916
  %v1100 = vpack.c.b16 %v919, %v918
  %v1101 = vpack.c.b16 %v921, %v920
  %v1102 = vpack.c.b16 %v923, %v922
  %v1103 = vpack.c.b16 %v925, %v924
  %v1104 = vpack.c.b16 %v927, %v926
  %v1105 = vpack.c.b16 %v929, %v928
  %v1106 = vpack.c.b16 %v931, %v930
  %v1107 = vpack.c.b16 %v933, %v932
  %v1108 = vpack.c.b16 %v935, %v934
  %v1109 = vpack.c.b16 %v937, %v936
  %v1110 = vpack.c.b16 %v939, %v938
  %v1111 = vpack.c.b16 %v941, %v940
  %v1112 = vpack.c.b16 %v943, %v942
  %v1113 = vpack.c.b16 %v945, %v944
  %v1114 = vpack.c.b16 %v947, %v946
  %v1115 = vpack.c.b16 %v949, %v948
  %v1116 = vpack.c.b16 %v951, %v950
  %v1117 = vpack.c.b16 %v953, %v952
  %v1118 = vpack.c.b16 %v955, %v954
  %v1119 = vpack.c.b16 %v957, %v956
  %v1120 = vpack.c.b16 %v959, %v958
  %v1121 = vpack.c.b16 %v961, %v960
  %v1122 = vpack.c.b16 %v963, %v962
  %v1123 = vpack.c.b16 %v965, %v964
  %v1124 = vpack.c.b16 %v967, %v966
  %v1125 = vpack.c.b16 %v969, %v968
  %v1126 = vpack.c.b16 %v971, %v970
  %v1127 = vpack.c.b16 %v973, %v972
  %v1128 = vpack.c.b16 %v975, %v974
  %v1129 = vpack.c.b16 %v977, %v976
  %v1130 = vpack.c.b16 %v979, %v978
  %v1131 = vpack.c.b16 %v981, %v980
  %v1132 = vpack.c.b16 %v983, %v982
  %v1133 = vpack.c.b16 %v985, %v984
  %v1134 = vpack.c.b16 %v987, %v986
  %v1135 = vpack.c.b16 %v989, %v988
  %v1136 = vpack.c.b16 %v991, %v990
  %v1137 = vpack.c.b16 %v993, %v992
  %1282 = vmatprep.subr.bf16.mxu0 0
  %1283 = vmatpush1.bf16.msra.mxu0 %v994
  %1284 = vmatprep.subr.bf16.mxu0 0
  %1285 = vmatpush1.bf16.msra.mxu0 %v995
  %1286 = vmatprep.subr.bf16.mxu0 0
  %1287 = vmatpush1.bf16.msra.mxu0 %v996
  %1288 = vmatprep.subr.bf16.mxu0 0
  %1289 = vmatpush1.bf16.msra.mxu0 %v997
  %1290 = vmatprep.subr.bf16.mxu0 0
  %1291 = vmatpush1.bf16.msra.mxu0 %v998
  %1292 = vmatprep.subr.bf16.mxu0 0
  %1293 = vmatpush1.bf16.msra.mxu0 %v999
  %1294 = vmatprep.subr.bf16.mxu0 0
  %1295 = vmatpush1.bf16.msra.mxu0 %v1000
  %1296 = vmatprep.subr.bf16.mxu0 0
  %1297 = vmatpush1.bf16.msra.mxu0 %v1001
  %1298 = vmatprep.subr.bf16.mxu0 0
  %1299 = vmatpush1.bf16.msra.mxu0 %v1002
  %1300 = vmatprep.subr.bf16.mxu0 0
  %1301 = vmatpush1.bf16.msra.mxu0 %v1003
  %1302 = vmatprep.subr.bf16.mxu0 0
  %1303 = vmatpush1.bf16.msra.mxu0 %v1004
  %1304 = vmatprep.subr.bf16.mxu0 0
  %1305 = vmatpush1.bf16.msra.mxu0 %v1005
  %1306 = vmatprep.subr.bf16.mxu0 0
  %1307 = vmatpush1.bf16.msra.mxu0 %v1006
  %1308 = vmatprep.subr.bf16.mxu0 0
  %1309 = vmatpush1.bf16.msra.mxu0 %v1007
  %1310 = vmatprep.subr.bf16.mxu0 0
  %1311 = vmatpush1.bf16.msra.mxu0 %v1008
  %1312 = vmatprep.subr.bf16.mxu0 0
  %1313 = vmatpush1.bf16.msra.mxu0 %v1009
  %1314 = vmatprep.mubr.bf16.mxu0 %v383
  %1315 = vmatmul.mubr.bf16.gmra.mrb[0].mxu0 %v382
  %v1316 = vpop.f32.mrb[0].mxu0
  %v1317 = vadd.f32 %v326, %v1316
  %v1318 = vpop.f32.mrb[0].mxu0
  %v1319 = vpop.f32.mrb[0].mxu0
  %v1320 = vadd.f32 %v326, %v1319
  %v1321 = vpop.f32.mrb[0].mxu0
  %1322 = vdwg.mxu0
  %1323 = vmatprep.subr.bf16.mxu0 0
  %1324 = vmatpush1.bf16.msra.mxu0 %v1010
  %1325 = vmatprep.subr.bf16.mxu0 0
  %1326 = vmatpush1.bf16.msra.mxu0 %v1011
  %1327 = vmatprep.subr.bf16.mxu0 0
  %1328 = vmatpush1.bf16.msra.mxu0 %v1012
  %1329 = vmatprep.subr.bf16.mxu0 0
  %1330 = vmatpush1.bf16.msra.mxu0 %v1013
  %1331 = vmatprep.subr.bf16.mxu0 0
  %1332 = vmatpush1.bf16.msra.mxu0 %v1014
  %1333 = vmatprep.subr.bf16.mxu0 0
  %1334 = vmatpush1.bf16.msra.mxu0 %v1015
  %1335 = vmatprep.subr.bf16.mxu0 0
  %1336 = vmatpush1.bf16.msra.mxu0 %v1016
  %1337 = vmatprep.subr.bf16.mxu0 0
  %1338 = vmatpush1.bf16.msra.mxu0 %v1017
  %1339 = vmatprep.subr.bf16.mxu0 0
  %1340 = vmatpush1.bf16.msra.mxu0 %v1018
  %1341 = vmatprep.subr.bf16.mxu0 0
  %1342 = vmatpush1.bf16.msra.mxu0 %v1019
  %1343 = vmatprep.subr.bf16.mxu0 0
  %1344 = vmatpush1.bf16.msra.mxu0 %v1020
  %1345 = vmatprep.subr.bf16.mxu0 0
  %1346 = vmatpush1.bf16.msra.mxu0 %v1021
  %1347 = vmatprep.subr.bf16.mxu0 0
  %1348 = vmatpush1.bf16.msra.mxu0 %v1022
  %1349 = vmatprep.subr.bf16.mxu0 0
  %1350 = vmatpush1.bf16.msra.mxu0 %v1023
  %1351 = vmatprep.subr.bf16.mxu0 0
  %1352 = vmatpush1.bf16.msra.mxu0 %v1024
  %1353 = vmatprep.subr.bf16.mxu0 0
  %1354 = vmatpush1.bf16.msra.mxu0 %v1025
  %1355 = vmatprep.mubr.bf16.mxu0 %v385
  %1356 = vmatmul.mubr.bf16.gmra.mrb[0].mxu0 %v384
  %v1357 = vpop.f32.mrb[0].mxu0
  %v1358 = vadd.f32 %v1317, %v1357
  %v1359 = vpop.f32.mrb[0].mxu0
  %v1360 = vpop.f32.mrb[0].mxu0
  %v1361 = vadd.f32 %v1320, %v1360
  %v1362 = vpop.f32.mrb[0].mxu0
  %1363 = vdwg.mxu0
  %1364 = vmatprep.subr.bf16.mxu0 0
  %1365 = vmatpush1.bf16.msra.mxu0 %v1026
  %1366 = vmatprep.subr.bf16.mxu0 0
  %1367 = vmatpush1.bf16.msra.mxu0 %v1027
  %1368 = vmatprep.subr.bf16.mxu0 0
  %1369 = vmatpush1.bf16.msra.mxu0 %v1028
  %1370 = vmatprep.subr.bf16.mxu0 0
  %1371 = vmatpush1.bf16.msra.mxu0 %v1029
  %1372 = vmatprep.subr.bf16.mxu0 0
  %1373 = vmatpush1.bf16.msra.mxu0 %v1030
  %1374 = vmatprep.subr.bf16.mxu0 0
  %1375 = vmatpush1.bf16.msra.mxu0 %v1031
  %1376 = vmatprep.subr.bf16.mxu0 0
  %1377 = vmatpush1.bf16.msra.mxu0 %v1032
  %1378 = vmatprep.subr.bf16.mxu0 0
  %1379 = vmatpush1.bf16.msra.mxu0 %v1033
  %1380 = vmatprep.subr.bf16.mxu0 0
  %1381 = vmatpush1.bf16.msra.mxu0 %v1034
  %1382 = vmatprep.subr.bf16.mxu0 0
  %1383 = vmatpush1.bf16.msra.mxu0 %v1035
  %1384 = vmatprep.subr.bf16.mxu0 0
  %1385 = vmatpush1.bf16.msra.mxu0 %v1036
  %1386 = vmatprep.subr.bf16.mxu0 0
  %1387 = vmatpush1.bf16.msra.mxu0 %v1037
  %1388 = vmatprep.subr.bf16.mxu0 0
  %1389 = vmatpush1.bf16.msra.mxu0 %v1038
  %1390 = vmatprep.subr.bf16.mxu0 0
  %1391 = vmatpush1.bf16.msra.mxu0 %v1039
  %1392 = vmatprep.subr.bf16.mxu0 0
  %1393 = vmatpush1.bf16.msra.mxu0 %v1040
  %1394 = vmatprep.subr.bf16.mxu0 0
  %1395 = vmatpush1.bf16.msra.mxu0 %v1041
  %1396 = vmatprep.mubr.bf16.mxu0 %v387
  %1397 = vmatmul.mubr.bf16.gmra.mrb[0].mxu0 %v386
  %v1398 = vpop.f32.mrb[0].mxu0
  %v1399 = vadd.f32 %v1358, %v1398
  %v1400 = vpop.f32.mrb[0].mxu0
  %v1401 = vpop.f32.mrb[0].mxu0
  %v1402 = vadd.f32 %v1361, %v1401
  %v1403 = vpop.f32.mrb[0].mxu0
  %1404 = vdwg.mxu0
  %1405 = vmatprep.subr.bf16.mxu0 0
  %1406 = vmatpush1.bf16.msra.mxu0 %v1042
  %1407 = vmatprep.subr.bf16.mxu0 0
  %1408 = vmatpush1.bf16.msra.mxu0 %v1043
  %1409 = vmatprep.subr.bf16.mxu0 0
  %1410 = vmatpush1.bf16.msra.mxu0 %v1044
  %1411 = vmatprep.subr.bf16.mxu0 0
  %1412 = vmatpush1.bf16.msra.mxu0 %v1045
  %1413 = vmatprep.subr.bf16.mxu0 0
  %1414 = vmatpush1.bf16.msra.mxu0 %v1046
  %1415 = vmatprep.subr.bf16.mxu0 0
  %1416 = vmatpush1.bf16.msra.mxu0 %v1047
  %1417 = vmatprep.subr.bf16.mxu0 0
  %1418 = vmatpush1.bf16.msra.mxu0 %v1048
  %1419 = vmatprep.subr.bf16.mxu0 0
  %1420 = vmatpush1.bf16.msra.mxu0 %v1049
  %1421 = vmatprep.subr.bf16.mxu0 0
  %1422 = vmatpush1.bf16.msra.mxu0 %v1050
  %1423 = vmatprep.subr.bf16.mxu0 0
  %1424 = vmatpush1.bf16.msra.mxu0 %v1051
  %1425 = vmatprep.subr.bf16.mxu0 0
  %1426 = vmatpush1.bf16.msra.mxu0 %v1052
  %1427 = vmatprep.subr.bf16.mxu0 0
  %1428 = vmatpush1.bf16.msra.mxu0 %v1053
  %1429 = vmatprep.subr.bf16.mxu0 0
  %1430 = vmatpush1.bf16.msra.mxu0 %v1054
  %1431 = vmatprep.subr.bf16.mxu0 0
  %1432 = vmatpush1.bf16.msra.mxu0 %v1055
  %1433 = vmatprep.subr.bf16.mxu0 0
  %1434 = vmatpush1.bf16.msra.mxu0 %v1056
  %1435 = vmatprep.subr.bf16.mxu0 0
  %1436 = vmatpush1.bf16.msra.mxu0 %v1057
  %1437 = vmatprep.mubr.bf16.mxu0 %v389
  %1438 = vmatmul.mubr.bf16.gmra.mrb[0].mxu0 %v388
  %v1439 = vpop.f32.mrb[0].mxu0
  %v1440 = vadd.f32 %v1399, %v1439
  %v1441 = vpop.f32.mrb[0].mxu0
  %v1442 = vpop.f32.mrb[0].mxu0
  %v1443 = vadd.f32 %v1402, %v1442
  %v1444 = vpop.f32.mrb[0].mxu0
  %1445 = vdwg.mxu0
  %1446 = vmatprep.subr.bf16.mxu0 0
  %1447 = vmatpush1.bf16.msra.mxu0 %v1058
  %1448 = vmatprep.subr.bf16.mxu0 0
  %1449 = vmatpush1.bf16.msra.mxu0 %v1059
  %1450 = vmatprep.subr.bf16.mxu0 0
  %1451 = vmatpush1.bf16.msra.mxu0 %v1060
  %1452 = vmatprep.subr.bf16.mxu0 0
  %1453 = vmatpush1.bf16.msra.mxu0 %v1061
  %1454 = vmatprep.subr.bf16.mxu0 0
  %1455 = vmatpush1.bf16.msra.mxu0 %v1062
  %1456 = vmatprep.subr.bf16.mxu0 0
  %1457 = vmatpush1.bf16.msra.mxu0 %v1063
  %1458 = vmatprep.subr.bf16.mxu0 0
  %1459 = vmatpush1.bf16.msra.mxu0 %v1064
  %1460 = vmatprep.subr.bf16.mxu0 0
  %1461 = vmatpush1.bf16.msra.mxu0 %v1065
  %1462 = vmatprep.subr.bf16.mxu0 0
  %1463 = vmatpush1.bf16.msra.mxu0 %v1066
  %1464 = vmatprep.subr.bf16.mxu0 0
  %1465 = vmatpush1.bf16.msra.mxu0 %v1067
  %1466 = vmatprep.subr.bf16.mxu0 0
  %1467 = vmatpush1.bf16.msra.mxu0 %v1068
  %1468 = vmatprep.subr.bf16.mxu0 0
  %1469 = vmatpush1.bf16.msra.mxu0 %v1069
  %1470 = vmatprep.subr.bf16.mxu0 0
  %1471 = vmatpush1.bf16.msra.mxu0 %v1070
  %1472 = vmatprep.subr.bf16.mxu0 0
  %1473 = vmatpush1.bf16.msra.mxu0 %v1071
  %1474 = vmatprep.subr.bf16.mxu0 0
  %1475 = vmatpush1.bf16.msra.mxu0 %v1072
  %1476 = vmatprep.subr.bf16.mxu0 0
  %1477 = vmatpush1.bf16.msra.mxu0 %v1073
  %1478 = vmatprep.mubr.bf16.mxu0 %v391
  %1479 = vmatmul.mubr.bf16.gmra.mrb[0].mxu0 %v390
  %v1480 = vpop.f32.mrb[0].mxu0
  %v1481 = vadd.f32 %v1440, %v1480
  %v1482 = vpop.f32.mrb[0].mxu0
  %v1483 = vpop.f32.mrb[0].mxu0
  %v1484 = vadd.f32 %v1443, %v1483
  %v1485 = vpop.f32.mrb[0].mxu0
  %1486 = vdwg.mxu0
  %1487 = vmatprep.subr.bf16.mxu0 0
  %1488 = vmatpush1.bf16.msra.mxu0 %v1074
  %1489 = vmatprep.subr.bf16.mxu0 0
  %1490 = vmatpush1.bf16.msra.mxu0 %v1075
  %1491 = vmatprep.subr.bf16.mxu0 0
  %1492 = vmatpush1.bf16.msra.mxu0 %v1076
  %1493 = vmatprep.subr.bf16.mxu0 0
  %1494 = vmatpush1.bf16.msra.mxu0 %v1077
  %1495 = vmatprep.subr.bf16.mxu0 0
  %1496 = vmatpush1.bf16.msra.mxu0 %v1078
  %1497 = vmatprep.subr.bf16.mxu0 0
  %1498 = vmatpush1.bf16.msra.mxu0 %v1079
  %1499 = vmatprep.subr.bf16.mxu0 0
  %1500 = vmatpush1.bf16.msra.mxu0 %v1080
  %1501 = vmatprep.subr.bf16.mxu0 0
  %1502 = vmatpush1.bf16.msra.mxu0 %v1081
  %1503 = vmatprep.subr.bf16.mxu0 0
  %1504 = vmatpush1.bf16.msra.mxu0 %v1082
  %1505 = vmatprep.subr.bf16.mxu0 0
  %1506 = vmatpush1.bf16.msra.mxu0 %v1083
  %1507 = vmatprep.subr.bf16.mxu0 0
  %1508 = vmatpush1.bf16.msra.mxu0 %v1084
  %1509 = vmatprep.subr.bf16.mxu0 0
  %1510 = vmatpush1.bf16.msra.mxu0 %v1085
  %1511 = vmatprep.subr.bf16.mxu0 0
  %1512 = vmatpush1.bf16.msra.mxu0 %v1086
  %1513 = vmatprep.subr.bf16.mxu0 0
  %1514 = vmatpush1.bf16.msra.mxu0 %v1087
  %1515 = vmatprep.subr.bf16.mxu0 0
  %1516 = vmatpush1.bf16.msra.mxu0 %v1088
  %1517 = vmatprep.subr.bf16.mxu0 0
  %1518 = vmatpush1.bf16.msra.mxu0 %v1089
  %1519 = vmatprep.mubr.bf16.mxu0 %v393
  %1520 = vmatmul.mubr.bf16.gmra.mrb[0].mxu0 %v392
  %v1521 = vpop.f32.mrb[0].mxu0
  %v1522 = vadd.f32 %v1481, %v1521
  %v1523 = vpop.f32.mrb[0].mxu0
  %v1524 = vpop.f32.mrb[0].mxu0
  %v1525 = vadd.f32 %v1484, %v1524
  %v1526 = vpop.f32.mrb[0].mxu0
  %1527 = vdwg.mxu0
  %1528 = vmatprep.subr.bf16.mxu0 0
  %1529 = vmatpush1.bf16.msra.mxu0 %v1090
  %1530 = vmatprep.subr.bf16.mxu0 0
  %1531 = vmatpush1.bf16.msra.mxu0 %v1091
  %1532 = vmatprep.subr.bf16.mxu0 0
  %1533 = vmatpush1.bf16.msra.mxu0 %v1092
  %1534 = vmatprep.subr.bf16.mxu0 0
  %1535 = vmatpush1.bf16.msra.mxu0 %v1093
  %1536 = vmatprep.subr.bf16.mxu0 0
  %1537 = vmatpush1.bf16.msra.mxu0 %v1094
  %1538 = vmatprep.subr.bf16.mxu0 0
  %1539 = vmatpush1.bf16.msra.mxu0 %v1095
  %1540 = vmatprep.subr.bf16.mxu0 0
  %1541 = vmatpush1.bf16.msra.mxu0 %v1096
  %1542 = vmatprep.subr.bf16.mxu0 0
  %1543 = vmatpush1.bf16.msra.mxu0 %v1097
  %1544 = vmatprep.subr.bf16.mxu0 0
  %1545 = vmatpush1.bf16.msra.mxu0 %v1098
  %1546 = vmatprep.subr.bf16.mxu0 0
  %1547 = vmatpush1.bf16.msra.mxu0 %v1099
  %1548 = vmatprep.subr.bf16.mxu0 0
  %1549 = vmatpush1.bf16.msra.mxu0 %v1100
  %1550 = vmatprep.subr.bf16.mxu0 0
  %1551 = vmatpush1.bf16.msra.mxu0 %v1101
  %1552 = vmatprep.subr.bf16.mxu0 0
  %1553 = vmatpush1.bf16.msra.mxu0 %v1102
  %1554 = vmatprep.subr.bf16.mxu0 0
  %1555 = vmatpush1.bf16.msra.mxu0 %v1103
  %1556 = vmatprep.subr.bf16.mxu0 0
  %1557 = vmatpush1.bf16.msra.mxu0 %v1104
  %1558 = vmatprep.subr.bf16.mxu0 0
  %1559 = vmatpush1.bf16.msra.mxu0 %v1105
  %1560 = vmatprep.mubr.bf16.mxu0 %v395
  %1561 = vmatmul.mubr.bf16.gmra.mrb[0].mxu0 %v394
  %v1562 = vpop.f32.mrb[0].mxu0
  %v1563 = vadd.f32 %v1522, %v1562
  %v1564 = vpop.f32.mrb[0].mxu0
  %v1565 = vpop.f32.mrb[0].mxu0
  %v1566 = vadd.f32 %v1525, %v1565
  %v1567 = vpop.f32.mrb[0].mxu0
  %1568 = vdwg.mxu0
  %1569 = vmatprep.subr.bf16.mxu0 0
  %1570 = vmatpush1.bf16.msra.mxu0 %v1106
  %1571 = vmatprep.subr.bf16.mxu0 0
  %1572 = vmatpush1.bf16.msra.mxu0 %v1107
  %1573 = vmatprep.subr.bf16.mxu0 0
  %1574 = vmatpush1.bf16.msra.mxu0 %v1108
  %1575 = vmatprep.subr.bf16.mxu0 0
  %1576 = vmatpush1.bf16.msra.mxu0 %v1109
  %1577 = vmatprep.subr.bf16.mxu0 0
  %1578 = vmatpush1.bf16.msra.mxu0 %v1110
  %1579 = vmatprep.subr.bf16.mxu0 0
  %1580 = vmatpush1.bf16.msra.mxu0 %v1111
  %1581 = vmatprep.subr.bf16.mxu0 0
  %1582 = vmatpush1.bf16.msra.mxu0 %v1112
  %1583 = vmatprep.subr.bf16.mxu0 0
  %1584 = vmatpush1.bf16.msra.mxu0 %v1113
  %1585 = vmatprep.subr.bf16.mxu0 0
  %1586 = vmatpush1.bf16.msra.mxu0 %v1114
  %1587 = vmatprep.subr.bf16.mxu0 0
  %1588 = vmatpush1.bf16.msra.mxu0 %v1115
  %1589 = vmatprep.subr.bf16.mxu0 0
  %1590 = vmatpush1.bf16.msra.mxu0 %v1116
  %1591 = vmatprep.subr.bf16.mxu0 0
  %1592 = vmatpush1.bf16.msra.mxu0 %v1117
  %1593 = vmatprep.subr.bf16.mxu0 0
  %1594 = vmatpush1.bf16.msra.mxu0 %v1118
  %1595 = vmatprep.subr.bf16.mxu0 0
  %1596 = vmatpush1.bf16.msra.mxu0 %v1119
  %1597 = vmatprep.subr.bf16.mxu0 0
  %1598 = vmatpush1.bf16.msra.mxu0 %v1120
  %1599 = vmatprep.subr.bf16.mxu0 0
  %1600 = vmatpush1.bf16.msra.mxu0 %v1121
  %1601 = vmatprep.mubr.bf16.mxu0 %v397
  %1602 = vmatmul.mubr.bf16.gmra.mrb[0].mxu0 %v396
  %v1603 = vpop.f32.mrb[0].mxu0
  %v1604 = vadd.f32 %v1563, %v1603
  %v1605 = vpop.f32.mrb[0].mxu0
  %v1606 = vpop.f32.mrb[0].mxu0
  %v1607 = vadd.f32 %v1566, %v1606
  %v1608 = vpop.f32.mrb[0].mxu0
  %1609 = vdwg.mxu0
  %1610 = vmatprep.subr.bf16.mxu0 0
  %1611 = vmatpush1.bf16.msra.mxu0 %v1122
  %1612 = vmatprep.subr.bf16.mxu0 0
  %1613 = vmatpush1.bf16.msra.mxu0 %v1123
  %1614 = vmatprep.subr.bf16.mxu0 0
  %1615 = vmatpush1.bf16.msra.mxu0 %v1124
  %1616 = vmatprep.subr.bf16.mxu0 0
  %1617 = vmatpush1.bf16.msra.mxu0 %v1125
  %1618 = vmatprep.subr.bf16.mxu0 0
  %1619 = vmatpush1.bf16.msra.mxu0 %v1126
  %1620 = vmatprep.subr.bf16.mxu0 0
  %1621 = vmatpush1.bf16.msra.mxu0 %v1127
  %1622 = vmatprep.subr.bf16.mxu0 0
  %1623 = vmatpush1.bf16.msra.mxu0 %v1128
  %1624 = vmatprep.subr.bf16.mxu0 0
  %1625 = vmatpush1.bf16.msra.mxu0 %v1129
  %1626 = vmatprep.subr.bf16.mxu0 0
  %1627 = vmatpush1.bf16.msra.mxu0 %v1130
  %1628 = vmatprep.subr.bf16.mxu0 0
  %1629 = vmatpush1.bf16.msra.mxu0 %v1131
  %1630 = vmatprep.subr.bf16.mxu0 0
  %1631 = vmatpush1.bf16.msra.mxu0 %v1132
  %1632 = vmatprep.subr.bf16.mxu0 0
  %1633 = vmatpush1.bf16.msra.mxu0 %v1133
  %1634 = vmatprep.subr.bf16.mxu0 0
  %1635 = vmatpush1.bf16.msra.mxu0 %v1134
  %1636 = vmatprep.subr.bf16.mxu0 0
  %1637 = vmatpush1.bf16.msra.mxu0 %v1135
  %1638 = vmatprep.subr.bf16.mxu0 0
  %1639 = vmatpush1.bf16.msra.mxu0 %v1136
  %1640 = vmatprep.subr.bf16.mxu0 0
  %1641 = vmatpush1.bf16.msra.mxu0 %v1137
  %1642 = vmatprep.mubr.bf16.mxu0 %v399
  %1643 = vmatmul.mubr.bf16.gmra.mrb[0].mxu0 %v398
  %v1644 = vpop.f32.mrb[0].mxu0
  %v1645 = vadd.f32 %v1604, %v1644
  %v1646 = vpop.f32.mrb[0].mxu0
  %v1647 = vpop.f32.mrb[0].mxu0
  %v1648 = vadd.f32 %v1607, %v1647
  %v1649 = vpop.f32.mrb[0].mxu0
  %1650 = vdwg.mxu0
  %1651 = vst [vmem:[%s3] sm:$0xff] %v1645
  %1652 = vst [vmem:[%s3 + $0x8] sm:$0xff] %v1648
  // Predicated region
  $region14: #{_lambda_.11} parent=0 // pred_check
    _
  $region15: #{_lambda_.11} parent=0 // pred_check_branch
    %1654 = sbr.rel (0) target = $region17
  $region16: #{_lambda_.11} parent=0 // pred_region
    _
  $region17: #{_lambda_.11} parent=0 // pred_fallthru
    _
  // Predicated region
  $region18: #{_lambda_.11} parent=0 // pred_check
    _
  $region19: #{_lambda_.11} parent=0 // pred_check_branch
    %1656 = sbr.rel (0) target = $region21
  $region20: #{_lambda_.11} parent=0 // pred_region
    _
  $region21: #{_lambda_.11} parent=0 // pred_fallthru
    _

</llo_original>
